<compile_context>
chip_gen: v7x
topology: tpu7x:2x2x1
jax: 0.10.0
libtpu: 0.0.40
codegen_flags: <defaults>
</compile_context>

<pallas_src>
import functools
import math

import jax
import jax.numpy as jnp
from jax.experimental import pallas as pl
from jax.experimental.pallas import tpu as pltpu

# ----------------------------- hyper-params ---------------------------------
B = 2            # batch
T = 8            # sequence length
VOCAB = 50
EMB_DIM = 32     # "BERT" embedding dim
H = 64           # lstm_hidden_dim (PyTorch default); 2H = 128 -> vreg-aligned gates
LSTM_LAYERS = 2
NUM_HEADS = 2    # attn_heads
N_TAGS = 5
TAG_PAD = 128    # lane-dense padded logits width
ENC_DIM = 2 * H  # bidirectional encoder output dim (= attention embed dim)


# ------------------------- fused forward-pass kernel -------------------------
def _model_ee_kernel(tok_ref, emb_ref,
                     wih1_ref, whh1_ref, b1_ref,
                     wih2_ref, whh2_ref, b2_ref,
                     wqkv_ref, bqkv_ref, wo_ref, bo_ref,
                     wfc_ref, bfc_ref,
                     out_ref, *, seq_len, hidden, num_heads):
    Tk = seq_len
    Hk = hidden
    E = 2 * Hk
    rows = tok_ref.shape[0]          # = T * Bq (time-major rows)
    Bq = rows // Tk
    bf16 = jnp.bfloat16

    # ---- embedding lookup in-kernel: one-hot (rows,VOCAB) @ table (VOCAB,EMB)
    tok = tok_ref[...]                                            # (rows, 1) int32
    vocab = emb_ref.shape[0]
    vcol = jax.lax.broadcasted_iota(jnp.int32, (rows, vocab), 1)
    onehot = jnp.where(vcol == tok, 1.0, 0.0).astype(bf16)
    x = jnp.dot(onehot, emb_ref[...], preferred_element_type=jnp.float32)

    # Lane mask selecting the "forward-direction" gate columns of the
    # [i_f i_b | f_f f_b | g_f g_b | o_f o_b] layout (each sub-block H wide).
    gcol = jax.lax.broadcasted_iota(jnp.int32, (1, 8 * Hk), 1)
    fwd_mask = (gcol % (2 * Hk)) < Hk                             # (1, 8H) bool

    # --------------------- fused-direction BiLSTM layer ----------------------
    def bilstm(x_flat, wih, whh_bd, b):
        # x_flat: (T*Bq, Din), time-major rows (row = t*Bq + b).
        gx = jnp.dot(x_flat.astype(bf16), wih,
                     preferred_element_type=jnp.float32) + b       # (T*Bq, 8H)
        gx = gx.reshape(Tk, Bq, 8 * Hk)                            # time-major
        hcat = jnp.zeros((Bq, 2 * Hk), jnp.float32)                # [h_fwd | h_bwd]
        ccat = jnp.zeros((Bq, 2 * Hk), jnp.float32)
        hf = [None] * Tk
        hb = [None] * Tk
        for step in range(Tk):                   # static unroll; 1 fused step/t
            tf = step
            tb = Tk - 1 - step
            # fwd gates from time tf, bwd gates from time tb (single lane-select,
            # independent of hcat -> off the serial recurrence path).
            gx_t = jnp.where(fwd_mask, gx[tf], gx[tb])
            gates = gx_t + jnp.dot(hcat.astype(bf16), whh_bd,
                                   preferred_element_type=jnp.float32)
            i = jax.nn.sigmoid(gates[:, 0:2 * Hk])       # PyTorch gate order i,f,g,o
            f = jax.nn.sigmoid(gates[:, 2 * Hk:4 * Hk])
            g = jnp.tanh(gates[:, 4 * Hk:6 * Hk])
            o = jax.nn.sigmoid(gates[:, 6 * Hk:8 * Hk])
            ccat = f * ccat + i * g
            hcat = o * jnp.tanh(ccat)
            hf[tf] = hcat[:, :Hk]
            hb[tb] = hcat[:, Hk:]
        out = jnp.concatenate([jnp.stack(hf, 0), jnp.stack(hb, 0)], axis=-1)
        return out.reshape(Tk * Bq, 2 * Hk)                        # time-major (T*Bq, 2H)

    h1 = bilstm(x, wih1_ref[...], whh1_ref[...], b1_ref[...])
    h2 = bilstm(h1, wih2_ref[...], whh2_ref[...], b2_ref[...])

    # ---------------- multi-head self-attention + FC head --------------------
    # One transpose to batch-major for attention; all later rows are batch-major.
    h2_bm = jnp.transpose(h2.reshape(Tk, Bq, E), (1, 0, 2)).reshape(Bq * Tk, E)
    qkv = jnp.dot(h2_bm.astype(bf16), wqkv_ref[...],
                  preferred_element_type=jnp.float32) + bqkv_ref[...]
    q3 = qkv[:, 0:E].reshape(Bq, Tk, E)        # 1/sqrt(Hd) already folded into Wq/bq
    k3 = qkv[:, E:2 * E].reshape(Bq, Tk, E)
    v3 = qkv[:, 2 * E:3 * E].reshape(Bq, Tk, E)

    Hd = E // num_heads
    ctx_heads = []
    for hh in range(num_heads):                # static 2-head loop (tiny shapes)
        sl = slice(hh * Hd, (hh + 1) * Hd)
        s = jnp.einsum('bqd,bkd->bqk', q3[:, :, sl].astype(bf16),
                       k3[:, :, sl].astype(bf16),
                       preferred_element_type=jnp.float32)
        s = s - jnp.max(s, axis=-1, keepdims=True)
        p = jnp.exp(s)
        p = p * pl.reciprocal(jnp.sum(p, axis=-1, keepdims=True), approx=True)
        ctx_heads.append(jnp.einsum('bqk,bkd->bqd', p.astype(bf16),
                                    v3[:, :, sl].astype(bf16),
                                    preferred_element_type=jnp.float32))
    ctx = jnp.concatenate(ctx_heads, axis=-1).reshape(Bq * Tk, E)
    attn = jnp.dot(ctx.astype(bf16), wo_ref[...],
                   preferred_element_type=jnp.float32) + bo_ref[...]

    # Final tag projection, padded to 128 lanes for an unmasked lane-dense store.
    logits = jnp.dot(attn.astype(bf16), wfc_ref[...],
                     preferred_element_type=jnp.float32) + bfc_ref[...]
    out_ref[...] = logits                                           # (Bq*T, TAG_PAD)


# ------------------------------ pallas wrapper --------------------------------
def fused_forward(params, tokens):
    """Single pallas_call running embedding + BiLSTM x2 + attention + tag head."""
    Bn, Tn = tokens.shape
    kern = functools.partial(_model_ee_kernel, seq_len=Tn, hidden=H,
                             num_heads=NUM_HEADS)
    weights = (params['emb'],
               params['wih1'], params['whh1'], params['b1'],
               params['wih2'], params['whh2'], params['b2'],
               params['wqkv'], params['bqkv'], params['wo'], params['bo'],
               params['wfc'], params['bfc'])

    def full_spec(a):
        r = a.ndim
        return pl.BlockSpec(a.shape, lambda b, _r=r: (0,) * _r)

    dev_kind = jax.devices()[0].device_kind.lower()
    split_batch = ('v7' in dev_kind) and Bn > 1
    if split_batch:
        # v7x: 2 TensorCores/chip -> one sequence per core (work is independent
        # per batch element). Rows inside each block are time-major (Bq=1).
        tok2d = tokens.reshape(Bn * Tn, 1)
        grid = (Bn,)
        tok_spec = pl.BlockSpec((Tn, 1), lambda b: (b, 0))
        out_spec = pl.BlockSpec((Tn, TAG_PAD), lambda b: (b, 0))
        dim_sem = ("parallel",)
    else:
        # v5e/v6e: single TensorCore -> one grid step over the whole batch
        # (a grid here would just serialize and double the recurrence chain).
        tok2d = tokens.T.reshape(Bn * Tn, 1)        # time-major rows
        grid = (1,)
        tok_spec = pl.BlockSpec((Bn * Tn, 1), lambda b: (0, 0))
        out_spec = pl.BlockSpec((Bn * Tn, TAG_PAD), lambda b: (0, 0))
        dim_sem = ("arbitrary",)

    out = pl.pallas_call(
        kern,
        out_shape=jax.ShapeDtypeStruct((Bn * Tn, TAG_PAD), jnp.float32),
        grid=grid,
        in_specs=[tok_spec] + [full_spec(w) for w in weights],
        out_specs=out_spec,
        compiler_params=pltpu.CompilerParams(dimension_semantics=dim_sem),
    )(tok2d, *weights)
    return out.reshape(Bn, Tn, TAG_PAD)[:, :, :N_TAGS]


# ------------------------------ parameter init --------------------------------
def _gate_pair(wf, wb):
    """Rearrange fwd/bwd [i f g o] columns into [i_f i_b | f_f f_b | g_f g_b | o_f o_b]."""
    parts = []
    for g in range(4):
        parts.append(wf[..., g * H:(g + 1) * H])
        parts.append(wb[..., g * H:(g + 1) * H])
    return jnp.concatenate(parts, axis=-1)


def init_params(key):
    def nrm(k, shape, scale=0.1):
        return scale * jax.random.normal(k, shape, dtype=jnp.float32)

    keys = jax.random.split(key, 40)
    ki = iter(keys)
    p = {}
    p['emb'] = nrm(next(ki), (VOCAB, EMB_DIM), 1.0).astype(jnp.bfloat16)

    in_dim = EMB_DIM
    for layer in range(1, LSTM_LAYERS + 1):
        wih_f = nrm(next(ki), (in_dim, 4 * H)); whh_f = nrm(next(ki), (H, 4 * H))
        b_f = nrm(next(ki), (1, 4 * H))          # NOTE: b_ih + b_hh folded together
        wih_b = nrm(next(ki), (in_dim, 4 * H)); whh_b = nrm(next(ki), (H, 4 * H))
        b_b = nrm(next(ki), (1, 4 * H))
        p[f'wih{layer}'] = _gate_pair(wih_f, wih_b).astype(jnp.bfloat16)  # (in, 8H)
        p[f'b{layer}'] = _gate_pair(b_f, b_b)                             # (1, 8H) f32
        # block-diagonal W_hh: [h_f | h_b] (B,2H) x (2H,8H) does both directions at once
        whh_bd = jnp.concatenate(
            [_gate_pair(whh_f, jnp.zeros_like(whh_b)),
             _gate_pair(jnp.zeros_like(whh_f), whh_b)], axis=0)           # (2H, 8H)
        p[f'whh{layer}'] = whh_bd.astype(jnp.bfloat16)
        in_dim = 2 * H

    E = ENC_DIM
    Hd = E // NUM_HEADS
    scale = 1.0 / math.sqrt(Hd)
    wq = nrm(next(ki), (E, E)) * scale; bq = nrm(next(ki), (1, E)) * scale  # scale folded
    wk = nrm(next(ki), (E, E)); bk = nrm(next(ki), (1, E))
    wv = nrm(next(ki), (E, E)); bv = nrm(next(ki), (1, E))
    p['wqkv'] = jnp.concatenate([wq, wk, wv], axis=1).astype(jnp.bfloat16)  # (E, 3E)
    p['bqkv'] = jnp.concatenate([bq, bk, bv], axis=1)                       # (1, 3E) f32
    p['wo'] = nrm(next(ki), (E, E)).astype(jnp.bfloat16)
    p['bo'] = nrm(next(ki), (1, E))

    wfc = nrm(next(ki), (E, N_TAGS)); bfc = nrm(next(ki), (1, N_TAGS))
    # pad tag projection to 128 lanes (kernel output is lane-dense; wrapper slices)
    p['wfc'] = (jnp.zeros((E, TAG_PAD), jnp.float32)
                .at[:, :N_TAGS].set(wfc).astype(jnp.bfloat16))
    p['bfc'] = jnp.zeros((1, TAG_PAD), jnp.float32).at[:, :N_TAGS].set(bfc)
    return p


# ------------------------------ forward pass ----------------------------------
def model_ee_forward(params, tokens, tags=None):
    logits = fused_forward(params, tokens)            # (B, T, N_TAGS)
    loss = None
    if tags is not None:
        logp = jax.nn.log_softmax(logits, axis=-1)
        loss = -jnp.mean(jnp.take_along_axis(logp, tags[..., None], axis=-1))
    return logits, loss


# ----------------------------------- main --------------------------------------
if __name__ == "__main__":
    key = jax.random.PRNGKey(0)
    pkey, tkey, gkey = jax.random.split(key, 3)
    params = init_params(pkey)
    tokens = jax.random.randint(tkey, (B, T), 0, VOCAB, dtype=jnp.int32)
    tags = jax.random.randint(gkey, (B, T), 0, N_TAGS, dtype=jnp.int32)

    fwd = jax.jit(model_ee_forward)
    ed_out, ed_loss = fwd(params, tokens, tags)
    jax.block_until_ready(ed_out)
    jax.block_until_ready(ed_loss)
    assert ed_out.shape == (B, T, N_TAGS)
    assert bool(jnp.isfinite(ed_out).all()) and bool(jnp.isfinite(ed_loss))
    print("KERNEL_OK")
</pallas_src>

<mosaic_0001>
module attributes {stable_mosaic.version = 11 : i64} {
  func.func @_model_ee_kernel(%arg0: i32, %arg1: memref<16x1xi32, #tpu.memory_space<vmem>>, %arg2: memref<50x32xbf16, #tpu.memory_space<vmem>>, %arg3: memref<32x512xbf16, #tpu.memory_space<vmem>>, %arg4: memref<128x512xbf16, #tpu.memory_space<vmem>>, %arg5: memref<1x512xf32, #tpu.memory_space<vmem>>, %arg6: memref<128x512xbf16, #tpu.memory_space<vmem>>, %arg7: memref<128x512xbf16, #tpu.memory_space<vmem>>, %arg8: memref<1x512xf32, #tpu.memory_space<vmem>>, %arg9: memref<128x384xbf16, #tpu.memory_space<vmem>>, %arg10: memref<1x384xf32, #tpu.memory_space<vmem>>, %arg11: memref<128x128xbf16, #tpu.memory_space<vmem>>, %arg12: memref<1x128xf32, #tpu.memory_space<vmem>>, %arg13: memref<128x128xbf16, #tpu.memory_space<vmem>>, %arg14: memref<1x128xf32, #tpu.memory_space<vmem>>, %arg15: memref<16x128xf32, #tpu.memory_space<vmem>>) attributes {dimension_semantics = [#tpu.dimension_semantics<arbitrary>], iteration_bounds = array<i64: 1>, scalar_prefetch = 0 : i64, scratch_operands = 0 : i64, tpu.core_type = #tpu.core_type<tc>, window_params = [{pipeline_mode = #tpu.pipeline_mode<synchronous>, transform_indices = @transform_0, window_bounds = array<i64: 16, 1>}, {pipeline_mode = #tpu.pipeline_mode<synchronous>, transform_indices = @transform_1, window_bounds = array<i64: 50, 32>}, {pipeline_mode = #tpu.pipeline_mode<synchronous>, transform_indices = @transform_2, window_bounds = array<i64: 32, 512>}, {pipeline_mode = #tpu.pipeline_mode<synchronous>, transform_indices = @transform_3, window_bounds = array<i64: 128, 512>}, {pipeline_mode = #tpu.pipeline_mode<synchronous>, transform_indices = @transform_4, window_bounds = array<i64: 1, 512>}, {pipeline_mode = #tpu.pipeline_mode<synchronous>, transform_indices = @transform_5, window_bounds = array<i64: 128, 512>}, {pipeline_mode = #tpu.pipeline_mode<synchronous>, transform_indices = @transform_6, window_bounds = array<i64: 128, 512>}, {pipeline_mode = #tpu.pipeline_mode<synchronous>, transform_indices = @transform_7, window_bounds = array<i64: 1, 512>}, {pipeline_mode = #tpu.pipeline_mode<synchronous>, transform_indices = @transform_8, window_bounds = array<i64: 128, 384>}, {pipeline_mode = #tpu.pipeline_mode<synchronous>, transform_indices = @transform_9, window_bounds = array<i64: 1, 384>}, {pipeline_mode = #tpu.pipeline_mode<synchronous>, transform_indices = @transform_10, window_bounds = array<i64: 128, 128>}, {pipeline_mode = #tpu.pipeline_mode<synchronous>, transform_indices = @transform_11, window_bounds = array<i64: 1, 128>}, {pipeline_mode = #tpu.pipeline_mode<synchronous>, transform_indices = @transform_12, window_bounds = array<i64: 128, 128>}, {pipeline_mode = #tpu.pipeline_mode<synchronous>, transform_indices = @transform_13, window_bounds = array<i64: 1, 128>}, {pipeline_mode = #tpu.pipeline_mode<synchronous>, transform_indices = @transform_14, window_bounds = array<i64: 16, 128>}]} {
    %c0 = arith.constant 0 : index
    %c0_0 = arith.constant 0 : index
    %0 = vector.load %arg1[%c0, %c0_0] : memref<16x1xi32, #tpu.memory_space<vmem>>, vector<16x1xi32>
    %1 = tpu.iota {dimensions = array<i32: 1>} : vector<16x50xi32>
    %2 = vector.broadcast %0 : vector<16x1xi32> to vector<16x50xi32>
    %3 = arith.cmpi eq, %1, %2 : vector<16x50xi32>
    %cst = arith.constant 1.000000e+00 : f32
    %cst_1 = arith.constant 0.000000e+00 : f32
    %4 = vector.broadcast %cst : f32 to vector<16x50xf32>
    %5 = vector.broadcast %cst_1 : f32 to vector<16x50xf32>
    %6 = arith.select %3, %4, %5 : vector<16x50xi1>, vector<16x50xf32>
    %7 = arith.truncf %6 : vector<16x50xf32> to vector<16x50xbf16>
    %c0_2 = arith.constant 0 : index
    %c0_3 = arith.constant 0 : index
    %8 = vector.load %arg2[%c0_2, %c0_3] : memref<50x32xbf16, #tpu.memory_space<vmem>>, vector<50x32xbf16>
    %cst_4 = arith.constant dense<0.000000e+00> : vector<16x32xf32>
    %9 = tpu.matmul %7, %8, %cst_4 {dimension_numbers = #tpu.dot_dimension_numbers<[1], [0], [0], [1], [0, 0, 1, 1], [], []>} : vector<16x50xbf16>, vector<50x32xbf16>, vector<16x32xf32> -> vector<16x32xf32>
    %10 = tpu.iota {dimensions = array<i32: 1>} : vector<1x512xi32>
    %c128_i32 = arith.constant 128 : i32
    %c0_i32 = arith.constant 0 : i32
    %11 = arith.cmpi eq, %c128_i32, %c0_i32 : i32
    %c1_i32 = arith.constant 1 : i32
    %12 = arith.select %11, %c1_i32, %c128_i32 : i32
    %13 = vector.broadcast %12 : i32 to vector<1x512xi32>
    %14 = arith.remsi %10, %13 : vector<1x512xi32>
    %c0_i32_5 = arith.constant 0 : i32
    %15 = vector.broadcast %c0_i32_5 : i32 to vector<1x512xi32>
    %16 = arith.cmpi ne, %14, %15 : vector<1x512xi32>
    %c0_i32_6 = arith.constant 0 : i32
    %17 = vector.broadcast %c0_i32_6 : i32 to vector<1x512xi32>
    %18 = arith.cmpi slt, %14, %17 : vector<1x512xi32>
    %c0_i32_7 = arith.constant 0 : i32
    %19 = arith.cmpi slt, %12, %c0_i32_7 : i32
    %20 = vector.broadcast %19 : i1 to vector<1x512xi1>
    %21 = vector.broadcast %20 : vector<1x512xi1> to vector<1x512xi1>
    %22 = arith.xori %18, %21 : vector<1x512xi1>
    %23 = arith.andi %22, %16 : vector<1x512xi1>
    %24 = vector.broadcast %12 : i32 to vector<1x512xi32>
    %25 = arith.addi %14, %24 : vector<1x512xi32>
    %26 = arith.select %23, %25, %14 : vector<1x512xi1>, vector<1x512xi32>
    %c64_i32 = arith.constant 64 : i32
    %27 = vector.broadcast %c64_i32 : i32 to vector<1x512xi32>
    %28 = arith.cmpi slt, %26, %27 : vector<1x512xi32>
    %c0_8 = arith.constant 0 : index
    %c0_9 = arith.constant 0 : index
    %29 = vector.load %arg3[%c0_8, %c0_9] : memref<32x512xbf16, #tpu.memory_space<vmem>>, vector<32x512xbf16>
    %c0_10 = arith.constant 0 : index
    %c0_11 = arith.constant 0 : index
    %30 = vector.load %arg4[%c0_10, %c0_11] : memref<128x512xbf16, #tpu.memory_space<vmem>>, vector<128x512xbf16>
    %c0_12 = arith.constant 0 : index
    %c0_13 = arith.constant 0 : index
    %31 = vector.load %arg5[%c0_12, %c0_13] : memref<1x512xf32, #tpu.memory_space<vmem>>, vector<1x512xf32>
    %32 = arith.truncf %9 : vector<16x32xf32> to vector<16x32xbf16>
    %cst_14 = arith.constant dense<0.000000e+00> : vector<16x512xf32>
    %33 = tpu.matmul %32, %29, %cst_14 {dimension_numbers = #tpu.dot_dimension_numbers<[1], [0], [0], [1], [0, 0, 1, 1], [], []>} : vector<16x32xbf16>, vector<32x512xbf16>, vector<16x512xf32> -> vector<16x512xf32>
    %34 = vector.broadcast %31 : vector<1x512xf32> to vector<16x512xf32>
    %35 = arith.addf %33, %34 : vector<16x512xf32>
    %36 = vector.shape_cast %35 : vector<16x512xf32> to vector<8x2x512xf32>
    %cst_15 = arith.constant 0.000000e+00 : f32
    %37 = vector.broadcast %cst_15 : f32 to vector<2x128xf32>
    %cst_16 = arith.constant 0.000000e+00 : f32
    %38 = vector.broadcast %cst_16 : f32 to vector<2x128xf32>
    %39 = vector.extract_strided_slice %36 {offsets = [0, 0, 0], sizes = [1, 2, 512], strides = [1, 1, 1]} : vector<8x2x512xf32> to vector<1x2x512xf32>
    %40 = vector.shape_cast %39 : vector<1x2x512xf32> to vector<2x512xf32>
    %41 = vector.extract_strided_slice %36 {offsets = [7, 0, 0], sizes = [1, 2, 512], strides = [1, 1, 1]} : vector<8x2x512xf32> to vector<1x2x512xf32>
    %42 = vector.shape_cast %41 : vector<1x2x512xf32> to vector<2x512xf32>
    %43 = vector.shape_cast %28 : vector<1x512xi1> to vector<1x512xi1>
    %44 = vector.broadcast %43 : vector<1x512xi1> to vector<2x512xi1>
    %45 = arith.select %44, %40, %42 : vector<2x512xi1>, vector<2x512xf32>
    %46 = arith.truncf %37 : vector<2x128xf32> to vector<2x128xbf16>
    %cst_17 = arith.constant dense<0.000000e+00> : vector<2x512xf32>
    %47 = tpu.matmul %46, %30, %cst_17 {dimension_numbers = #tpu.dot_dimension_numbers<[1], [0], [0], [1], [0, 0, 1, 1], [], []>} : vector<2x128xbf16>, vector<128x512xbf16>, vector<2x512xf32> -> vector<2x512xf32>
    %48 = arith.addf %45, %47 : vector<2x512xf32>
    %49 = vector.extract_strided_slice %48 {offsets = [0, 0], sizes = [2, 128], strides = [1, 1]} : vector<2x512xf32> to vector<2x128xf32>
    %50 = arith.negf %49 : vector<2x128xf32>
    %51 = math.exp %50 : vector<2x128xf32>
    %cst_18 = arith.constant 1.000000e+00 : f32
    %52 = vector.broadcast %cst_18 : f32 to vector<2x128xf32>
    %53 = arith.addf %52, %51 : vector<2x128xf32>
    %54 = arith.divf %52, %53 : vector<2x128xf32>
    %55 = vector.extract_strided_slice %48 {offsets = [0, 128], sizes = [2, 128], strides = [1, 1]} : vector<2x512xf32> to vector<2x128xf32>
    %56 = arith.negf %55 : vector<2x128xf32>
    %57 = math.exp %56 : vector<2x128xf32>
    %cst_19 = arith.constant 1.000000e+00 : f32
    %58 = vector.broadcast %cst_19 : f32 to vector<2x128xf32>
    %59 = arith.addf %58, %57 : vector<2x128xf32>
    %60 = arith.divf %58, %59 : vector<2x128xf32>
    %61 = vector.extract_strided_slice %48 {offsets = [0, 256], sizes = [2, 128], strides = [1, 1]} : vector<2x512xf32> to vector<2x128xf32>
    %62 = math.tanh %61 : vector<2x128xf32>
    %63 = vector.extract_strided_slice %48 {offsets = [0, 384], sizes = [2, 128], strides = [1, 1]} : vector<2x512xf32> to vector<2x128xf32>
    %64 = arith.negf %63 : vector<2x128xf32>
    %65 = math.exp %64 : vector<2x128xf32>
    %cst_20 = arith.constant 1.000000e+00 : f32
    %66 = vector.broadcast %cst_20 : f32 to vector<2x128xf32>
    %67 = arith.addf %66, %65 : vector<2x128xf32>
    %68 = arith.divf %66, %67 : vector<2x128xf32>
    %69 = arith.mulf %60, %38 : vector<2x128xf32>
    %70 = arith.mulf %54, %62 : vector<2x128xf32>
    %71 = arith.addf %69, %70 : vector<2x128xf32>
    %72 = math.tanh %71 : vector<2x128xf32>
    %73 = arith.mulf %68, %72 : vector<2x128xf32>
    %74 = vector.extract_strided_slice %73 {offsets = [0, 0], sizes = [2, 64], strides = [1, 1]} : vector<2x128xf32> to vector<2x64xf32>
    %75 = vector.extract_strided_slice %73 {offsets = [0, 64], sizes = [2, 64], strides = [1, 1]} : vector<2x128xf32> to vector<2x64xf32>
    %76 = vector.extract_strided_slice %36 {offsets = [1, 0, 0], sizes = [1, 2, 512], strides = [1, 1, 1]} : vector<8x2x512xf32> to vector<1x2x512xf32>
    %77 = vector.shape_cast %76 : vector<1x2x512xf32> to vector<2x512xf32>
    %78 = vector.extract_strided_slice %36 {offsets = [6, 0, 0], sizes = [1, 2, 512], strides = [1, 1, 1]} : vector<8x2x512xf32> to vector<1x2x512xf32>
    %79 = vector.shape_cast %78 : vector<1x2x512xf32> to vector<2x512xf32>
    %80 = vector.shape_cast %28 : vector<1x512xi1> to vector<1x512xi1>
    %81 = vector.broadcast %80 : vector<1x512xi1> to vector<2x512xi1>
    %82 = arith.select %81, %77, %79 : vector<2x512xi1>, vector<2x512xf32>
    %83 = arith.truncf %73 : vector<2x128xf32> to vector<2x128xbf16>
    %cst_21 = arith.constant dense<0.000000e+00> : vector<2x512xf32>
    %84 = tpu.matmul %83, %30, %cst_21 {dimension_numbers = #tpu.dot_dimension_numbers<[1], [0], [0], [1], [0, 0, 1, 1], [], []>} : vector<2x128xbf16>, vector<128x512xbf16>, vector<2x512xf32> -> vector<2x512xf32>
    %85 = arith.addf %82, %84 : vector<2x512xf32>
    %86 = vector.extract_strided_slice %85 {offsets = [0, 0], sizes = [2, 128], strides = [1, 1]} : vector<2x512xf32> to vector<2x128xf32>
    %87 = arith.negf %86 : vector<2x128xf32>
    %88 = math.exp %87 : vector<2x128xf32>
    %cst_22 = arith.constant 1.000000e+00 : f32
    %89 = vector.broadcast %cst_22 : f32 to vector<2x128xf32>
    %90 = arith.addf %89, %88 : vector<2x128xf32>
    %91 = arith.divf %89, %90 : vector<2x128xf32>
    %92 = vector.extract_strided_slice %85 {offsets = [0, 128], sizes = [2, 128], strides = [1, 1]} : vector<2x512xf32> to vector<2x128xf32>
    %93 = arith.negf %92 : vector<2x128xf32>
    %94 = math.exp %93 : vector<2x128xf32>
    %cst_23 = arith.constant 1.000000e+00 : f32
    %95 = vector.broadcast %cst_23 : f32 to vector<2x128xf32>
    %96 = arith.addf %95, %94 : vector<2x128xf32>
    %97 = arith.divf %95, %96 : vector<2x128xf32>
    %98 = vector.extract_strided_slice %85 {offsets = [0, 256], sizes = [2, 128], strides = [1, 1]} : vector<2x512xf32> to vector<2x128xf32>
    %99 = math.tanh %98 : vector<2x128xf32>
    %100 = vector.extract_strided_slice %85 {offsets = [0, 384], sizes = [2, 128], strides = [1, 1]} : vector<2x512xf32> to vector<2x128xf32>
    %101 = arith.negf %100 : vector<2x128xf32>
    %102 = math.exp %101 : vector<2x128xf32>
    %cst_24 = arith.constant 1.000000e+00 : f32
    %103 = vector.broadcast %cst_24 : f32 to vector<2x128xf32>
    %104 = arith.addf %103, %102 : vector<2x128xf32>
    %105 = arith.divf %103, %104 : vector<2x128xf32>
    %106 = arith.mulf %97, %71 : vector<2x128xf32>
    %107 = arith.mulf %91, %99 : vector<2x128xf32>
    %108 = arith.addf %106, %107 : vector<2x128xf32>
    %109 = math.tanh %108 : vector<2x128xf32>
    %110 = arith.mulf %105, %109 : vector<2x128xf32>
    %111 = vector.extract_strided_slice %110 {offsets = [0, 0], sizes = [2, 64], strides = [1, 1]} : vector<2x128xf32> to vector<2x64xf32>
    %112 = vector.extract_strided_slice %110 {offsets = [0, 64], sizes = [2, 64], strides = [1, 1]} : vector<2x128xf32> to vector<2x64xf32>
    %113 = vector.extract_strided_slice %36 {offsets = [2, 0, 0], sizes = [1, 2, 512], strides = [1, 1, 1]} : vector<8x2x512xf32> to vector<1x2x512xf32>
    %114 = vector.shape_cast %113 : vector<1x2x512xf32> to vector<2x512xf32>
    %115 = vector.extract_strided_slice %36 {offsets = [5, 0, 0], sizes = [1, 2, 512], strides = [1, 1, 1]} : vector<8x2x512xf32> to vector<1x2x512xf32>
    %116 = vector.shape_cast %115 : vector<1x2x512xf32> to vector<2x512xf32>
    %117 = vector.shape_cast %28 : vector<1x512xi1> to vector<1x512xi1>
    %118 = vector.broadcast %117 : vector<1x512xi1> to vector<2x512xi1>
    %119 = arith.select %118, %114, %116 : vector<2x512xi1>, vector<2x512xf32>
    %120 = arith.truncf %110 : vector<2x128xf32> to vector<2x128xbf16>
    %cst_25 = arith.constant dense<0.000000e+00> : vector<2x512xf32>
    %121 = tpu.matmul %120, %30, %cst_25 {dimension_numbers = #tpu.dot_dimension_numbers<[1], [0], [0], [1], [0, 0, 1, 1], [], []>} : vector<2x128xbf16>, vector<128x512xbf16>, vector<2x512xf32> -> vector<2x512xf32>
    %122 = arith.addf %119, %121 : vector<2x512xf32>
    %123 = vector.extract_strided_slice %122 {offsets = [0, 0], sizes = [2, 128], strides = [1, 1]} : vector<2x512xf32> to vector<2x128xf32>
    %124 = arith.negf %123 : vector<2x128xf32>
    %125 = math.exp %124 : vector<2x128xf32>
    %cst_26 = arith.constant 1.000000e+00 : f32
    %126 = vector.broadcast %cst_26 : f32 to vector<2x128xf32>
    %127 = arith.addf %126, %125 : vector<2x128xf32>
    %128 = arith.divf %126, %127 : vector<2x128xf32>
    %129 = vector.extract_strided_slice %122 {offsets = [0, 128], sizes = [2, 128], strides = [1, 1]} : vector<2x512xf32> to vector<2x128xf32>
    %130 = arith.negf %129 : vector<2x128xf32>
    %131 = math.exp %130 : vector<2x128xf32>
    %cst_27 = arith.constant 1.000000e+00 : f32
    %132 = vector.broadcast %cst_27 : f32 to vector<2x128xf32>
    %133 = arith.addf %132, %131 : vector<2x128xf32>
    %134 = arith.divf %132, %133 : vector<2x128xf32>
    %135 = vector.extract_strided_slice %122 {offsets = [0, 256], sizes = [2, 128], strides = [1, 1]} : vector<2x512xf32> to vector<2x128xf32>
    %136 = math.tanh %135 : vector<2x128xf32>
    %137 = vector.extract_strided_slice %122 {offsets = [0, 384], sizes = [2, 128], strides = [1, 1]} : vector<2x512xf32> to vector<2x128xf32>
    %138 = arith.negf %137 : vector<2x128xf32>
    %139 = math.exp %138 : vector<2x128xf32>
    %cst_28 = arith.constant 1.000000e+00 : f32
    %140 = vector.broadcast %cst_28 : f32 to vector<2x128xf32>
    %141 = arith.addf %140, %139 : vector<2x128xf32>
    %142 = arith.divf %140, %141 : vector<2x128xf32>
    %143 = arith.mulf %134, %108 : vector<2x128xf32>
    %144 = arith.mulf %128, %136 : vector<2x128xf32>
    %145 = arith.addf %143, %144 : vector<2x128xf32>
    %146 = math.tanh %145 : vector<2x128xf32>
    %147 = arith.mulf %142, %146 : vector<2x128xf32>
    %148 = vector.extract_strided_slice %147 {offsets = [0, 0], sizes = [2, 64], strides = [1, 1]} : vector<2x128xf32> to vector<2x64xf32>
    %149 = vector.extract_strided_slice %147 {offsets = [0, 64], sizes = [2, 64], strides = [1, 1]} : vector<2x128xf32> to vector<2x64xf32>
    %150 = vector.extract_strided_slice %36 {offsets = [3, 0, 0], sizes = [1, 2, 512], strides = [1, 1, 1]} : vector<8x2x512xf32> to vector<1x2x512xf32>
    %151 = vector.shape_cast %150 : vector<1x2x512xf32> to vector<2x512xf32>
    %152 = vector.extract_strided_slice %36 {offsets = [4, 0, 0], sizes = [1, 2, 512], strides = [1, 1, 1]} : vector<8x2x512xf32> to vector<1x2x512xf32>
    %153 = vector.shape_cast %152 : vector<1x2x512xf32> to vector<2x512xf32>
    %154 = vector.shape_cast %28 : vector<1x512xi1> to vector<1x512xi1>
    %155 = vector.broadcast %154 : vector<1x512xi1> to vector<2x512xi1>
    %156 = arith.select %155, %151, %153 : vector<2x512xi1>, vector<2x512xf32>
    %157 = arith.truncf %147 : vector<2x128xf32> to vector<2x128xbf16>
    %cst_29 = arith.constant dense<0.000000e+00> : vector<2x512xf32>
    %158 = tpu.matmul %157, %30, %cst_29 {dimension_numbers = #tpu.dot_dimension_numbers<[1], [0], [0], [1], [0, 0, 1, 1], [], []>} : vector<2x128xbf16>, vector<128x512xbf16>, vector<2x512xf32> -> vector<2x512xf32>
    %159 = arith.addf %156, %158 : vector<2x512xf32>
    %160 = vector.extract_strided_slice %159 {offsets = [0, 0], sizes = [2, 128], strides = [1, 1]} : vector<2x512xf32> to vector<2x128xf32>
    %161 = arith.negf %160 : vector<2x128xf32>
    %162 = math.exp %161 : vector<2x128xf32>
    %cst_30 = arith.constant 1.000000e+00 : f32
    %163 = vector.broadcast %cst_30 : f32 to vector<2x128xf32>
    %164 = arith.addf %163, %162 : vector<2x128xf32>
    %165 = arith.divf %163, %164 : vector<2x128xf32>
    %166 = vector.extract_strided_slice %159 {offsets = [0, 128], sizes = [2, 128], strides = [1, 1]} : vector<2x512xf32> to vector<2x128xf32>
    %167 = arith.negf %166 : vector<2x128xf32>
    %168 = math.exp %167 : vector<2x128xf32>
    %cst_31 = arith.constant 1.000000e+00 : f32
    %169 = vector.broadcast %cst_31 : f32 to vector<2x128xf32>
    %170 = arith.addf %169, %168 : vector<2x128xf32>
    %171 = arith.divf %169, %170 : vector<2x128xf32>
    %172 = vector.extract_strided_slice %159 {offsets = [0, 256], sizes = [2, 128], strides = [1, 1]} : vector<2x512xf32> to vector<2x128xf32>
    %173 = math.tanh %172 : vector<2x128xf32>
    %174 = vector.extract_strided_slice %159 {offsets = [0, 384], sizes = [2, 128], strides = [1, 1]} : vector<2x512xf32> to vector<2x128xf32>
    %175 = arith.negf %174 : vector<2x128xf32>
    %176 = math.exp %175 : vector<2x128xf32>
    %cst_32 = arith.constant 1.000000e+00 : f32
    %177 = vector.broadcast %cst_32 : f32 to vector<2x128xf32>
    %178 = arith.addf %177, %176 : vector<2x128xf32>
    %179 = arith.divf %177, %178 : vector<2x128xf32>
    %180 = arith.mulf %171, %145 : vector<2x128xf32>
    %181 = arith.mulf %165, %173 : vector<2x128xf32>
    %182 = arith.addf %180, %181 : vector<2x128xf32>
    %183 = math.tanh %182 : vector<2x128xf32>
    %184 = arith.mulf %179, %183 : vector<2x128xf32>
    %185 = vector.extract_strided_slice %184 {offsets = [0, 0], sizes = [2, 64], strides = [1, 1]} : vector<2x128xf32> to vector<2x64xf32>
    %186 = vector.extract_strided_slice %184 {offsets = [0, 64], sizes = [2, 64], strides = [1, 1]} : vector<2x128xf32> to vector<2x64xf32>
    %187 = vector.extract_strided_slice %36 {offsets = [4, 0, 0], sizes = [1, 2, 512], strides = [1, 1, 1]} : vector<8x2x512xf32> to vector<1x2x512xf32>
    %188 = vector.shape_cast %187 : vector<1x2x512xf32> to vector<2x512xf32>
    %189 = vector.extract_strided_slice %36 {offsets = [3, 0, 0], sizes = [1, 2, 512], strides = [1, 1, 1]} : vector<8x2x512xf32> to vector<1x2x512xf32>
    %190 = vector.shape_cast %189 : vector<1x2x512xf32> to vector<2x512xf32>
    %191 = vector.shape_cast %28 : vector<1x512xi1> to vector<1x512xi1>
    %192 = vector.broadcast %191 : vector<1x512xi1> to vector<2x512xi1>
    %193 = arith.select %192, %188, %190 : vector<2x512xi1>, vector<2x512xf32>
    %194 = arith.truncf %184 : vector<2x128xf32> to vector<2x128xbf16>
    %cst_33 = arith.constant dense<0.000000e+00> : vector<2x512xf32>
    %195 = tpu.matmul %194, %30, %cst_33 {dimension_numbers = #tpu.dot_dimension_numbers<[1], [0], [0], [1], [0, 0, 1, 1], [], []>} : vector<2x128xbf16>, vector<128x512xbf16>, vector<2x512xf32> -> vector<2x512xf32>
    %196 = arith.addf %193, %195 : vector<2x512xf32>
    %197 = vector.extract_strided_slice %196 {offsets = [0, 0], sizes = [2, 128], strides = [1, 1]} : vector<2x512xf32> to vector<2x128xf32>
    %198 = arith.negf %197 : vector<2x128xf32>
    %199 = math.exp %198 : vector<2x128xf32>
    %cst_34 = arith.constant 1.000000e+00 : f32
    %200 = vector.broadcast %cst_34 : f32 to vector<2x128xf32>
    %201 = arith.addf %200, %199 : vector<2x128xf32>
    %202 = arith.divf %200, %201 : vector<2x128xf32>
    %203 = vector.extract_strided_slice %196 {offsets = [0, 128], sizes = [2, 128], strides = [1, 1]} : vector<2x512xf32> to vector<2x128xf32>
    %204 = arith.negf %203 : vector<2x128xf32>
    %205 = math.exp %204 : vector<2x128xf32>
    %cst_35 = arith.constant 1.000000e+00 : f32
    %206 = vector.broadcast %cst_35 : f32 to vector<2x128xf32>
    %207 = arith.addf %206, %205 : vector<2x128xf32>
    %208 = arith.divf %206, %207 : vector<2x128xf32>
    %209 = vector.extract_strided_slice %196 {offsets = [0, 256], sizes = [2, 128], strides = [1, 1]} : vector<2x512xf32> to vector<2x128xf32>
    %210 = math.tanh %209 : vector<2x128xf32>
    %211 = vector.extract_strided_slice %196 {offsets = [0, 384], sizes = [2, 128], strides = [1, 1]} : vector<2x512xf32> to vector<2x128xf32>
    %212 = arith.negf %211 : vector<2x128xf32>
    %213 = math.exp %212 : vector<2x128xf32>
    %cst_36 = arith.constant 1.000000e+00 : f32
    %214 = vector.broadcast %cst_36 : f32 to vector<2x128xf32>
    %215 = arith.addf %214, %213 : vector<2x128xf32>
    %216 = arith.divf %214, %215 : vector<2x128xf32>
    %217 = arith.mulf %208, %182 : vector<2x128xf32>
    %218 = arith.mulf %202, %210 : vector<2x128xf32>
    %219 = arith.addf %217, %218 : vector<2x128xf32>
    %220 = math.tanh %219 : vector<2x128xf32>
    %221 = arith.mulf %216, %220 : vector<2x128xf32>
    %222 = vector.extract_strided_slice %221 {offsets = [0, 0], sizes = [2, 64], strides = [1, 1]} : vector<2x128xf32> to vector<2x64xf32>
    %223 = vector.extract_strided_slice %221 {offsets = [0, 64], sizes = [2, 64], strides = [1, 1]} : vector<2x128xf32> to vector<2x64xf32>
    %224 = vector.extract_strided_slice %36 {offsets = [5, 0, 0], sizes = [1, 2, 512], strides = [1, 1, 1]} : vector<8x2x512xf32> to vector<1x2x512xf32>
    %225 = vector.shape_cast %224 : vector<1x2x512xf32> to vector<2x512xf32>
    %226 = vector.extract_strided_slice %36 {offsets = [2, 0, 0], sizes = [1, 2, 512], strides = [1, 1, 1]} : vector<8x2x512xf32> to vector<1x2x512xf32>
    %227 = vector.shape_cast %226 : vector<1x2x512xf32> to vector<2x512xf32>
    %228 = vector.shape_cast %28 : vector<1x512xi1> to vector<1x512xi1>
    %229 = vector.broadcast %228 : vector<1x512xi1> to vector<2x512xi1>
    %230 = arith.select %229, %225, %227 : vector<2x512xi1>, vector<2x512xf32>
    %231 = arith.truncf %221 : vector<2x128xf32> to vector<2x128xbf16>
    %cst_37 = arith.constant dense<0.000000e+00> : vector<2x512xf32>
    %232 = tpu.matmul %231, %30, %cst_37 {dimension_numbers = #tpu.dot_dimension_numbers<[1], [0], [0], [1], [0, 0, 1, 1], [], []>} : vector<2x128xbf16>, vector<128x512xbf16>, vector<2x512xf32> -> vector<2x512xf32>
    %233 = arith.addf %230, %232 : vector<2x512xf32>
    %234 = vector.extract_strided_slice %233 {offsets = [0, 0], sizes = [2, 128], strides = [1, 1]} : vector<2x512xf32> to vector<2x128xf32>
    %235 = arith.negf %234 : vector<2x128xf32>
    %236 = math.exp %235 : vector<2x128xf32>
    %cst_38 = arith.constant 1.000000e+00 : f32
    %237 = vector.broadcast %cst_38 : f32 to vector<2x128xf32>
    %238 = arith.addf %237, %236 : vector<2x128xf32>
    %239 = arith.divf %237, %238 : vector<2x128xf32>
    %240 = vector.extract_strided_slice %233 {offsets = [0, 128], sizes = [2, 128], strides = [1, 1]} : vector<2x512xf32> to vector<2x128xf32>
    %241 = arith.negf %240 : vector<2x128xf32>
    %242 = math.exp %241 : vector<2x128xf32>
    %cst_39 = arith.constant 1.000000e+00 : f32
    %243 = vector.broadcast %cst_39 : f32 to vector<2x128xf32>
    %244 = arith.addf %243, %242 : vector<2x128xf32>
    %245 = arith.divf %243, %244 : vector<2x128xf32>
    %246 = vector.extract_strided_slice %233 {offsets = [0, 256], sizes = [2, 128], strides = [1, 1]} : vector<2x512xf32> to vector<2x128xf32>
    %247 = math.tanh %246 : vector<2x128xf32>
    %248 = vector.extract_strided_slice %233 {offsets = [0, 384], sizes = [2, 128], strides = [1, 1]} : vector<2x512xf32> to vector<2x128xf32>
    %249 = arith.negf %248 : vector<2x128xf32>
    %250 = math.exp %249 : vector<2x128xf32>
    %cst_40 = arith.constant 1.000000e+00 : f32
    %251 = vector.broadcast %cst_40 : f32 to vector<2x128xf32>
    %252 = arith.addf %251, %250 : vector<2x128xf32>
    %253 = arith.divf %251, %252 : vector<2x128xf32>
    %254 = arith.mulf %245, %219 : vector<2x128xf32>
    %255 = arith.mulf %239, %247 : vector<2x128xf32>
    %256 = arith.addf %254, %255 : vector<2x128xf32>
    %257 = math.tanh %256 : vector<2x128xf32>
    %258 = arith.mulf %253, %257 : vector<2x128xf32>
    %259 = vector.extract_strided_slice %258 {offsets = [0, 0], sizes = [2, 64], strides = [1, 1]} : vector<2x128xf32> to vector<2x64xf32>
    %260 = vector.extract_strided_slice %258 {offsets = [0, 64], sizes = [2, 64], strides = [1, 1]} : vector<2x128xf32> to vector<2x64xf32>
    %261 = vector.extract_strided_slice %36 {offsets = [6, 0, 0], sizes = [1, 2, 512], strides = [1, 1, 1]} : vector<8x2x512xf32> to vector<1x2x512xf32>
    %262 = vector.shape_cast %261 : vector<1x2x512xf32> to vector<2x512xf32>
    %263 = vector.extract_strided_slice %36 {offsets = [1, 0, 0], sizes = [1, 2, 512], strides = [1, 1, 1]} : vector<8x2x512xf32> to vector<1x2x512xf32>
    %264 = vector.shape_cast %263 : vector<1x2x512xf32> to vector<2x512xf32>
    %265 = vector.shape_cast %28 : vector<1x512xi1> to vector<1x512xi1>
    %266 = vector.broadcast %265 : vector<1x512xi1> to vector<2x512xi1>
    %267 = arith.select %266, %262, %264 : vector<2x512xi1>, vector<2x512xf32>
    %268 = arith.truncf %258 : vector<2x128xf32> to vector<2x128xbf16>
    %cst_41 = arith.constant dense<0.000000e+00> : vector<2x512xf32>
    %269 = tpu.matmul %268, %30, %cst_41 {dimension_numbers = #tpu.dot_dimension_numbers<[1], [0], [0], [1], [0, 0, 1, 1], [], []>} : vector<2x128xbf16>, vector<128x512xbf16>, vector<2x512xf32> -> vector<2x512xf32>
    %270 = arith.addf %267, %269 : vector<2x512xf32>
    %271 = vector.extract_strided_slice %270 {offsets = [0, 0], sizes = [2, 128], strides = [1, 1]} : vector<2x512xf32> to vector<2x128xf32>
    %272 = arith.negf %271 : vector<2x128xf32>
    %273 = math.exp %272 : vector<2x128xf32>
    %cst_42 = arith.constant 1.000000e+00 : f32
    %274 = vector.broadcast %cst_42 : f32 to vector<2x128xf32>
    %275 = arith.addf %274, %273 : vector<2x128xf32>
    %276 = arith.divf %274, %275 : vector<2x128xf32>
    %277 = vector.extract_strided_slice %270 {offsets = [0, 128], sizes = [2, 128], strides = [1, 1]} : vector<2x512xf32> to vector<2x128xf32>
    %278 = arith.negf %277 : vector<2x128xf32>
    %279 = math.exp %278 : vector<2x128xf32>
    %cst_43 = arith.constant 1.000000e+00 : f32
    %280 = vector.broadcast %cst_43 : f32 to vector<2x128xf32>
    %281 = arith.addf %280, %279 : vector<2x128xf32>
    %282 = arith.divf %280, %281 : vector<2x128xf32>
    %283 = vector.extract_strided_slice %270 {offsets = [0, 256], sizes = [2, 128], strides = [1, 1]} : vector<2x512xf32> to vector<2x128xf32>
    %284 = math.tanh %283 : vector<2x128xf32>
    %285 = vector.extract_strided_slice %270 {offsets = [0, 384], sizes = [2, 128], strides = [1, 1]} : vector<2x512xf32> to vector<2x128xf32>
    %286 = arith.negf %285 : vector<2x128xf32>
    %287 = math.exp %286 : vector<2x128xf32>
    %cst_44 = arith.constant 1.000000e+00 : f32
    %288 = vector.broadcast %cst_44 : f32 to vector<2x128xf32>
    %289 = arith.addf %288, %287 : vector<2x128xf32>
    %290 = arith.divf %288, %289 : vector<2x128xf32>
    %291 = arith.mulf %282, %256 : vector<2x128xf32>
    %292 = arith.mulf %276, %284 : vector<2x128xf32>
    %293 = arith.addf %291, %292 : vector<2x128xf32>
    %294 = math.tanh %293 : vector<2x128xf32>
    %295 = arith.mulf %290, %294 : vector<2x128xf32>
    %296 = vector.extract_strided_slice %295 {offsets = [0, 0], sizes = [2, 64], strides = [1, 1]} : vector<2x128xf32> to vector<2x64xf32>
    %297 = vector.extract_strided_slice %295 {offsets = [0, 64], sizes = [2, 64], strides = [1, 1]} : vector<2x128xf32> to vector<2x64xf32>
    %298 = vector.extract_strided_slice %36 {offsets = [7, 0, 0], sizes = [1, 2, 512], strides = [1, 1, 1]} : vector<8x2x512xf32> to vector<1x2x512xf32>
    %299 = vector.shape_cast %298 : vector<1x2x512xf32> to vector<2x512xf32>
    %300 = vector.extract_strided_slice %36 {offsets = [0, 0, 0], sizes = [1, 2, 512], strides = [1, 1, 1]} : vector<8x2x512xf32> to vector<1x2x512xf32>
    %301 = vector.shape_cast %300 : vector<1x2x512xf32> to vector<2x512xf32>
    %302 = vector.shape_cast %28 : vector<1x512xi1> to vector<1x512xi1>
    %303 = vector.broadcast %302 : vector<1x512xi1> to vector<2x512xi1>
    %304 = arith.select %303, %299, %301 : vector<2x512xi1>, vector<2x512xf32>
    %305 = arith.truncf %295 : vector<2x128xf32> to vector<2x128xbf16>
    %cst_45 = arith.constant dense<0.000000e+00> : vector<2x512xf32>
    %306 = tpu.matmul %305, %30, %cst_45 {dimension_numbers = #tpu.dot_dimension_numbers<[1], [0], [0], [1], [0, 0, 1, 1], [], []>} : vector<2x128xbf16>, vector<128x512xbf16>, vector<2x512xf32> -> vector<2x512xf32>
    %307 = arith.addf %304, %306 : vector<2x512xf32>
    %308 = vector.extract_strided_slice %307 {offsets = [0, 0], sizes = [2, 128], strides = [1, 1]} : vector<2x512xf32> to vector<2x128xf32>
    %309 = arith.negf %308 : vector<2x128xf32>
    %310 = math.exp %309 : vector<2x128xf32>
    %cst_46 = arith.constant 1.000000e+00 : f32
    %311 = vector.broadcast %cst_46 : f32 to vector<2x128xf32>
    %312 = arith.addf %311, %310 : vector<2x128xf32>
    %313 = arith.divf %311, %312 : vector<2x128xf32>
    %314 = vector.extract_strided_slice %307 {offsets = [0, 128], sizes = [2, 128], strides = [1, 1]} : vector<2x512xf32> to vector<2x128xf32>
    %315 = arith.negf %314 : vector<2x128xf32>
    %316 = math.exp %315 : vector<2x128xf32>
    %cst_47 = arith.constant 1.000000e+00 : f32
    %317 = vector.broadcast %cst_47 : f32 to vector<2x128xf32>
    %318 = arith.addf %317, %316 : vector<2x128xf32>
    %319 = arith.divf %317, %318 : vector<2x128xf32>
    %320 = vector.extract_strided_slice %307 {offsets = [0, 256], sizes = [2, 128], strides = [1, 1]} : vector<2x512xf32> to vector<2x128xf32>
    %321 = math.tanh %320 : vector<2x128xf32>
    %322 = vector.extract_strided_slice %307 {offsets = [0, 384], sizes = [2, 128], strides = [1, 1]} : vector<2x512xf32> to vector<2x128xf32>
    %323 = arith.negf %322 : vector<2x128xf32>
    %324 = math.exp %323 : vector<2x128xf32>
    %cst_48 = arith.constant 1.000000e+00 : f32
    %325 = vector.broadcast %cst_48 : f32 to vector<2x128xf32>
    %326 = arith.addf %325, %324 : vector<2x128xf32>
    %327 = arith.divf %325, %326 : vector<2x128xf32>
    %328 = arith.mulf %319, %293 : vector<2x128xf32>
    %329 = arith.mulf %313, %321 : vector<2x128xf32>
    %330 = arith.addf %328, %329 : vector<2x128xf32>
    %331 = math.tanh %330 : vector<2x128xf32>
    %332 = arith.mulf %327, %331 : vector<2x128xf32>
    %333 = vector.extract_strided_slice %332 {offsets = [0, 0], sizes = [2, 64], strides = [1, 1]} : vector<2x128xf32> to vector<2x64xf32>
    %334 = vector.extract_strided_slice %332 {offsets = [0, 64], sizes = [2, 64], strides = [1, 1]} : vector<2x128xf32> to vector<2x64xf32>
    %335 = vector.shape_cast %74 : vector<2x64xf32> to vector<1x2x64xf32>
    %336 = vector.shape_cast %111 : vector<2x64xf32> to vector<1x2x64xf32>
    %337 = vector.shape_cast %148 : vector<2x64xf32> to vector<1x2x64xf32>
    %338 = vector.shape_cast %185 : vector<2x64xf32> to vector<1x2x64xf32>
    %339 = vector.shape_cast %222 : vector<2x64xf32> to vector<1x2x64xf32>
    %340 = vector.shape_cast %259 : vector<2x64xf32> to vector<1x2x64xf32>
    %341 = vector.shape_cast %296 : vector<2x64xf32> to vector<1x2x64xf32>
    %342 = vector.shape_cast %333 : vector<2x64xf32> to vector<1x2x64xf32>
    %343 = tpu.concatenate %335, %336, %337, %338, %339, %340, %341, %342 in 0 : vector<1x2x64xf32>, vector<1x2x64xf32>, vector<1x2x64xf32>, vector<1x2x64xf32>, vector<1x2x64xf32>, vector<1x2x64xf32>, vector<1x2x64xf32>, vector<1x2x64xf32> -> vector<8x2x64xf32>
    %344 = vector.shape_cast %334 : vector<2x64xf32> to vector<1x2x64xf32>
    %345 = vector.shape_cast %297 : vector<2x64xf32> to vector<1x2x64xf32>
    %346 = vector.shape_cast %260 : vector<2x64xf32> to vector<1x2x64xf32>
    %347 = vector.shape_cast %223 : vector<2x64xf32> to vector<1x2x64xf32>
    %348 = vector.shape_cast %186 : vector<2x64xf32> to vector<1x2x64xf32>
    %349 = vector.shape_cast %149 : vector<2x64xf32> to vector<1x2x64xf32>
    %350 = vector.shape_cast %112 : vector<2x64xf32> to vector<1x2x64xf32>
    %351 = vector.shape_cast %75 : vector<2x64xf32> to vector<1x2x64xf32>
    %352 = tpu.concatenate %344, %345, %346, %347, %348, %349, %350, %351 in 0 : vector<1x2x64xf32>, vector<1x2x64xf32>, vector<1x2x64xf32>, vector<1x2x64xf32>, vector<1x2x64xf32>, vector<1x2x64xf32>, vector<1x2x64xf32>, vector<1x2x64xf32> -> vector<8x2x64xf32>
    %353 = tpu.concatenate %343, %352 in 2 : vector<8x2x64xf32>, vector<8x2x64xf32> -> vector<8x2x128xf32>
    %354 = vector.shape_cast %353 : vector<8x2x128xf32> to vector<16x128xf32>
    %c0_49 = arith.constant 0 : index
    %c0_50 = arith.constant 0 : index
    %355 = vector.load %arg6[%c0_49, %c0_50] : memref<128x512xbf16, #tpu.memory_space<vmem>>, vector<128x512xbf16>
    %c0_51 = arith.constant 0 : index
    %c0_52 = arith.constant 0 : index
    %356 = vector.load %arg7[%c0_51, %c0_52] : memref<128x512xbf16, #tpu.memory_space<vmem>>, vector<128x512xbf16>
    %c0_53 = arith.constant 0 : index
    %c0_54 = arith.constant 0 : index
    %357 = vector.load %arg8[%c0_53, %c0_54] : memref<1x512xf32, #tpu.memory_space<vmem>>, vector<1x512xf32>
    %358 = arith.truncf %354 : vector<16x128xf32> to vector<16x128xbf16>
    %cst_55 = arith.constant dense<0.000000e+00> : vector<16x512xf32>
    %359 = tpu.matmul %358, %355, %cst_55 {dimension_numbers = #tpu.dot_dimension_numbers<[1], [0], [0], [1], [0, 0, 1, 1], [], []>} : vector<16x128xbf16>, vector<128x512xbf16>, vector<16x512xf32> -> vector<16x512xf32>
    %360 = vector.broadcast %357 : vector<1x512xf32> to vector<16x512xf32>
    %361 = arith.addf %359, %360 : vector<16x512xf32>
    %362 = vector.shape_cast %361 : vector<16x512xf32> to vector<8x2x512xf32>
    %cst_56 = arith.constant 0.000000e+00 : f32
    %363 = vector.broadcast %cst_56 : f32 to vector<2x128xf32>
    %cst_57 = arith.constant 0.000000e+00 : f32
    %364 = vector.broadcast %cst_57 : f32 to vector<2x128xf32>
    %365 = vector.extract_strided_slice %362 {offsets = [0, 0, 0], sizes = [1, 2, 512], strides = [1, 1, 1]} : vector<8x2x512xf32> to vector<1x2x512xf32>
    %366 = vector.shape_cast %365 : vector<1x2x512xf32> to vector<2x512xf32>
    %367 = vector.extract_strided_slice %362 {offsets = [7, 0, 0], sizes = [1, 2, 512], strides = [1, 1, 1]} : vector<8x2x512xf32> to vector<1x2x512xf32>
    %368 = vector.shape_cast %367 : vector<1x2x512xf32> to vector<2x512xf32>
    %369 = vector.shape_cast %28 : vector<1x512xi1> to vector<1x512xi1>
    %370 = vector.broadcast %369 : vector<1x512xi1> to vector<2x512xi1>
    %371 = arith.select %370, %366, %368 : vector<2x512xi1>, vector<2x512xf32>
    %372 = arith.truncf %363 : vector<2x128xf32> to vector<2x128xbf16>
    %cst_58 = arith.constant dense<0.000000e+00> : vector<2x512xf32>
    %373 = tpu.matmul %372, %356, %cst_58 {dimension_numbers = #tpu.dot_dimension_numbers<[1], [0], [0], [1], [0, 0, 1, 1], [], []>} : vector<2x128xbf16>, vector<128x512xbf16>, vector<2x512xf32> -> vector<2x512xf32>
    %374 = arith.addf %371, %373 : vector<2x512xf32>
    %375 = vector.extract_strided_slice %374 {offsets = [0, 0], sizes = [2, 128], strides = [1, 1]} : vector<2x512xf32> to vector<2x128xf32>
    %376 = arith.negf %375 : vector<2x128xf32>
    %377 = math.exp %376 : vector<2x128xf32>
    %cst_59 = arith.constant 1.000000e+00 : f32
    %378 = vector.broadcast %cst_59 : f32 to vector<2x128xf32>
    %379 = arith.addf %378, %377 : vector<2x128xf32>
    %380 = arith.divf %378, %379 : vector<2x128xf32>
    %381 = vector.extract_strided_slice %374 {offsets = [0, 128], sizes = [2, 128], strides = [1, 1]} : vector<2x512xf32> to vector<2x128xf32>
    %382 = arith.negf %381 : vector<2x128xf32>
    %383 = math.exp %382 : vector<2x128xf32>
    %cst_60 = arith.constant 1.000000e+00 : f32
    %384 = vector.broadcast %cst_60 : f32 to vector<2x128xf32>
    %385 = arith.addf %384, %383 : vector<2x128xf32>
    %386 = arith.divf %384, %385 : vector<2x128xf32>
    %387 = vector.extract_strided_slice %374 {offsets = [0, 256], sizes = [2, 128], strides = [1, 1]} : vector<2x512xf32> to vector<2x128xf32>
    %388 = math.tanh %387 : vector<2x128xf32>
    %389 = vector.extract_strided_slice %374 {offsets = [0, 384], sizes = [2, 128], strides = [1, 1]} : vector<2x512xf32> to vector<2x128xf32>
    %390 = arith.negf %389 : vector<2x128xf32>
    %391 = math.exp %390 : vector<2x128xf32>
    %cst_61 = arith.constant 1.000000e+00 : f32
    %392 = vector.broadcast %cst_61 : f32 to vector<2x128xf32>
    %393 = arith.addf %392, %391 : vector<2x128xf32>
    %394 = arith.divf %392, %393 : vector<2x128xf32>
    %395 = arith.mulf %386, %364 : vector<2x128xf32>
    %396 = arith.mulf %380, %388 : vector<2x128xf32>
    %397 = arith.addf %395, %396 : vector<2x128xf32>
    %398 = math.tanh %397 : vector<2x128xf32>
    %399 = arith.mulf %394, %398 : vector<2x128xf32>
    %400 = vector.extract_strided_slice %399 {offsets = [0, 0], sizes = [2, 64], strides = [1, 1]} : vector<2x128xf32> to vector<2x64xf32>
    %401 = vector.extract_strided_slice %399 {offsets = [0, 64], sizes = [2, 64], strides = [1, 1]} : vector<2x128xf32> to vector<2x64xf32>
    %402 = vector.extract_strided_slice %362 {offsets = [1, 0, 0], sizes = [1, 2, 512], strides = [1, 1, 1]} : vector<8x2x512xf32> to vector<1x2x512xf32>
    %403 = vector.shape_cast %402 : vector<1x2x512xf32> to vector<2x512xf32>
    %404 = vector.extract_strided_slice %362 {offsets = [6, 0, 0], sizes = [1, 2, 512], strides = [1, 1, 1]} : vector<8x2x512xf32> to vector<1x2x512xf32>
    %405 = vector.shape_cast %404 : vector<1x2x512xf32> to vector<2x512xf32>
    %406 = vector.shape_cast %28 : vector<1x512xi1> to vector<1x512xi1>
    %407 = vector.broadcast %406 : vector<1x512xi1> to vector<2x512xi1>
    %408 = arith.select %407, %403, %405 : vector<2x512xi1>, vector<2x512xf32>
    %409 = arith.truncf %399 : vector<2x128xf32> to vector<2x128xbf16>
    %cst_62 = arith.constant dense<0.000000e+00> : vector<2x512xf32>
    %410 = tpu.matmul %409, %356, %cst_62 {dimension_numbers = #tpu.dot_dimension_numbers<[1], [0], [0], [1], [0, 0, 1, 1], [], []>} : vector<2x128xbf16>, vector<128x512xbf16>, vector<2x512xf32> -> vector<2x512xf32>
    %411 = arith.addf %408, %410 : vector<2x512xf32>
    %412 = vector.extract_strided_slice %411 {offsets = [0, 0], sizes = [2, 128], strides = [1, 1]} : vector<2x512xf32> to vector<2x128xf32>
    %413 = arith.negf %412 : vector<2x128xf32>
    %414 = math.exp %413 : vector<2x128xf32>
    %cst_63 = arith.constant 1.000000e+00 : f32
    %415 = vector.broadcast %cst_63 : f32 to vector<2x128xf32>
    %416 = arith.addf %415, %414 : vector<2x128xf32>
    %417 = arith.divf %415, %416 : vector<2x128xf32>
    %418 = vector.extract_strided_slice %411 {offsets = [0, 128], sizes = [2, 128], strides = [1, 1]} : vector<2x512xf32> to vector<2x128xf32>
    %419 = arith.negf %418 : vector<2x128xf32>
    %420 = math.exp %419 : vector<2x128xf32>
    %cst_64 = arith.constant 1.000000e+00 : f32
    %421 = vector.broadcast %cst_64 : f32 to vector<2x128xf32>
    %422 = arith.addf %421, %420 : vector<2x128xf32>
    %423 = arith.divf %421, %422 : vector<2x128xf32>
    %424 = vector.extract_strided_slice %411 {offsets = [0, 256], sizes = [2, 128], strides = [1, 1]} : vector<2x512xf32> to vector<2x128xf32>
    %425 = math.tanh %424 : vector<2x128xf32>
    %426 = vector.extract_strided_slice %411 {offsets = [0, 384], sizes = [2, 128], strides = [1, 1]} : vector<2x512xf32> to vector<2x128xf32>
    %427 = arith.negf %426 : vector<2x128xf32>
    %428 = math.exp %427 : vector<2x128xf32>
    %cst_65 = arith.constant 1.000000e+00 : f32
    %429 = vector.broadcast %cst_65 : f32 to vector<2x128xf32>
    %430 = arith.addf %429, %428 : vector<2x128xf32>
    %431 = arith.divf %429, %430 : vector<2x128xf32>
    %432 = arith.mulf %423, %397 : vector<2x128xf32>
    %433 = arith.mulf %417, %425 : vector<2x128xf32>
    %434 = arith.addf %432, %433 : vector<2x128xf32>
    %435 = math.tanh %434 : vector<2x128xf32>
    %436 = arith.mulf %431, %435 : vector<2x128xf32>
    %437 = vector.extract_strided_slice %436 {offsets = [0, 0], sizes = [2, 64], strides = [1, 1]} : vector<2x128xf32> to vector<2x64xf32>
    %438 = vector.extract_strided_slice %436 {offsets = [0, 64], sizes = [2, 64], strides = [1, 1]} : vector<2x128xf32> to vector<2x64xf32>
    %439 = vector.extract_strided_slice %362 {offsets = [2, 0, 0], sizes = [1, 2, 512], strides = [1, 1, 1]} : vector<8x2x512xf32> to vector<1x2x512xf32>
    %440 = vector.shape_cast %439 : vector<1x2x512xf32> to vector<2x512xf32>
    %441 = vector.extract_strided_slice %362 {offsets = [5, 0, 0], sizes = [1, 2, 512], strides = [1, 1, 1]} : vector<8x2x512xf32> to vector<1x2x512xf32>
    %442 = vector.shape_cast %441 : vector<1x2x512xf32> to vector<2x512xf32>
    %443 = vector.shape_cast %28 : vector<1x512xi1> to vector<1x512xi1>
    %444 = vector.broadcast %443 : vector<1x512xi1> to vector<2x512xi1>
    %445 = arith.select %444, %440, %442 : vector<2x512xi1>, vector<2x512xf32>
    %446 = arith.truncf %436 : vector<2x128xf32> to vector<2x128xbf16>
    %cst_66 = arith.constant dense<0.000000e+00> : vector<2x512xf32>
    %447 = tpu.matmul %446, %356, %cst_66 {dimension_numbers = #tpu.dot_dimension_numbers<[1], [0], [0], [1], [0, 0, 1, 1], [], []>} : vector<2x128xbf16>, vector<128x512xbf16>, vector<2x512xf32> -> vector<2x512xf32>
    %448 = arith.addf %445, %447 : vector<2x512xf32>
    %449 = vector.extract_strided_slice %448 {offsets = [0, 0], sizes = [2, 128], strides = [1, 1]} : vector<2x512xf32> to vector<2x128xf32>
    %450 = arith.negf %449 : vector<2x128xf32>
    %451 = math.exp %450 : vector<2x128xf32>
    %cst_67 = arith.constant 1.000000e+00 : f32
    %452 = vector.broadcast %cst_67 : f32 to vector<2x128xf32>
    %453 = arith.addf %452, %451 : vector<2x128xf32>
    %454 = arith.divf %452, %453 : vector<2x128xf32>
    %455 = vector.extract_strided_slice %448 {offsets = [0, 128], sizes = [2, 128], strides = [1, 1]} : vector<2x512xf32> to vector<2x128xf32>
    %456 = arith.negf %455 : vector<2x128xf32>
    %457 = math.exp %456 : vector<2x128xf32>
    %cst_68 = arith.constant 1.000000e+00 : f32
    %458 = vector.broadcast %cst_68 : f32 to vector<2x128xf32>
    %459 = arith.addf %458, %457 : vector<2x128xf32>
    %460 = arith.divf %458, %459 : vector<2x128xf32>
    %461 = vector.extract_strided_slice %448 {offsets = [0, 256], sizes = [2, 128], strides = [1, 1]} : vector<2x512xf32> to vector<2x128xf32>
    %462 = math.tanh %461 : vector<2x128xf32>
    %463 = vector.extract_strided_slice %448 {offsets = [0, 384], sizes = [2, 128], strides = [1, 1]} : vector<2x512xf32> to vector<2x128xf32>
    %464 = arith.negf %463 : vector<2x128xf32>
    %465 = math.exp %464 : vector<2x128xf32>
    %cst_69 = arith.constant 1.000000e+00 : f32
    %466 = vector.broadcast %cst_69 : f32 to vector<2x128xf32>
    %467 = arith.addf %466, %465 : vector<2x128xf32>
    %468 = arith.divf %466, %467 : vector<2x128xf32>
    %469 = arith.mulf %460, %434 : vector<2x128xf32>
    %470 = arith.mulf %454, %462 : vector<2x128xf32>
    %471 = arith.addf %469, %470 : vector<2x128xf32>
    %472 = math.tanh %471 : vector<2x128xf32>
    %473 = arith.mulf %468, %472 : vector<2x128xf32>
    %474 = vector.extract_strided_slice %473 {offsets = [0, 0], sizes = [2, 64], strides = [1, 1]} : vector<2x128xf32> to vector<2x64xf32>
    %475 = vector.extract_strided_slice %473 {offsets = [0, 64], sizes = [2, 64], strides = [1, 1]} : vector<2x128xf32> to vector<2x64xf32>
    %476 = vector.extract_strided_slice %362 {offsets = [3, 0, 0], sizes = [1, 2, 512], strides = [1, 1, 1]} : vector<8x2x512xf32> to vector<1x2x512xf32>
    %477 = vector.shape_cast %476 : vector<1x2x512xf32> to vector<2x512xf32>
    %478 = vector.extract_strided_slice %362 {offsets = [4, 0, 0], sizes = [1, 2, 512], strides = [1, 1, 1]} : vector<8x2x512xf32> to vector<1x2x512xf32>
    %479 = vector.shape_cast %478 : vector<1x2x512xf32> to vector<2x512xf32>
    %480 = vector.shape_cast %28 : vector<1x512xi1> to vector<1x512xi1>
    %481 = vector.broadcast %480 : vector<1x512xi1> to vector<2x512xi1>
    %482 = arith.select %481, %477, %479 : vector<2x512xi1>, vector<2x512xf32>
    %483 = arith.truncf %473 : vector<2x128xf32> to vector<2x128xbf16>
    %cst_70 = arith.constant dense<0.000000e+00> : vector<2x512xf32>
    %484 = tpu.matmul %483, %356, %cst_70 {dimension_numbers = #tpu.dot_dimension_numbers<[1], [0], [0], [1], [0, 0, 1, 1], [], []>} : vector<2x128xbf16>, vector<128x512xbf16>, vector<2x512xf32> -> vector<2x512xf32>
    %485 = arith.addf %482, %484 : vector<2x512xf32>
    %486 = vector.extract_strided_slice %485 {offsets = [0, 0], sizes = [2, 128], strides = [1, 1]} : vector<2x512xf32> to vector<2x128xf32>
    %487 = arith.negf %486 : vector<2x128xf32>
    %488 = math.exp %487 : vector<2x128xf32>
    %cst_71 = arith.constant 1.000000e+00 : f32
    %489 = vector.broadcast %cst_71 : f32 to vector<2x128xf32>
    %490 = arith.addf %489, %488 : vector<2x128xf32>
    %491 = arith.divf %489, %490 : vector<2x128xf32>
    %492 = vector.extract_strided_slice %485 {offsets = [0, 128], sizes = [2, 128], strides = [1, 1]} : vector<2x512xf32> to vector<2x128xf32>
    %493 = arith.negf %492 : vector<2x128xf32>
    %494 = math.exp %493 : vector<2x128xf32>
    %cst_72 = arith.constant 1.000000e+00 : f32
    %495 = vector.broadcast %cst_72 : f32 to vector<2x128xf32>
    %496 = arith.addf %495, %494 : vector<2x128xf32>
    %497 = arith.divf %495, %496 : vector<2x128xf32>
    %498 = vector.extract_strided_slice %485 {offsets = [0, 256], sizes = [2, 128], strides = [1, 1]} : vector<2x512xf32> to vector<2x128xf32>
    %499 = math.tanh %498 : vector<2x128xf32>
    %500 = vector.extract_strided_slice %485 {offsets = [0, 384], sizes = [2, 128], strides = [1, 1]} : vector<2x512xf32> to vector<2x128xf32>
    %501 = arith.negf %500 : vector<2x128xf32>
    %502 = math.exp %501 : vector<2x128xf32>
    %cst_73 = arith.constant 1.000000e+00 : f32
    %503 = vector.broadcast %cst_73 : f32 to vector<2x128xf32>
    %504 = arith.addf %503, %502 : vector<2x128xf32>
    %505 = arith.divf %503, %504 : vector<2x128xf32>
    %506 = arith.mulf %497, %471 : vector<2x128xf32>
    %507 = arith.mulf %491, %499 : vector<2x128xf32>
    %508 = arith.addf %506, %507 : vector<2x128xf32>
    %509 = math.tanh %508 : vector<2x128xf32>
    %510 = arith.mulf %505, %509 : vector<2x128xf32>
    %511 = vector.extract_strided_slice %510 {offsets = [0, 0], sizes = [2, 64], strides = [1, 1]} : vector<2x128xf32> to vector<2x64xf32>
    %512 = vector.extract_strided_slice %510 {offsets = [0, 64], sizes = [2, 64], strides = [1, 1]} : vector<2x128xf32> to vector<2x64xf32>
    %513 = vector.extract_strided_slice %362 {offsets = [4, 0, 0], sizes = [1, 2, 512], strides = [1, 1, 1]} : vector<8x2x512xf32> to vector<1x2x512xf32>
    %514 = vector.shape_cast %513 : vector<1x2x512xf32> to vector<2x512xf32>
    %515 = vector.extract_strided_slice %362 {offsets = [3, 0, 0], sizes = [1, 2, 512], strides = [1, 1, 1]} : vector<8x2x512xf32> to vector<1x2x512xf32>
    %516 = vector.shape_cast %515 : vector<1x2x512xf32> to vector<2x512xf32>
    %517 = vector.shape_cast %28 : vector<1x512xi1> to vector<1x512xi1>
    %518 = vector.broadcast %517 : vector<1x512xi1> to vector<2x512xi1>
    %519 = arith.select %518, %514, %516 : vector<2x512xi1>, vector<2x512xf32>
    %520 = arith.truncf %510 : vector<2x128xf32> to vector<2x128xbf16>
    %cst_74 = arith.constant dense<0.000000e+00> : vector<2x512xf32>
    %521 = tpu.matmul %520, %356, %cst_74 {dimension_numbers = #tpu.dot_dimension_numbers<[1], [0], [0], [1], [0, 0, 1, 1], [], []>} : vector<2x128xbf16>, vector<128x512xbf16>, vector<2x512xf32> -> vector<2x512xf32>
    %522 = arith.addf %519, %521 : vector<2x512xf32>
    %523 = vector.extract_strided_slice %522 {offsets = [0, 0], sizes = [2, 128], strides = [1, 1]} : vector<2x512xf32> to vector<2x128xf32>
    %524 = arith.negf %523 : vector<2x128xf32>
    %525 = math.exp %524 : vector<2x128xf32>
    %cst_75 = arith.constant 1.000000e+00 : f32
    %526 = vector.broadcast %cst_75 : f32 to vector<2x128xf32>
    %527 = arith.addf %526, %525 : vector<2x128xf32>
    %528 = arith.divf %526, %527 : vector<2x128xf32>
    %529 = vector.extract_strided_slice %522 {offsets = [0, 128], sizes = [2, 128], strides = [1, 1]} : vector<2x512xf32> to vector<2x128xf32>
    %530 = arith.negf %529 : vector<2x128xf32>
    %531 = math.exp %530 : vector<2x128xf32>
    %cst_76 = arith.constant 1.000000e+00 : f32
    %532 = vector.broadcast %cst_76 : f32 to vector<2x128xf32>
    %533 = arith.addf %532, %531 : vector<2x128xf32>
    %534 = arith.divf %532, %533 : vector<2x128xf32>
    %535 = vector.extract_strided_slice %522 {offsets = [0, 256], sizes = [2, 128], strides = [1, 1]} : vector<2x512xf32> to vector<2x128xf32>
    %536 = math.tanh %535 : vector<2x128xf32>
    %537 = vector.extract_strided_slice %522 {offsets = [0, 384], sizes = [2, 128], strides = [1, 1]} : vector<2x512xf32> to vector<2x128xf32>
    %538 = arith.negf %537 : vector<2x128xf32>
    %539 = math.exp %538 : vector<2x128xf32>
    %cst_77 = arith.constant 1.000000e+00 : f32
    %540 = vector.broadcast %cst_77 : f32 to vector<2x128xf32>
    %541 = arith.addf %540, %539 : vector<2x128xf32>
    %542 = arith.divf %540, %541 : vector<2x128xf32>
    %543 = arith.mulf %534, %508 : vector<2x128xf32>
    %544 = arith.mulf %528, %536 : vector<2x128xf32>
    %545 = arith.addf %543, %544 : vector<2x128xf32>
    %546 = math.tanh %545 : vector<2x128xf32>
    %547 = arith.mulf %542, %546 : vector<2x128xf32>
    %548 = vector.extract_strided_slice %547 {offsets = [0, 0], sizes = [2, 64], strides = [1, 1]} : vector<2x128xf32> to vector<2x64xf32>
    %549 = vector.extract_strided_slice %547 {offsets = [0, 64], sizes = [2, 64], strides = [1, 1]} : vector<2x128xf32> to vector<2x64xf32>
    %550 = vector.extract_strided_slice %362 {offsets = [5, 0, 0], sizes = [1, 2, 512], strides = [1, 1, 1]} : vector<8x2x512xf32> to vector<1x2x512xf32>
    %551 = vector.shape_cast %550 : vector<1x2x512xf32> to vector<2x512xf32>
    %552 = vector.extract_strided_slice %362 {offsets = [2, 0, 0], sizes = [1, 2, 512], strides = [1, 1, 1]} : vector<8x2x512xf32> to vector<1x2x512xf32>
    %553 = vector.shape_cast %552 : vector<1x2x512xf32> to vector<2x512xf32>
    %554 = vector.shape_cast %28 : vector<1x512xi1> to vector<1x512xi1>
    %555 = vector.broadcast %554 : vector<1x512xi1> to vector<2x512xi1>
    %556 = arith.select %555, %551, %553 : vector<2x512xi1>, vector<2x512xf32>
    %557 = arith.truncf %547 : vector<2x128xf32> to vector<2x128xbf16>
    %cst_78 = arith.constant dense<0.000000e+00> : vector<2x512xf32>
    %558 = tpu.matmul %557, %356, %cst_78 {dimension_numbers = #tpu.dot_dimension_numbers<[1], [0], [0], [1], [0, 0, 1, 1], [], []>} : vector<2x128xbf16>, vector<128x512xbf16>, vector<2x512xf32> -> vector<2x512xf32>
    %559 = arith.addf %556, %558 : vector<2x512xf32>
    %560 = vector.extract_strided_slice %559 {offsets = [0, 0], sizes = [2, 128], strides = [1, 1]} : vector<2x512xf32> to vector<2x128xf32>
    %561 = arith.negf %560 : vector<2x128xf32>
    %562 = math.exp %561 : vector<2x128xf32>
    %cst_79 = arith.constant 1.000000e+00 : f32
    %563 = vector.broadcast %cst_79 : f32 to vector<2x128xf32>
    %564 = arith.addf %563, %562 : vector<2x128xf32>
    %565 = arith.divf %563, %564 : vector<2x128xf32>
    %566 = vector.extract_strided_slice %559 {offsets = [0, 128], sizes = [2, 128], strides = [1, 1]} : vector<2x512xf32> to vector<2x128xf32>
    %567 = arith.negf %566 : vector<2x128xf32>
    %568 = math.exp %567 : vector<2x128xf32>
    %cst_80 = arith.constant 1.000000e+00 : f32
    %569 = vector.broadcast %cst_80 : f32 to vector<2x128xf32>
    %570 = arith.addf %569, %568 : vector<2x128xf32>
    %571 = arith.divf %569, %570 : vector<2x128xf32>
    %572 = vector.extract_strided_slice %559 {offsets = [0, 256], sizes = [2, 128], strides = [1, 1]} : vector<2x512xf32> to vector<2x128xf32>
    %573 = math.tanh %572 : vector<2x128xf32>
    %574 = vector.extract_strided_slice %559 {offsets = [0, 384], sizes = [2, 128], strides = [1, 1]} : vector<2x512xf32> to vector<2x128xf32>
    %575 = arith.negf %574 : vector<2x128xf32>
    %576 = math.exp %575 : vector<2x128xf32>
    %cst_81 = arith.constant 1.000000e+00 : f32
    %577 = vector.broadcast %cst_81 : f32 to vector<2x128xf32>
    %578 = arith.addf %577, %576 : vector<2x128xf32>
    %579 = arith.divf %577, %578 : vector<2x128xf32>
    %580 = arith.mulf %571, %545 : vector<2x128xf32>
    %581 = arith.mulf %565, %573 : vector<2x128xf32>
    %582 = arith.addf %580, %581 : vector<2x128xf32>
    %583 = math.tanh %582 : vector<2x128xf32>
    %584 = arith.mulf %579, %583 : vector<2x128xf32>
    %585 = vector.extract_strided_slice %584 {offsets = [0, 0], sizes = [2, 64], strides = [1, 1]} : vector<2x128xf32> to vector<2x64xf32>
    %586 = vector.extract_strided_slice %584 {offsets = [0, 64], sizes = [2, 64], strides = [1, 1]} : vector<2x128xf32> to vector<2x64xf32>
    %587 = vector.extract_strided_slice %362 {offsets = [6, 0, 0], sizes = [1, 2, 512], strides = [1, 1, 1]} : vector<8x2x512xf32> to vector<1x2x512xf32>
    %588 = vector.shape_cast %587 : vector<1x2x512xf32> to vector<2x512xf32>
    %589 = vector.extract_strided_slice %362 {offsets = [1, 0, 0], sizes = [1, 2, 512], strides = [1, 1, 1]} : vector<8x2x512xf32> to vector<1x2x512xf32>
    %590 = vector.shape_cast %589 : vector<1x2x512xf32> to vector<2x512xf32>
    %591 = vector.shape_cast %28 : vector<1x512xi1> to vector<1x512xi1>
    %592 = vector.broadcast %591 : vector<1x512xi1> to vector<2x512xi1>
    %593 = arith.select %592, %588, %590 : vector<2x512xi1>, vector<2x512xf32>
    %594 = arith.truncf %584 : vector<2x128xf32> to vector<2x128xbf16>
    %cst_82 = arith.constant dense<0.000000e+00> : vector<2x512xf32>
    %595 = tpu.matmul %594, %356, %cst_82 {dimension_numbers = #tpu.dot_dimension_numbers<[1], [0], [0], [1], [0, 0, 1, 1], [], []>} : vector<2x128xbf16>, vector<128x512xbf16>, vector<2x512xf32> -> vector<2x512xf32>
    %596 = arith.addf %593, %595 : vector<2x512xf32>
    %597 = vector.extract_strided_slice %596 {offsets = [0, 0], sizes = [2, 128], strides = [1, 1]} : vector<2x512xf32> to vector<2x128xf32>
    %598 = arith.negf %597 : vector<2x128xf32>
    %599 = math.exp %598 : vector<2x128xf32>
    %cst_83 = arith.constant 1.000000e+00 : f32
    %600 = vector.broadcast %cst_83 : f32 to vector<2x128xf32>
    %601 = arith.addf %600, %599 : vector<2x128xf32>
    %602 = arith.divf %600, %601 : vector<2x128xf32>
    %603 = vector.extract_strided_slice %596 {offsets = [0, 128], sizes = [2, 128], strides = [1, 1]} : vector<2x512xf32> to vector<2x128xf32>
    %604 = arith.negf %603 : vector<2x128xf32>
    %605 = math.exp %604 : vector<2x128xf32>
    %cst_84 = arith.constant 1.000000e+00 : f32
    %606 = vector.broadcast %cst_84 : f32 to vector<2x128xf32>
    %607 = arith.addf %606, %605 : vector<2x128xf32>
    %608 = arith.divf %606, %607 : vector<2x128xf32>
    %609 = vector.extract_strided_slice %596 {offsets = [0, 256], sizes = [2, 128], strides = [1, 1]} : vector<2x512xf32> to vector<2x128xf32>
    %610 = math.tanh %609 : vector<2x128xf32>
    %611 = vector.extract_strided_slice %596 {offsets = [0, 384], sizes = [2, 128], strides = [1, 1]} : vector<2x512xf32> to vector<2x128xf32>
    %612 = arith.negf %611 : vector<2x128xf32>
    %613 = math.exp %612 : vector<2x128xf32>
    %cst_85 = arith.constant 1.000000e+00 : f32
    %614 = vector.broadcast %cst_85 : f32 to vector<2x128xf32>
    %615 = arith.addf %614, %613 : vector<2x128xf32>
    %616 = arith.divf %614, %615 : vector<2x128xf32>
    %617 = arith.mulf %608, %582 : vector<2x128xf32>
    %618 = arith.mulf %602, %610 : vector<2x128xf32>
    %619 = arith.addf %617, %618 : vector<2x128xf32>
    %620 = math.tanh %619 : vector<2x128xf32>
    %621 = arith.mulf %616, %620 : vector<2x128xf32>
    %622 = vector.extract_strided_slice %621 {offsets = [0, 0], sizes = [2, 64], strides = [1, 1]} : vector<2x128xf32> to vector<2x64xf32>
    %623 = vector.extract_strided_slice %621 {offsets = [0, 64], sizes = [2, 64], strides = [1, 1]} : vector<2x128xf32> to vector<2x64xf32>
    %624 = vector.extract_strided_slice %362 {offsets = [7, 0, 0], sizes = [1, 2, 512], strides = [1, 1, 1]} : vector<8x2x512xf32> to vector<1x2x512xf32>
    %625 = vector.shape_cast %624 : vector<1x2x512xf32> to vector<2x512xf32>
    %626 = vector.extract_strided_slice %362 {offsets = [0, 0, 0], sizes = [1, 2, 512], strides = [1, 1, 1]} : vector<8x2x512xf32> to vector<1x2x512xf32>
    %627 = vector.shape_cast %626 : vector<1x2x512xf32> to vector<2x512xf32>
    %628 = vector.shape_cast %28 : vector<1x512xi1> to vector<1x512xi1>
    %629 = vector.broadcast %628 : vector<1x512xi1> to vector<2x512xi1>
    %630 = arith.select %629, %625, %627 : vector<2x512xi1>, vector<2x512xf32>
    %631 = arith.truncf %621 : vector<2x128xf32> to vector<2x128xbf16>
    %cst_86 = arith.constant dense<0.000000e+00> : vector<2x512xf32>
    %632 = tpu.matmul %631, %356, %cst_86 {dimension_numbers = #tpu.dot_dimension_numbers<[1], [0], [0], [1], [0, 0, 1, 1], [], []>} : vector<2x128xbf16>, vector<128x512xbf16>, vector<2x512xf32> -> vector<2x512xf32>
    %633 = arith.addf %630, %632 : vector<2x512xf32>
    %634 = vector.extract_strided_slice %633 {offsets = [0, 0], sizes = [2, 128], strides = [1, 1]} : vector<2x512xf32> to vector<2x128xf32>
    %635 = arith.negf %634 : vector<2x128xf32>
    %636 = math.exp %635 : vector<2x128xf32>
    %cst_87 = arith.constant 1.000000e+00 : f32
    %637 = vector.broadcast %cst_87 : f32 to vector<2x128xf32>
    %638 = arith.addf %637, %636 : vector<2x128xf32>
    %639 = arith.divf %637, %638 : vector<2x128xf32>
    %640 = vector.extract_strided_slice %633 {offsets = [0, 128], sizes = [2, 128], strides = [1, 1]} : vector<2x512xf32> to vector<2x128xf32>
    %641 = arith.negf %640 : vector<2x128xf32>
    %642 = math.exp %641 : vector<2x128xf32>
    %cst_88 = arith.constant 1.000000e+00 : f32
    %643 = vector.broadcast %cst_88 : f32 to vector<2x128xf32>
    %644 = arith.addf %643, %642 : vector<2x128xf32>
    %645 = arith.divf %643, %644 : vector<2x128xf32>
    %646 = vector.extract_strided_slice %633 {offsets = [0, 256], sizes = [2, 128], strides = [1, 1]} : vector<2x512xf32> to vector<2x128xf32>
    %647 = math.tanh %646 : vector<2x128xf32>
    %648 = vector.extract_strided_slice %633 {offsets = [0, 384], sizes = [2, 128], strides = [1, 1]} : vector<2x512xf32> to vector<2x128xf32>
    %649 = arith.negf %648 : vector<2x128xf32>
    %650 = math.exp %649 : vector<2x128xf32>
    %cst_89 = arith.constant 1.000000e+00 : f32
    %651 = vector.broadcast %cst_89 : f32 to vector<2x128xf32>
    %652 = arith.addf %651, %650 : vector<2x128xf32>
    %653 = arith.divf %651, %652 : vector<2x128xf32>
    %654 = arith.mulf %645, %619 : vector<2x128xf32>
    %655 = arith.mulf %639, %647 : vector<2x128xf32>
    %656 = arith.addf %654, %655 : vector<2x128xf32>
    %657 = math.tanh %656 : vector<2x128xf32>
    %658 = arith.mulf %653, %657 : vector<2x128xf32>
    %659 = vector.extract_strided_slice %658 {offsets = [0, 0], sizes = [2, 64], strides = [1, 1]} : vector<2x128xf32> to vector<2x64xf32>
    %660 = vector.extract_strided_slice %658 {offsets = [0, 64], sizes = [2, 64], strides = [1, 1]} : vector<2x128xf32> to vector<2x64xf32>
    %661 = vector.shape_cast %400 : vector<2x64xf32> to vector<1x2x64xf32>
    %662 = vector.shape_cast %437 : vector<2x64xf32> to vector<1x2x64xf32>
    %663 = vector.shape_cast %474 : vector<2x64xf32> to vector<1x2x64xf32>
    %664 = vector.shape_cast %511 : vector<2x64xf32> to vector<1x2x64xf32>
    %665 = vector.shape_cast %548 : vector<2x64xf32> to vector<1x2x64xf32>
    %666 = vector.shape_cast %585 : vector<2x64xf32> to vector<1x2x64xf32>
    %667 = vector.shape_cast %622 : vector<2x64xf32> to vector<1x2x64xf32>
    %668 = vector.shape_cast %659 : vector<2x64xf32> to vector<1x2x64xf32>
    %669 = tpu.concatenate %661, %662, %663, %664, %665, %666, %667, %668 in 0 : vector<1x2x64xf32>, vector<1x2x64xf32>, vector<1x2x64xf32>, vector<1x2x64xf32>, vector<1x2x64xf32>, vector<1x2x64xf32>, vector<1x2x64xf32>, vector<1x2x64xf32> -> vector<8x2x64xf32>
    %670 = vector.shape_cast %660 : vector<2x64xf32> to vector<1x2x64xf32>
    %671 = vector.shape_cast %623 : vector<2x64xf32> to vector<1x2x64xf32>
    %672 = vector.shape_cast %586 : vector<2x64xf32> to vector<1x2x64xf32>
    %673 = vector.shape_cast %549 : vector<2x64xf32> to vector<1x2x64xf32>
    %674 = vector.shape_cast %512 : vector<2x64xf32> to vector<1x2x64xf32>
    %675 = vector.shape_cast %475 : vector<2x64xf32> to vector<1x2x64xf32>
    %676 = vector.shape_cast %438 : vector<2x64xf32> to vector<1x2x64xf32>
    %677 = vector.shape_cast %401 : vector<2x64xf32> to vector<1x2x64xf32>
    %678 = tpu.concatenate %670, %671, %672, %673, %674, %675, %676, %677 in 0 : vector<1x2x64xf32>, vector<1x2x64xf32>, vector<1x2x64xf32>, vector<1x2x64xf32>, vector<1x2x64xf32>, vector<1x2x64xf32>, vector<1x2x64xf32>, vector<1x2x64xf32> -> vector<8x2x64xf32>
    %679 = tpu.concatenate %669, %678 in 2 : vector<8x2x64xf32>, vector<8x2x64xf32> -> vector<8x2x128xf32>
    %680 = vector.shape_cast %679 : vector<8x2x128xf32> to vector<16x128xf32>
    %681 = vector.shape_cast %680 : vector<16x128xf32> to vector<8x2x128xf32>
    %682 = tpu.transpose %681, [1, 0, 2] : vector<8x2x128xf32> -> vector<2x8x128xf32>
    %683 = vector.shape_cast %682 : vector<2x8x128xf32> to vector<16x128xf32>
    %684 = arith.truncf %683 : vector<16x128xf32> to vector<16x128xbf16>
    %c0_90 = arith.constant 0 : index
    %c0_91 = arith.constant 0 : index
    %685 = vector.load %arg9[%c0_90, %c0_91] : memref<128x384xbf16, #tpu.memory_space<vmem>>, vector<128x384xbf16>
    %cst_92 = arith.constant dense<0.000000e+00> : vector<16x384xf32>
    %686 = tpu.matmul %684, %685, %cst_92 {dimension_numbers = #tpu.dot_dimension_numbers<[1], [0], [0], [1], [0, 0, 1, 1], [], []>} : vector<16x128xbf16>, vector<128x384xbf16>, vector<16x384xf32> -> vector<16x384xf32>
    %c0_93 = arith.constant 0 : index
    %c0_94 = arith.constant 0 : index
    %687 = vector.load %arg10[%c0_93, %c0_94] : memref<1x384xf32, #tpu.memory_space<vmem>>, vector<1x384xf32>
    %688 = vector.broadcast %687 : vector<1x384xf32> to vector<16x384xf32>
    %689 = arith.addf %686, %688 : vector<16x384xf32>
    %690 = vector.extract_strided_slice %689 {offsets = [0, 0], sizes = [16, 128], strides = [1, 1]} : vector<16x384xf32> to vector<16x128xf32>
    %691 = vector.shape_cast %690 : vector<16x128xf32> to vector<2x8x128xf32>
    %692 = vector.extract_strided_slice %689 {offsets = [0, 128], sizes = [16, 128], strides = [1, 1]} : vector<16x384xf32> to vector<16x128xf32>
    %693 = vector.shape_cast %692 : vector<16x128xf32> to vector<2x8x128xf32>
    %694 = vector.extract_strided_slice %689 {offsets = [0, 256], sizes = [16, 128], strides = [1, 1]} : vector<16x384xf32> to vector<16x128xf32>
    %695 = vector.shape_cast %694 : vector<16x128xf32> to vector<2x8x128xf32>
    %696 = vector.extract_strided_slice %691 {offsets = [0, 0, 0], sizes = [2, 8, 64], strides = [1, 1, 1]} : vector<2x8x128xf32> to vector<2x8x64xf32>
    %697 = arith.truncf %696 : vector<2x8x64xf32> to vector<2x8x64xbf16>
    %698 = vector.extract_strided_slice %693 {offsets = [0, 0, 0], sizes = [2, 8, 64], strides = [1, 1, 1]} : vector<2x8x128xf32> to vector<2x8x64xf32>
    %699 = arith.truncf %698 : vector<2x8x64xf32> to vector<2x8x64xbf16>
    "tpu.trace_start"() <{level = 10 : i32, message = "bqd,bkd->bqk"}> : () -> ()
    %cst_95 = arith.constant dense<0.000000e+00> : vector<2x8x8xf32>
    %700 = tpu.matmul %697, %699, %cst_95 {dimension_numbers = #tpu.dot_dimension_numbers<[2], [2], [1], [1], [0, 0, 0, 1, 1, 1], [0], [0]>} : vector<2x8x64xbf16>, vector<2x8x64xbf16>, vector<2x8x8xf32> -> vector<2x8x8xf32>
    "tpu.trace_stop"() : () -> ()
    %cst_96 = arith.constant dense<0xFF800000> : vector<2x8xf32>
    %701 = vector.multi_reduction <maximumf>, %700, %cst_96 [2] : vector<2x8x8xf32> to vector<2x8xf32>
    %702 = vector.shape_cast %701 : vector<2x8xf32> to vector<2x8x1xf32>
    %703 = vector.broadcast %702 : vector<2x8x1xf32> to vector<2x8x8xf32>
    %704 = arith.subf %700, %703 : vector<2x8x8xf32>
    %705 = math.exp %704 : vector<2x8x8xf32>
    %cst_97 = arith.constant dense<0.000000e+00> : vector<2x8xf32>
    %706 = vector.multi_reduction <add>, %705, %cst_97 [2] : vector<2x8x8xf32> to vector<2x8xf32>
    %707 = vector.shape_cast %706 : vector<2x8xf32> to vector<2x8x1xf32>
    %708 = tpu.reciprocal %707 {approx = true} : vector<2x8x1xf32> -> vector<2x8x1xf32>
    %709 = vector.broadcast %708 : vector<2x8x1xf32> to vector<2x8x8xf32>
    %710 = arith.mulf %705, %709 : vector<2x8x8xf32>
    %711 = arith.truncf %710 : vector<2x8x8xf32> to vector<2x8x8xbf16>
    %712 = vector.extract_strided_slice %695 {offsets = [0, 0, 0], sizes = [2, 8, 64], strides = [1, 1, 1]} : vector<2x8x128xf32> to vector<2x8x64xf32>
    %713 = arith.truncf %712 : vector<2x8x64xf32> to vector<2x8x64xbf16>
    "tpu.trace_start"() <{level = 10 : i32, message = "bqk,bkd->bqd"}> : () -> ()
    %cst_98 = arith.constant dense<0.000000e+00> : vector<2x8x64xf32>
    %714 = tpu.matmul %711, %713, %cst_98 {dimension_numbers = #tpu.dot_dimension_numbers<[2], [1], [1], [2], [0, 0, 0, 1, 1, 2], [0], [0]>} : vector<2x8x8xbf16>, vector<2x8x64xbf16>, vector<2x8x64xf32> -> vector<2x8x64xf32>
    "tpu.trace_stop"() : () -> ()
    %715 = vector.extract_strided_slice %691 {offsets = [0, 0, 64], sizes = [2, 8, 64], strides = [1, 1, 1]} : vector<2x8x128xf32> to vector<2x8x64xf32>
    %716 = arith.truncf %715 : vector<2x8x64xf32> to vector<2x8x64xbf16>
    %717 = vector.extract_strided_slice %693 {offsets = [0, 0, 64], sizes = [2, 8, 64], strides = [1, 1, 1]} : vector<2x8x128xf32> to vector<2x8x64xf32>
    %718 = arith.truncf %717 : vector<2x8x64xf32> to vector<2x8x64xbf16>
    "tpu.trace_start"() <{level = 10 : i32, message = "bqd,bkd->bqk"}> : () -> ()
    %cst_99 = arith.constant dense<0.000000e+00> : vector<2x8x8xf32>
    %719 = tpu.matmul %716, %718, %cst_99 {dimension_numbers = #tpu.dot_dimension_numbers<[2], [2], [1], [1], [0, 0, 0, 1, 1, 1], [0], [0]>} : vector<2x8x64xbf16>, vector<2x8x64xbf16>, vector<2x8x8xf32> -> vector<2x8x8xf32>
    "tpu.trace_stop"() : () -> ()
    %cst_100 = arith.constant dense<0xFF800000> : vector<2x8xf32>
    %720 = vector.multi_reduction <maximumf>, %719, %cst_100 [2] : vector<2x8x8xf32> to vector<2x8xf32>
    %721 = vector.shape_cast %720 : vector<2x8xf32> to vector<2x8x1xf32>
    %722 = vector.broadcast %721 : vector<2x8x1xf32> to vector<2x8x8xf32>
    %723 = arith.subf %719, %722 : vector<2x8x8xf32>
    %724 = math.exp %723 : vector<2x8x8xf32>
    %cst_101 = arith.constant dense<0.000000e+00> : vector<2x8xf32>
    %725 = vector.multi_reduction <add>, %724, %cst_101 [2] : vector<2x8x8xf32> to vector<2x8xf32>
    %726 = vector.shape_cast %725 : vector<2x8xf32> to vector<2x8x1xf32>
    %727 = tpu.reciprocal %726 {approx = true} : vector<2x8x1xf32> -> vector<2x8x1xf32>
    %728 = vector.broadcast %727 : vector<2x8x1xf32> to vector<2x8x8xf32>
    %729 = arith.mulf %724, %728 : vector<2x8x8xf32>
    %730 = arith.truncf %729 : vector<2x8x8xf32> to vector<2x8x8xbf16>
    %731 = vector.extract_strided_slice %695 {offsets = [0, 0, 64], sizes = [2, 8, 64], strides = [1, 1, 1]} : vector<2x8x128xf32> to vector<2x8x64xf32>
    %732 = arith.truncf %731 : vector<2x8x64xf32> to vector<2x8x64xbf16>
    "tpu.trace_start"() <{level = 10 : i32, message = "bqk,bkd->bqd"}> : () -> ()
    %cst_102 = arith.constant dense<0.000000e+00> : vector<2x8x64xf32>
    %733 = tpu.matmul %730, %732, %cst_102 {dimension_numbers = #tpu.dot_dimension_numbers<[2], [1], [1], [2], [0, 0, 0, 1, 1, 2], [0], [0]>} : vector<2x8x8xbf16>, vector<2x8x64xbf16>, vector<2x8x64xf32> -> vector<2x8x64xf32>
    "tpu.trace_stop"() : () -> ()
    %734 = tpu.concatenate %714, %733 in 2 : vector<2x8x64xf32>, vector<2x8x64xf32> -> vector<2x8x128xf32>
    %735 = vector.shape_cast %734 : vector<2x8x128xf32> to vector<16x128xf32>
    %736 = arith.truncf %735 : vector<16x128xf32> to vector<16x128xbf16>
    %c0_103 = arith.constant 0 : index
    %c0_104 = arith.constant 0 : index
    %737 = vector.load %arg11[%c0_103, %c0_104] : memref<128x128xbf16, #tpu.memory_space<vmem>>, vector<128x128xbf16>
    %cst_105 = arith.constant dense<0.000000e+00> : vector<16x128xf32>
    %738 = tpu.matmul %736, %737, %cst_105 {dimension_numbers = #tpu.dot_dimension_numbers<[1], [0], [0], [1], [0, 0, 1, 1], [], []>} : vector<16x128xbf16>, vector<128x128xbf16>, vector<16x128xf32> -> vector<16x128xf32>
    %c0_106 = arith.constant 0 : index
    %c0_107 = arith.constant 0 : index
    %739 = vector.load %arg12[%c0_106, %c0_107] : memref<1x128xf32, #tpu.memory_space<vmem>>, vector<1x128xf32>
    %740 = vector.broadcast %739 : vector<1x128xf32> to vector<16x128xf32>
    %741 = arith.addf %738, %740 : vector<16x128xf32>
    %742 = arith.truncf %741 : vector<16x128xf32> to vector<16x128xbf16>
    %c0_108 = arith.constant 0 : index
    %c0_109 = arith.constant 0 : index
    %743 = vector.load %arg13[%c0_108, %c0_109] : memref<128x128xbf16, #tpu.memory_space<vmem>>, vector<128x128xbf16>
    %cst_110 = arith.constant dense<0.000000e+00> : vector<16x128xf32>
    %744 = tpu.matmul %742, %743, %cst_110 {dimension_numbers = #tpu.dot_dimension_numbers<[1], [0], [0], [1], [0, 0, 1, 1], [], []>} : vector<16x128xbf16>, vector<128x128xbf16>, vector<16x128xf32> -> vector<16x128xf32>
    %c0_111 = arith.constant 0 : index
    %c0_112 = arith.constant 0 : index
    %745 = vector.load %arg14[%c0_111, %c0_112] : memref<1x128xf32, #tpu.memory_space<vmem>>, vector<1x128xf32>
    %746 = vector.broadcast %745 : vector<1x128xf32> to vector<16x128xf32>
    %747 = arith.addf %744, %746 : vector<16x128xf32>
    %c0_113 = arith.constant 0 : index
    %c0_114 = arith.constant 0 : index
    %748 = vector.load %arg15[%c0_113, %c0_114] : memref<16x128xf32, #tpu.memory_space<vmem>>, vector<16x128xf32>
    tpu.vector_store %arg15[%c0_113, %c0_114], %747 {strides = array<i32>} : memref<16x128xf32, #tpu.memory_space<vmem>>, vector<16x128xf32>,
    return
  }
  func.func @transform_0(%arg0: i32) -> (i32, i32) {
    %c0_i32 = arith.constant 0 : i32
    %c0_i32_0 = arith.constant 0 : i32
    %c0_i32_1 = arith.constant 0 : i32
    return %c0_i32, %c0_i32_0 : i32, i32
  }
  func.func @transform_1(%arg0: i32) -> (i32, i32) {
    %c0_i32 = arith.constant 0 : i32
    %c0_i32_0 = arith.constant 0 : i32
    %c0_i32_1 = arith.constant 0 : i32
    return %c0_i32, %c0_i32_0 : i32, i32
  }
  func.func @transform_2(%arg0: i32) -> (i32, i32) {
    %c0_i32 = arith.constant 0 : i32
    %c0_i32_0 = arith.constant 0 : i32
    %c0_i32_1 = arith.constant 0 : i32
    return %c0_i32, %c0_i32_0 : i32, i32
  }
  func.func @transform_3(%arg0: i32) -> (i32, i32) {
    %c0_i32 = arith.constant 0 : i32
    %c0_i32_0 = arith.constant 0 : i32
    %c0_i32_1 = arith.constant 0 : i32
    return %c0_i32, %c0_i32_0 : i32, i32
  }
  func.func @transform_4(%arg0: i32) -> (i32, i32) {
    %c0_i32 = arith.constant 0 : i32
    %c0_i32_0 = arith.constant 0 : i32
    %c0_i32_1 = arith.constant 0 : i32
    return %c0_i32, %c0_i32_0 : i32, i32
  }
  func.func @transform_5(%arg0: i32) -> (i32, i32) {
    %c0_i32 = arith.constant 0 : i32
    %c0_i32_0 = arith.constant 0 : i32
    %c0_i32_1 = arith.constant 0 : i32
    return %c0_i32, %c0_i32_0 : i32, i32
  }
  func.func @transform_6(%arg0: i32) -> (i32, i32) {
    %c0_i32 = arith.constant 0 : i32
    %c0_i32_0 = arith.constant 0 : i32
    %c0_i32_1 = arith.constant 0 : i32
    return %c0_i32, %c0_i32_0 : i32, i32
  }
  func.func @transform_7(%arg0: i32) -> (i32, i32) {
    %c0_i32 = arith.constant 0 : i32
    %c0_i32_0 = arith.constant 0 : i32
    %c0_i32_1 = arith.constant 0 : i32
    return %c0_i32, %c0_i32_0 : i32, i32
  }
  func.func @transform_8(%arg0: i32) -> (i32, i32) {
    %c0_i32 = arith.constant 0 : i32
    %c0_i32_0 = arith.constant 0 : i32
    %c0_i32_1 = arith.constant 0 : i32
    return %c0_i32, %c0_i32_0 : i32, i32
  }
  func.func @transform_9(%arg0: i32) -> (i32, i32) {
    %c0_i32 = arith.constant 0 : i32
    %c0_i32_0 = arith.constant 0 : i32
    %c0_i32_1 = arith.constant 0 : i32
    return %c0_i32, %c0_i32_0 : i32, i32
  }
  func.func @transform_10(%arg0: i32) -> (i32, i32) {
    %c0_i32 = arith.constant 0 : i32
    %c0_i32_0 = arith.constant 0 : i32
    %c0_i32_1 = arith.constant 0 : i32
    return %c0_i32, %c0_i32_0 : i32, i32
  }
  func.func @transform_11(%arg0: i32) -> (i32, i32) {
    %c0_i32 = arith.constant 0 : i32
    %c0_i32_0 = arith.constant 0 : i32
    %c0_i32_1 = arith.constant 0 : i32
    return %c0_i32, %c0_i32_0 : i32, i32
  }
  func.func @transform_12(%arg0: i32) -> (i32, i32) {
    %c0_i32 = arith.constant 0 : i32
    %c0_i32_0 = arith.constant 0 : i32
    %c0_i32_1 = arith.constant 0 : i32
    return %c0_i32, %c0_i32_0 : i32, i32
  }
  func.func @transform_13(%arg0: i32) -> (i32, i32) {
    %c0_i32 = arith.constant 0 : i32
    %c0_i32_0 = arith.constant 0 : i32
    %c0_i32_1 = arith.constant 0 : i32
    return %c0_i32, %c0_i32_0 : i32, i32
  }
  func.func @transform_14(%arg0: i32) -> (i32, i32) {
    %c0_i32 = arith.constant 0 : i32
    %c0_i32_0 = arith.constant 0 : i32
    %c0_i32_1 = arith.constant 0 : i32
    return %c0_i32, %c0_i32_0 : i32, i32
  }
}

</mosaic_0001>

<llo_original>
// kernel: model_ee_forward.1
$region0: #{model_ee_forward.1}
  #allocation0 [shape = 'u32[]', space=smem, size = 0x4, offset = 0x4, fixed_abs, tag = 'smem constant byte address 0x4 - core index']
  #allocation1 [shape = 'u32[144,128]{1,0:T(1,128)}', space=vmem, size = 0x12000, scoped, tag = 'internal scratch']
  %s0 = inlined_call_operand.vmem [shape: s32[16,1], index: 0, kind: input, shape index: {}]
  %s1 = inlined_call_operand.vmem [shape: bf16[50,32], index: 1, kind: input, shape index: {}]
  %s2 = inlined_call_operand.vmem [shape: bf16[32,512], index: 2, kind: input, shape index: {}]
  %s3 = inlined_call_operand.hbm [shape: bf16[128,512], index: 3, kind: input, shape index: {}]
  %s4 = inlined_call_operand.vmem [shape: f32[1,512], index: 4, kind: input, shape index: {}]
  %s5 = inlined_call_operand.hbm [shape: bf16[128,512], index: 5, kind: input, shape index: {}]
  %s6 = inlined_call_operand.hbm [shape: bf16[128,512], index: 6, kind: input, shape index: {}]
  %s7 = inlined_call_operand.vmem [shape: f32[1,512], index: 7, kind: input, shape index: {}]
  %s8 = inlined_call_operand.hbm [shape: bf16[128,384], index: 8, kind: input, shape index: {}]
  %s9 = inlined_call_operand.vmem [shape: f32[1,384], index: 9, kind: input, shape index: {}]
  %s10 = inlined_call_operand.hbm [shape: bf16[128,128], index: 10, kind: input, shape index: {}]
  %s11 = inlined_call_operand.vmem [shape: f32[1,128], index: 11, kind: input, shape index: {}]
  %s12 = inlined_call_operand.hbm [shape: bf16[128,128], index: 12, kind: input, shape index: {}]
  %s13 = inlined_call_operand.vmem [shape: f32[1,128], index: 13, kind: input, shape index: {}]
  %s14 = inlined_call_operand.vmem [shape: f32[16,128], index: 14, kind: output, shape index: {}]
  %s15 = sld [smem:[#allocation0]]
  $region90: #{model_ee_forward.1} parent=0
    _
  %s17 = ssub.s32 1, %s15
  %s18 = scalar_select 0, %s17, %s15
  $region1: #{model_ee_forward.1} parent=0
    #allocation2 [shape = 'u8[131072]{0}', space=vmem, size = 0x20000, scoped, tag = 'input window, operand 3, single buffered']
    #allocation3 [shape = 's32[1]{0}', space=sflag, size = 0x4, scoped, tag = 'scoped memory for model_ee_forward.1']
    #allocation4 [shape = 'u8[131072]{0}', space=vmem, size = 0x20000, scoped, tag = 'input window, operand 5, single buffered']
    #allocation5 [shape = 's32[1]{0}', space=sflag, size = 0x4, scoped, tag = 'scoped memory for model_ee_forward.1']
    #allocation6 [shape = 'u8[131072]{0}', space=vmem, size = 0x20000, scoped, tag = 'input window, operand 6, single buffered']
    #allocation7 [shape = 'u8[98304]{0}', space=vmem, size = 0x18000, scoped, tag = 'input window, operand 8, single buffered']
    #allocation8 [shape = 's32[1]{0}', space=sflag, size = 0x4, scoped, tag = 'scoped memory for model_ee_forward.1']
    #allocation9 [shape = 'u8[32768]{0}', space=vmem, size = 0x8000, scoped, tag = 'input window, operand 10, single buffered']
    #allocation10 [shape = 'u8[32768]{0}', space=vmem, size = 0x8000, scoped, tag = 'input window, operand 12, single buffered']
    #allocation11 [shape = 's32[1]{0}', space=sflag, size = 0x4, scoped, tag = 'scoped memory for model_ee_forward.1']
    %19 = vsyncpa [#allocation3], 0
    %20 = vsyncpa [#allocation5], 0
    %21 = vsyncpa [#allocation8], 0
    %22 = vsyncpa [#allocation11], 0
    // Predicated region
    $region2: #{model_ee_forward.1} parent=1 // pred_check
      _
    $region3: #{model_ee_forward.1} parent=1 // pred_check_branch
      %24 = sbr.rel (0) target = $region5
    $region4: #{model_ee_forward.1} parent=1 // pred_region
      _
    $region5: #{model_ee_forward.1} parent=1 // pred_fallthru
      _
    // Predicated region
    $region6: #{model_ee_forward.1} parent=1 // pred_check
      _
    $region7: #{model_ee_forward.1} parent=1 // pred_check_branch
      %26 = sbr.rel (0) target = $region9
    $region8: #{model_ee_forward.1} parent=1 // pred_region
      _
    $region9: #{model_ee_forward.1} parent=1 // pred_fallthru
      _
    // Predicated region
    $region10: #{model_ee_forward.1} parent=1 // pred_check
      _
    $region11: #{model_ee_forward.1} parent=1 // pred_check_branch
      %28 = sbr.rel (0) target = $region13
    $region12: #{model_ee_forward.1} parent=1 // pred_region
      _
    $region13: #{model_ee_forward.1} parent=1 // pred_fallthru
      _
    // Predicated region
    $region14: #{model_ee_forward.1} parent=1 // pred_check
      _
    $region15: #{model_ee_forward.1} parent=1 // pred_check_branch
      %30 = sbr.rel (0) target = $region17
    $region16: #{model_ee_forward.1} parent=1 // pred_region
      %s32 = ssub.s32 4096, 4096
      %33 = vsyncadd [#allocation3], %s32
      %s34 = sshll.u32 [#allocation2], 4
      %s35 = int_to_ptr.vmem [resolvable:$true] %s34
      %40 = dma.hbm_to_vmem [thread:$0]  %s3, 4096, %s35, [#allocation3], 256, 256, 16
    $region17: #{model_ee_forward.1} parent=1 // pred_fallthru
      _
    // Predicated region
    $region18: #{model_ee_forward.1} parent=1 // pred_check
      _
    $region19: #{model_ee_forward.1} parent=1 // pred_check_branch
      %42 = sbr.rel (0) target = $region21
    $region20: #{model_ee_forward.1} parent=1 // pred_region
      _
    $region21: #{model_ee_forward.1} parent=1 // pred_fallthru
      _
    // Predicated region
    $region22: #{model_ee_forward.1} parent=1 // pred_check
      _
    $region23: #{model_ee_forward.1} parent=1 // pred_check_branch
      %44 = sbr.rel (0) target = $region25
    $region24: #{model_ee_forward.1} parent=1 // pred_region
      %s46 = ssub.s32 4096, 4096
      %47 = vsyncadd [#allocation5], %s46
      %s48 = sshll.u32 [#allocation4], 4
      %s49 = int_to_ptr.vmem [resolvable:$true] %s48
      %54 = dma.hbm_to_vmem [thread:$0]  %s5, 4096, %s49, [#allocation5], 256, 256, 16
    $region25: #{model_ee_forward.1} parent=1 // pred_fallthru
      _
    // Predicated region
    $region26: #{model_ee_forward.1} parent=1 // pred_check
      _
    $region27: #{model_ee_forward.1} parent=1 // pred_check_branch
      %56 = sbr.rel (0) target = $region29
    $region28: #{model_ee_forward.1} parent=1 // pred_region
      %s58 = ssub.s32 4096, 4096
      %59 = vsyncadd [#allocation5], %s58
      %s60 = sshll.u32 [#allocation6], 4
      %s61 = int_to_ptr.vmem [resolvable:$true] %s60
      %66 = dma.hbm_to_vmem [thread:$0]  %s6, 4096, %s61, [#allocation5], 256, 256, 16
    $region29: #{model_ee_forward.1} parent=1 // pred_fallthru
      _
    // Predicated region
    $region30: #{model_ee_forward.1} parent=1 // pred_check
      _
    $region31: #{model_ee_forward.1} parent=1 // pred_check_branch
      %68 = sbr.rel (0) target = $region33
    $region32: #{model_ee_forward.1} parent=1 // pred_region
      _
    $region33: #{model_ee_forward.1} parent=1 // pred_fallthru
      _
    // Predicated region
    $region34: #{model_ee_forward.1} parent=1 // pred_check
      _
    $region35: #{model_ee_forward.1} parent=1 // pred_check_branch
      %70 = sbr.rel (0) target = $region37
    $region36: #{model_ee_forward.1} parent=1 // pred_region
      %s72 = ssub.s32 3072, 3072
      %73 = vsyncadd [#allocation8], %s72
      %s74 = sshll.u32 [#allocation7], 4
      %s75 = int_to_ptr.vmem [resolvable:$true] %s74
      %80 = dma.hbm_to_vmem [thread:$0]  %s8, 3072, %s75, [#allocation8], 192, 192, 12
    $region37: #{model_ee_forward.1} parent=1 // pred_fallthru
      _
    // Predicated region
    $region38: #{model_ee_forward.1} parent=1 // pred_check
      _
    $region39: #{model_ee_forward.1} parent=1 // pred_check_branch
      %82 = sbr.rel (0) target = $region41
    $region40: #{model_ee_forward.1} parent=1 // pred_region
      _
    $region41: #{model_ee_forward.1} parent=1 // pred_fallthru
      _
    // Predicated region
    $region42: #{model_ee_forward.1} parent=1 // pred_check
      _
    $region43: #{model_ee_forward.1} parent=1 // pred_check_branch
      %84 = sbr.rel (0) target = $region45
    $region44: #{model_ee_forward.1} parent=1 // pred_region
      %s86 = ssub.s32 1024, 1024
      %87 = vsyncadd [#allocation8], %s86
      %s88 = sshll.u32 [#allocation9], 4
      %s89 = int_to_ptr.vmem [resolvable:$true] %s88
      %94 = dma.hbm_to_vmem [thread:$0]  %s10, 1024, %s89, [#allocation8], 64, 64, 4
    $region45: #{model_ee_forward.1} parent=1 // pred_fallthru
      _
    // Predicated region
    $region46: #{model_ee_forward.1} parent=1 // pred_check
      _
    $region47: #{model_ee_forward.1} parent=1 // pred_check_branch
      %96 = sbr.rel (0) target = $region49
    $region48: #{model_ee_forward.1} parent=1 // pred_region
      _
    $region49: #{model_ee_forward.1} parent=1 // pred_fallthru
      _
    // Predicated region
    $region50: #{model_ee_forward.1} parent=1 // pred_check
      _
    $region51: #{model_ee_forward.1} parent=1 // pred_check_branch
      %98 = sbr.rel (0) target = $region53
    $region52: #{model_ee_forward.1} parent=1 // pred_region
      %s100 = ssub.s32 1024, 1024
      %101 = vsyncadd [#allocation11], %s100
      %s102 = sshll.u32 [#allocation10], 4
      %s103 = int_to_ptr.vmem [resolvable:$true] %s102
      %108 = dma.hbm_to_vmem [thread:$0]  %s12, 1024, %s103, [#allocation11], 64, 64, 4
    $region53: #{model_ee_forward.1} parent=1 // pred_fallthru
      _
    // Predicated region
    $region54: #{model_ee_forward.1} parent=1 // pred_check
      _
    $region55: #{model_ee_forward.1} parent=1 // pred_check_branch
      %110 = sbr.rel (0) target = $region57
    $region56: #{model_ee_forward.1} parent=1 // pred_region
      _
    $region57: #{model_ee_forward.1} parent=1 // pred_fallthru
      _
    // Predicated region
    $region58: #{model_ee_forward.1} parent=1 // pred_check
      _
    $region59: #{model_ee_forward.1} parent=1 // pred_check_branch
      %112 = sbr.rel (0) target = $region61
    $region60: #{model_ee_forward.1} parent=1 // pred_region
      %113 = dma.done [#allocation3], 4096
    $region61: #{model_ee_forward.1} parent=1 // pred_fallthru
      _
    // Predicated region
    $region62: #{model_ee_forward.1} parent=1 // pred_check
      _
    $region63: #{model_ee_forward.1} parent=1 // pred_check_branch
      %115 = sbr.rel (0) target = $region65
    $region64: #{model_ee_forward.1} parent=1 // pred_region
      %116 = dma.done [#allocation5], 4096
    $region65: #{model_ee_forward.1} parent=1 // pred_fallthru
      _
    // Predicated region
    $region66: #{model_ee_forward.1} parent=1 // pred_check
      _
    $region67: #{model_ee_forward.1} parent=1 // pred_check_branch
      %118 = sbr.rel (0) target = $region69
    $region68: #{model_ee_forward.1} parent=1 // pred_region
      %119 = dma.done [#allocation5], 4096
    $region69: #{model_ee_forward.1} parent=1 // pred_fallthru
      _
    // Predicated region
    $region70: #{model_ee_forward.1} parent=1 // pred_check
      _
    $region71: #{model_ee_forward.1} parent=1 // pred_check_branch
      %121 = sbr.rel (0) target = $region73
    $region72: #{model_ee_forward.1} parent=1 // pred_region
      %122 = dma.done [#allocation8], 3072
    $region73: #{model_ee_forward.1} parent=1 // pred_fallthru
      _
    // Predicated region
    $region74: #{model_ee_forward.1} parent=1 // pred_check
      _
    $region75: #{model_ee_forward.1} parent=1 // pred_check_branch
      %124 = sbr.rel (0) target = $region77
    $region76: #{model_ee_forward.1} parent=1 // pred_region
      %125 = dma.done [#allocation8], 1024
    $region77: #{model_ee_forward.1} parent=1 // pred_fallthru
      _
    // Predicated region
    $region78: #{model_ee_forward.1} parent=1 // pred_check
      _
    $region79: #{model_ee_forward.1} parent=1 // pred_check_branch
      %127 = sbr.rel (0) target = $region81
    $region80: #{model_ee_forward.1} parent=1 // pred_region
      %128 = dma.done [#allocation11], 1024
    $region81: #{model_ee_forward.1} parent=1 // pred_fallthru
      _
    %v130 = vld [vmem:[%s0] sm:$0xff]
    %v131 = vld [vmem:[%s0 + $0x8] sm:$0xff]
    %v132 = vlaneseq
    %v133 = vand.u32 %v132, 127
    %134 = vset.pattern.permute.xlu0 0
    %135 = vperm.xlu0 %134, %v130
    %v136 = vpop.permute.xlu0 %135
    %137 = vset.pattern.permute.xlu0 0
    %138 = vperm.xlu0 %137, %v131
    %v139 = vpop.permute.xlu0 %138
    %vm140 = vcmp.eq.s32.totalorder %v133, %v136
    %vm141 = vcmp.eq.s32.totalorder %v133, %v139
    %v142 = vsel %vm140, 1.0, 0.0
    %v143 = vsel %vm141, 1.0, 0.0
    %v144 = vpack.c.bf16 %v143, %v142
    %v145 = vld [vmem:[%s1] sm:$0xf]
    %v146 = vld [vmem:[%s1 + $0x4] sm:$0xf]
    %v147 = vld [vmem:[%s1 + $0x8] sm:$0xf]
    %v148 = vld [vmem:[%s1 + $0xc] sm:$0xf]
    %v149 = vld [vmem:[%s1 + $0x10] sm:$0xf]
    %v150 = vld [vmem:[%s1 + $0x14] sm:$0xf]
    %v151 = vld [vmem:[%s1 + $0x18] sm:$0x1]
    %v159 = vunpack.c.l.b16 %v145
    %v160 = vunpack.c.l.b16 %v146
    %v161 = vunpack.c.l.b16 %v147
    %v162 = vunpack.c.l.b16 %v148
    %v163 = vunpack.c.l.b16 %v149
    %v164 = vunpack.c.l.b16 %v150
    %v165 = vunpack.c.l.b16 %v151
    %v166 = vpack.c.b16 %v160, %v159
    %v167 = vpack.c.b16 %v162, %v161
    %v168 = vpack.c.b16 %v164, %v163
    %v169 = vpack.c.b16 %v165, %v165
    %vm173 = vcmask 408576
    %v175 = vsel %vm173, %v144, 0
    %vm177 = vcmask 1040384
    %v179 = vsel %vm177, %v169, 0
    %181 = vmatprep.subr.bf16.mxu0 0
    %182 = vmatpush1.bf16.msra.mxu0 %v166
    %183 = vmatprep.subr.bf16.mxu0 0
    %184 = vmatpush1.bf16.msra.mxu0 %v167
    %185 = vmatprep.subr.bf16.mxu0 0
    %186 = vmatpush1.bf16.msra.mxu0 %v168
    %187 = vmatprep.subr.bf16.mxu0 0
    %188 = vmatpush1.bf16.msra.mxu0 %v179
    %189 = vmatprep.subr.bf16.mxu0 0
    %190 = vmatpush1.bf16.msra.mxu0 0
    %191 = vmatprep.subr.bf16.mxu0 0
    %192 = vmatpush1.bf16.msra.mxu0 0
    %193 = vmatprep.subr.bf16.mxu0 0
    %194 = vmatpush1.bf16.msra.mxu0 0
    %195 = vmatprep.subr.bf16.mxu0 0
    %196 = vmatpush1.bf16.msra.mxu0 0
    %197 = vmatprep.subr.bf16.mxu0 0
    %198 = vmatpush1.bf16.msra.mxu0 0
    %199 = vmatprep.subr.bf16.mxu0 0
    %200 = vmatpush1.bf16.msra.mxu0 0
    %201 = vmatprep.subr.bf16.mxu0 0
    %202 = vmatpush1.bf16.msra.mxu0 0
    %203 = vmatprep.subr.bf16.mxu0 0
    %204 = vmatpush1.bf16.msra.mxu0 0
    %205 = vmatprep.subr.bf16.mxu0 0
    %206 = vmatpush1.bf16.msra.mxu0 0
    %207 = vmatprep.subr.bf16.mxu0 0
    %208 = vmatpush1.bf16.msra.mxu0 0
    %209 = vmatprep.subr.bf16.mxu0 0
    %210 = vmatpush1.bf16.msra.mxu0 0
    %211 = vmatprep.subr.bf16.mxu0 0
    %212 = vmatpush1.bf16.msra.mxu0 0
    %213 = vmatprep.mubr.bf16.mxu0 0
    %214 = vmatmul.mubr.bf16.gmra.mrb[0].mxu0 %v175
    %v215 = vpop.f32.mrb[0].mxu0
    %v216 = vadd.f32 0.0, %v215
    %v217 = vpop.f32.mrb[0].mxu0
    %v218 = vpop.f32.mrb[0].mxu0
    %v219 = vadd.f32 0.0, %v218
    %v220 = vpop.f32.mrb[0].mxu0
    %221 = vdwg.mxu0
    %v222 = vadd.s32 %v133, 128
    %v223 = vadd.s32 %v133, 256
    %v224 = vadd.s32 %v133, 384
    %vm225 = vcmp.lt.s32.totalorder %v133, 0
    %v226 = vsub.s32 0, %v133
    %v227 = vsel %vm225, %v226, %v133
    %v228 = vshrl.u32 %v227, 7
    %v229 = vand.u32 %v227, 127
    %v230 = vsub.s32 0, %v229
    %v231 = vsel %vm225, %v230, %v229
    %vm232 = vcmp.lt.s32.totalorder %v222, 0
    %v233 = vsub.s32 0, %v222
    %v234 = vsel %vm232, %v233, %v222
    %v235 = vshrl.u32 %v234, 7
    %v236 = vand.u32 %v234, 127
    %v237 = vsub.s32 0, %v236
    %v238 = vsel %vm232, %v237, %v236
    %vm239 = vcmp.lt.s32.totalorder %v223, 0
    %v240 = vsub.s32 0, %v223
    %v241 = vsel %vm239, %v240, %v223
    %v242 = vshrl.u32 %v241, 7
    %v243 = vand.u32 %v241, 127
    %v244 = vsub.s32 0, %v243
    %v245 = vsel %vm239, %v244, %v243
    %vm246 = vcmp.lt.s32.totalorder %v224, 0
    %v247 = vsub.s32 0, %v224
    %v248 = vsel %vm246, %v247, %v224
    %v249 = vshrl.u32 %v248, 7
    %v250 = vand.u32 %v248, 127
    %v251 = vsub.s32 0, %v250
    %v252 = vsel %vm246, %v251, %v250
    %vm253 = vcmp.ne.s32.totalorder %v231, 0
    %vm254 = vcmp.ne.s32.totalorder %v238, 0
    %vm255 = vcmp.ne.s32.totalorder %v245, 0
    %vm256 = vcmp.ne.s32.totalorder %v252, 0
    %vm257 = vcmp.lt.s32.totalorder %v231, 0
    %vm258 = vcmp.lt.s32.totalorder %v238, 0
    %vm259 = vcmp.lt.s32.totalorder %v245, 0
    %vm260 = vcmp.lt.s32.totalorder %v252, 0
    %vm261 = vmand %vm257, %vm253
    %vm262 = vmand %vm258, %vm254
    %vm263 = vmand %vm259, %vm255
    %vm264 = vmand %vm260, %vm256
    %v265 = vadd.s32 %v231, 128
    %v266 = vadd.s32 %v238, 128
    %v267 = vadd.s32 %v245, 128
    %v268 = vadd.s32 %v252, 128
    %v269 = vsel %vm261, %v265, %v231
    %v270 = vsel %vm262, %v266, %v238
    %v271 = vsel %vm263, %v267, %v245
    %v272 = vsel %vm264, %v268, %v252
    %vm273 = vcmp.lt.s32.totalorder %v269, 64
    %vm274 = vcmp.lt.s32.totalorder %v270, 64
    %vm275 = vcmp.lt.s32.totalorder %v271, 64
    %vm276 = vcmp.lt.s32.totalorder %v272, 64
    %v277 = vld [vmem:[%s2] sm:$0xff]
    %v278 = vld [vmem:[%s2 + $0x8] sm:$0xff]
    %v279 = vld [vmem:[%s2 + $0x10] sm:$0xff]
    %v280 = vld [vmem:[%s2 + $0x18] sm:$0xff]
    %v281 = vld [vmem:[%s2 + $0x20] sm:$0xff]
    %v282 = vld [vmem:[%s2 + $0x28] sm:$0xff]
    %v283 = vld [vmem:[%s2 + $0x30] sm:$0xff]
    %v284 = vld [vmem:[%s2 + $0x38] sm:$0xff]
    %v285 = vld [vmem:[#allocation2] sm:$0xff]
    %v286 = vld [vmem:[#allocation2 + $0x8] sm:$0xff]
    %v287 = vld [vmem:[#allocation2 + $0x10] sm:$0xff]
    %v288 = vld [vmem:[#allocation2 + $0x18] sm:$0xff]
    %v289 = vld [vmem:[#allocation2 + $0x20] sm:$0xff]
    %v290 = vld [vmem:[#allocation2 + $0x28] sm:$0xff]
    %v291 = vld [vmem:[#allocation2 + $0x30] sm:$0xff]
    %v292 = vld [vmem:[#allocation2 + $0x38] sm:$0xff]
    %v293 = vld [vmem:[#allocation2 + $0x40] sm:$0xff]
    %v294 = vld [vmem:[#allocation2 + $0x48] sm:$0xff]
    %v295 = vld [vmem:[#allocation2 + $0x50] sm:$0xff]
    %v296 = vld [vmem:[#allocation2 + $0x58] sm:$0xff]
    %v297 = vld [vmem:[#allocation2 + $0x60] sm:$0xff]
    %v298 = vld [vmem:[#allocation2 + $0x68] sm:$0xff]
    %v299 = vld [vmem:[#allocation2 + $0x70] sm:$0xff]
    %v300 = vld [vmem:[#allocation2 + $0x78] sm:$0xff]
    %v301 = vld [vmem:[#allocation2 + $0x80] sm:$0xff]
    %v302 = vld [vmem:[#allocation2 + $0x88] sm:$0xff]
    %v303 = vld [vmem:[#allocation2 + $0x90] sm:$0xff]
    %v304 = vld [vmem:[#allocation2 + $0x98] sm:$0xff]
    %v305 = vld [vmem:[#allocation2 + $0xa0] sm:$0xff]
    %v306 = vld [vmem:[#allocation2 + $0xa8] sm:$0xff]
    %v307 = vld [vmem:[#allocation2 + $0xb0] sm:$0xff]
    %v308 = vld [vmem:[#allocation2 + $0xb8] sm:$0xff]
    %v309 = vld [vmem:[#allocation2 + $0xc0] sm:$0xff]
    %v310 = vld [vmem:[#allocation2 + $0xc8] sm:$0xff]
    %v311 = vld [vmem:[#allocation2 + $0xd0] sm:$0xff]
    %v312 = vld [vmem:[#allocation2 + $0xd8] sm:$0xff]
    %v313 = vld [vmem:[#allocation2 + $0xe0] sm:$0xff]
    %v314 = vld [vmem:[#allocation2 + $0xe8] sm:$0xff]
    %v315 = vld [vmem:[#allocation2 + $0xf0] sm:$0xff]
    %v316 = vld [vmem:[#allocation2 + $0xf8] sm:$0xff]
    %v317 = vld [vmem:[%s4] sm:$0xf]
    %v318 = vpack.c.bf16 %v219, %v216
    %v320 = vlaneseq
    %v321 = vshrl.u32 %v320, 7
    %v322 = vsub.s32 0, %v321
    %v323 = vrot.slane %v317, %v322
    %v324 = vlaneseq
    %v325 = vshrl.u32 %v324, 7
    %v326 = vsub.s32 1, %v325
    %v327 = vrot.slane %v317, %v326
    %v328 = vlaneseq
    %v329 = vshrl.u32 %v328, 7
    %v330 = vsub.s32 2, %v329
    %v331 = vrot.slane %v317, %v330
    %v332 = vlaneseq
    %v333 = vshrl.u32 %v332, 7
    %v334 = vsub.s32 3, %v333
    %v335 = vrot.slane %v317, %v334
    %v348 = vunpack.c.l.b16 %v277
    %v349 = vunpack.c.h.b16 %v277
    %v350 = vunpack.c.l.b16 %v278
    %v351 = vunpack.c.h.b16 %v278
    %v352 = vunpack.c.l.b16 %v279
    %v353 = vunpack.c.h.b16 %v279
    %v354 = vunpack.c.l.b16 %v280
    %v355 = vunpack.c.h.b16 %v280
    %v356 = vunpack.c.l.b16 %v281
    %v357 = vunpack.c.h.b16 %v281
    %v358 = vunpack.c.l.b16 %v282
    %v359 = vunpack.c.h.b16 %v282
    %v360 = vunpack.c.l.b16 %v283
    %v361 = vunpack.c.h.b16 %v283
    %v362 = vunpack.c.l.b16 %v284
    %v363 = vunpack.c.h.b16 %v284
    %v364 = vpack.c.b16 %v352, %v348
    %v365 = vpack.c.b16 %v353, %v349
    %v366 = vpack.c.b16 %v354, %v350
    %v367 = vpack.c.b16 %v355, %v351
    %v368 = vpack.c.b16 %v360, %v356
    %v369 = vpack.c.b16 %v361, %v357
    %v370 = vpack.c.b16 %v362, %v358
    %v371 = vpack.c.b16 %v363, %v359
    %vm380 = vcmask 261120
    %v382 = vsel %vm380, %v318, 0
    %384 = vmatprep.subr.bf16.mxu0 %v365
    %385 = vmatpush1.bf16.msra.mxu0 %v364
    %386 = vmatprep.subr.bf16.mxu0 %v369
    %387 = vmatpush1.bf16.msra.mxu0 %v368
    %388 = vmatprep.subr.bf16.mxu0 0
    %389 = vmatpush1.bf16.msra.mxu0 0
    %390 = vmatprep.subr.bf16.mxu0 0
    %391 = vmatpush1.bf16.msra.mxu0 0
    %392 = vmatprep.subr.bf16.mxu0 0
    %393 = vmatpush1.bf16.msra.mxu0 0
    %394 = vmatprep.subr.bf16.mxu0 0
    %395 = vmatpush1.bf16.msra.mxu0 0
    %396 = vmatprep.subr.bf16.mxu0 0
    %397 = vmatpush1.bf16.msra.mxu0 0
    %398 = vmatprep.subr.bf16.mxu0 0
    %399 = vmatpush1.bf16.msra.mxu0 0
    %400 = vmatprep.subr.bf16.mxu0 0
    %401 = vmatpush1.bf16.msra.mxu0 0
    %402 = vmatprep.subr.bf16.mxu0 0
    %403 = vmatpush1.bf16.msra.mxu0 0
    %404 = vmatprep.subr.bf16.mxu0 0
    %405 = vmatpush1.bf16.msra.mxu0 0
    %406 = vmatprep.subr.bf16.mxu0 0
    %407 = vmatpush1.bf16.msra.mxu0 0
    %408 = vmatprep.subr.bf16.mxu0 0
    %409 = vmatpush1.bf16.msra.mxu0 0
    %410 = vmatprep.subr.bf16.mxu0 0
    %411 = vmatpush1.bf16.msra.mxu0 0
    %412 = vmatprep.subr.bf16.mxu0 0
    %413 = vmatpush1.bf16.msra.mxu0 0
    %414 = vmatprep.subr.bf16.mxu0 0
    %415 = vmatpush1.bf16.msra.mxu0 0
    %416 = vmatprep.mubr.bf16.mxu0 0
    %417 = vmatmul.mubr.bf16.gmra.mrb[0].mxu0 %v382
    %v418 = vpop.f32.mrb[0].mxu0
    %v419 = vadd.f32 %v323, %v418
    %v420 = vpop.f32.mrb[0].mxu0
    %v421 = vadd.f32 %v327, %v420
    %v422 = vpop.f32.mrb[0].mxu0
    %v423 = vadd.f32 %v323, %v422
    %v424 = vpop.f32.mrb[0].mxu0
    %v425 = vadd.f32 %v327, %v424
    %426 = vdwg.mxu0
    %427 = vmatprep.subr.bf16.mxu0 %v367
    %428 = vmatpush1.bf16.msra.mxu0 %v366
    %429 = vmatprep.subr.bf16.mxu0 %v371
    %430 = vmatpush1.bf16.msra.mxu0 %v370
    %431 = vmatprep.subr.bf16.mxu0 0
    %432 = vmatpush1.bf16.msra.mxu0 0
    %433 = vmatprep.subr.bf16.mxu0 0
    %434 = vmatpush1.bf16.msra.mxu0 0
    %435 = vmatprep.subr.bf16.mxu0 0
    %436 = vmatpush1.bf16.msra.mxu0 0
    %437 = vmatprep.subr.bf16.mxu0 0
    %438 = vmatpush1.bf16.msra.mxu0 0
    %439 = vmatprep.subr.bf16.mxu0 0
    %440 = vmatpush1.bf16.msra.mxu0 0
    %441 = vmatprep.subr.bf16.mxu0 0
    %442 = vmatpush1.bf16.msra.mxu0 0
    %443 = vmatprep.subr.bf16.mxu0 0
    %444 = vmatpush1.bf16.msra.mxu0 0
    %445 = vmatprep.subr.bf16.mxu0 0
    %446 = vmatpush1.bf16.msra.mxu0 0
    %447 = vmatprep.subr.bf16.mxu0 0
    %448 = vmatpush1.bf16.msra.mxu0 0
    %449 = vmatprep.subr.bf16.mxu0 0
    %450 = vmatpush1.bf16.msra.mxu0 0
    %451 = vmatprep.subr.bf16.mxu0 0
    %452 = vmatpush1.bf16.msra.mxu0 0
    %453 = vmatprep.subr.bf16.mxu0 0
    %454 = vmatpush1.bf16.msra.mxu0 0
    %455 = vmatprep.subr.bf16.mxu0 0
    %456 = vmatpush1.bf16.msra.mxu0 0
    %457 = vmatprep.subr.bf16.mxu0 0
    %458 = vmatpush1.bf16.msra.mxu0 0
    %459 = vmatprep.mubr.bf16.mxu0 0
    %460 = vmatmul.mubr.bf16.gmra.mrb[0].mxu0 %v382
    %v461 = vpop.f32.mrb[0].mxu0
    %v462 = vadd.f32 %v331, %v461
    %v463 = vpop.f32.mrb[0].mxu0
    %v464 = vadd.f32 %v335, %v463
    %v465 = vpop.f32.mrb[0].mxu0
    %v466 = vadd.f32 %v331, %v465
    %v467 = vpop.f32.mrb[0].mxu0
    %v468 = vadd.f32 %v335, %v467
    %469 = vdwg.mxu0
    %v478 = vcombine.low %v419, %v421
    %v479 = vcombine.high %v419, %v421
    %v480 = vcombine.low %v462, %v464
    %v481 = vcombine.high %v462, %v464
    %v483 = vunpack.c.l.s4 1983009808
    %v484 = vunpack.c.0.s8 %v483
    %v485 = vlaneseq
    %v486 = vshrl.u32 %v485, 7
    %v487 = vsub.s32 %v484, %v486
    %v488 = vrot.slane %v478, %v487
    %v490 = vunpack.c.l.s4 1983009808
    %v491 = vunpack.c.0.s8 %v490
    %v492 = vlaneseq
    %v493 = vshrl.u32 %v492, 7
    %v494 = vsub.s32 %v491, %v493
    %v495 = vrot.slane %v479, %v494
    %v497 = vunpack.c.l.s4 1983009808
    %v498 = vunpack.c.0.s8 %v497
    %v499 = vlaneseq
    %v500 = vshrl.u32 %v499, 7
    %v501 = vsub.s32 %v498, %v500
    %v502 = vrot.slane %v480, %v501
    %v504 = vunpack.c.l.s4 1983009808
    %v505 = vunpack.c.0.s8 %v504
    %v506 = vlaneseq
    %v507 = vshrl.u32 %v506, 7
    %v508 = vsub.s32 %v505, %v507
    %v509 = vrot.slane %v481, %v508
    %v510 = vcombine.low %v488, %v502
    %v511 = vcombine.high %v488, %v502
    %v512 = vcombine.low %v495, %v509
    %v513 = vcombine.high %v495, %v509
    %v514 = vcombine.low %v423, %v425
    %v515 = vcombine.high %v423, %v425
    %v516 = vcombine.low %v466, %v468
    %v517 = vcombine.high %v466, %v468
    %v519 = vunpack.c.l.s4 1983009808
    %v520 = vunpack.c.0.s8 %v519
    %v521 = vlaneseq
    %v522 = vshrl.u32 %v521, 7
    %v523 = vsub.s32 %v520, %v522
    %v524 = vrot.slane %v514, %v523
    %v526 = vunpack.c.l.s4 1983009808
    %v527 = vunpack.c.0.s8 %v526
    %v528 = vlaneseq
    %v529 = vshrl.u32 %v528, 7
    %v530 = vsub.s32 %v527, %v529
    %v531 = vrot.slane %v515, %v530
    %v533 = vunpack.c.l.s4 1983009808
    %v534 = vunpack.c.0.s8 %v533
    %v535 = vlaneseq
    %v536 = vshrl.u32 %v535, 7
    %v537 = vsub.s32 %v534, %v536
    %v538 = vrot.slane %v516, %v537
    %v540 = vunpack.c.l.s4 1983009808
    %v541 = vunpack.c.0.s8 %v540
    %v542 = vlaneseq
    %v543 = vshrl.u32 %v542, 7
    %v544 = vsub.s32 %v541, %v543
    %v545 = vrot.slane %v517, %v544
    %v546 = vcombine.low %v524, %v538
    %v547 = vcombine.high %v524, %v538
    %v548 = vcombine.low %v531, %v545
    %v549 = vcombine.high %v531, %v545
    %v550 = vsel %vm273, 1, 0
    %v551 = vsel %vm274, 1, 0
    %v552 = vsel %vm275, 1, 0
    %v553 = vsel %vm276, 1, 0
    %vm554 = vcmp.eq.s32.totalorder %v550, 1
    %vm555 = vcmp.eq.s32.totalorder %v551, 1
    %vm556 = vcmp.eq.s32.totalorder %v552, 1
    %vm557 = vcmp.eq.s32.totalorder %v553, 1
    %v558 = vcombine.high %v510, %v510
    %v560 = vunpack.c.l.s4 1983009808
    %v561 = vunpack.c.0.s8 %v560
    %v562 = vlaneseq
    %v563 = vshrl.u32 %v562, 7
    %v564 = vsub.s32 %v561, %v563
    %v565 = vrot.slane %v510, %v564
    %v567 = vunpack.c.l.s4 1983009808
    %v568 = vunpack.c.0.s8 %v567
    %v569 = vlaneseq
    %v570 = vshrl.u32 %v569, 7
    %v571 = vsub.s32 %v568, %v570
    %v572 = vrot.slane %v558, %v571
    %v573 = vcombine.high %v565, %v565
    %v574 = vcombine.high %v572, %v572
    %v579 = vcombine.high %v549, %v549
    %v581 = vunpack.c.l.s4 1983009808
    %v582 = vunpack.c.0.s8 %v581
    %v583 = vlaneseq
    %v584 = vshrl.u32 %v583, 7
    %v585 = vsub.s32 %v582, %v584
    %v586 = vrot.slane %v549, %v585
    %v588 = vunpack.c.l.s4 1983009808
    %v589 = vunpack.c.0.s8 %v588
    %v590 = vlaneseq
    %v591 = vshrl.u32 %v590, 7
    %v592 = vsub.s32 %v589, %v591
    %v593 = vrot.slane %v579, %v592
    %v594 = vcombine.high %v586, %v586
    %v595 = vcombine.high %v593, %v593
    %v600 = vsel %vm554, %v565, %v586
    %v601 = vsel %vm555, %v573, %v594
    %v602 = vsel %vm556, %v572, %v593
    %v603 = vsel %vm557, %v574, %v595
    %v636 = vunpack.c.l.b16 %v285
    %v637 = vunpack.c.h.b16 %v285
    %v638 = vunpack.c.l.b16 %v286
    %v639 = vunpack.c.h.b16 %v286
    %v640 = vunpack.c.l.b16 %v287
    %v641 = vunpack.c.h.b16 %v287
    %v642 = vunpack.c.l.b16 %v288
    %v643 = vunpack.c.h.b16 %v288
    %v644 = vunpack.c.l.b16 %v289
    %v645 = vunpack.c.h.b16 %v289
    %v646 = vunpack.c.l.b16 %v290
    %v647 = vunpack.c.h.b16 %v290
    %v648 = vunpack.c.l.b16 %v291
    %v649 = vunpack.c.h.b16 %v291
    %v650 = vunpack.c.l.b16 %v292
    %v651 = vunpack.c.h.b16 %v292
    %v652 = vunpack.c.l.b16 %v293
    %v653 = vunpack.c.h.b16 %v293
    %v654 = vunpack.c.l.b16 %v294
    %v655 = vunpack.c.h.b16 %v294
    %v656 = vunpack.c.l.b16 %v295
    %v657 = vunpack.c.h.b16 %v295
    %v658 = vunpack.c.l.b16 %v296
    %v659 = vunpack.c.h.b16 %v296
    %v660 = vunpack.c.l.b16 %v297
    %v661 = vunpack.c.h.b16 %v297
    %v662 = vunpack.c.l.b16 %v298
    %v663 = vunpack.c.h.b16 %v298
    %v664 = vunpack.c.l.b16 %v299
    %v665 = vunpack.c.h.b16 %v299
    %v666 = vunpack.c.l.b16 %v300
    %v667 = vunpack.c.h.b16 %v300
    %v668 = vunpack.c.l.b16 %v301
    %v669 = vunpack.c.h.b16 %v301
    %v670 = vunpack.c.l.b16 %v302
    %v671 = vunpack.c.h.b16 %v302
    %v672 = vunpack.c.l.b16 %v303
    %v673 = vunpack.c.h.b16 %v303
    %v674 = vunpack.c.l.b16 %v304
    %v675 = vunpack.c.h.b16 %v304
    %v676 = vunpack.c.l.b16 %v305
    %v677 = vunpack.c.h.b16 %v305
    %v678 = vunpack.c.l.b16 %v306
    %v679 = vunpack.c.h.b16 %v306
    %v680 = vunpack.c.l.b16 %v307
    %v681 = vunpack.c.h.b16 %v307
    %v682 = vunpack.c.l.b16 %v308
    %v683 = vunpack.c.h.b16 %v308
    %v684 = vunpack.c.l.b16 %v309
    %v685 = vunpack.c.h.b16 %v309
    %v686 = vunpack.c.l.b16 %v310
    %v687 = vunpack.c.h.b16 %v310
    %v688 = vunpack.c.l.b16 %v311
    %v689 = vunpack.c.h.b16 %v311
    %v690 = vunpack.c.l.b16 %v312
    %v691 = vunpack.c.h.b16 %v312
    %v692 = vunpack.c.l.b16 %v313
    %v693 = vunpack.c.h.b16 %v313
    %v694 = vunpack.c.l.b16 %v314
    %v695 = vunpack.c.h.b16 %v314
    %v696 = vunpack.c.l.b16 %v315
    %v697 = vunpack.c.h.b16 %v315
    %v698 = vunpack.c.l.b16 %v316
    %v699 = vunpack.c.h.b16 %v316
    %v700 = vpack.c.b16 %v640, %v636
    %v701 = vpack.c.b16 %v641, %v637
    %v702 = vpack.c.b16 %v642, %v638
    %v703 = vpack.c.b16 %v643, %v639
    %v704 = vpack.c.b16 %v648, %v644
    %v705 = vpack.c.b16 %v649, %v645
    %v706 = vpack.c.b16 %v650, %v646
    %v707 = vpack.c.b16 %v651, %v647
    %v708 = vpack.c.b16 %v656, %v652
    %v709 = vpack.c.b16 %v657, %v653
    %v710 = vpack.c.b16 %v658, %v654
    %v711 = vpack.c.b16 %v659, %v655
    %v712 = vpack.c.b16 %v664, %v660
    %v713 = vpack.c.b16 %v665, %v661
    %v714 = vpack.c.b16 %v666, %v662
    %v715 = vpack.c.b16 %v667, %v663
    %v716 = vpack.c.b16 %v672, %v668
    %v717 = vpack.c.b16 %v673, %v669
    %v718 = vpack.c.b16 %v674, %v670
    %v719 = vpack.c.b16 %v675, %v671
    %v720 = vpack.c.b16 %v680, %v676
    %v721 = vpack.c.b16 %v681, %v677
    %v722 = vpack.c.b16 %v682, %v678
    %v723 = vpack.c.b16 %v683, %v679
    %v724 = vpack.c.b16 %v688, %v684
    %v725 = vpack.c.b16 %v689, %v685
    %v726 = vpack.c.b16 %v690, %v686
    %v727 = vpack.c.b16 %v691, %v687
    %v728 = vpack.c.b16 %v696, %v692
    %v729 = vpack.c.b16 %v697, %v693
    %v730 = vpack.c.b16 %v698, %v694
    %v731 = vpack.c.b16 %v699, %v695
    %764 = vmatprep.subr.bf16.mxu0 %v701
    %765 = vmatpush1.bf16.msra.mxu0 %v700
    %766 = vmatprep.subr.bf16.mxu0 %v705
    %767 = vmatpush1.bf16.msra.mxu0 %v704
    %768 = vmatprep.subr.bf16.mxu0 %v709
    %769 = vmatpush1.bf16.msra.mxu0 %v708
    %770 = vmatprep.subr.bf16.mxu0 %v713
    %771 = vmatpush1.bf16.msra.mxu0 %v712
    %772 = vmatprep.subr.bf16.mxu0 %v717
    %773 = vmatpush1.bf16.msra.mxu0 %v716
    %774 = vmatprep.subr.bf16.mxu0 %v721
    %775 = vmatpush1.bf16.msra.mxu0 %v720
    %776 = vmatprep.subr.bf16.mxu0 %v725
    %777 = vmatpush1.bf16.msra.mxu0 %v724
    %778 = vmatprep.subr.bf16.mxu0 %v729
    %779 = vmatpush1.bf16.msra.mxu0 %v728
    %780 = vmatprep.subr.bf16.mxu0 0
    %781 = vmatpush1.bf16.msra.mxu0 0
    %782 = vmatprep.subr.bf16.mxu0 0
    %783 = vmatpush1.bf16.msra.mxu0 0
    %784 = vmatprep.subr.bf16.mxu0 0
    %785 = vmatpush1.bf16.msra.mxu0 0
    %786 = vmatprep.subr.bf16.mxu0 0
    %787 = vmatpush1.bf16.msra.mxu0 0
    %788 = vmatprep.subr.bf16.mxu0 0
    %789 = vmatpush1.bf16.msra.mxu0 0
    %790 = vmatprep.subr.bf16.mxu0 0
    %791 = vmatpush1.bf16.msra.mxu0 0
    %792 = vmatprep.subr.bf16.mxu0 0
    %793 = vmatpush1.bf16.msra.mxu0 0
    %794 = vmatprep.subr.bf16.mxu0 0
    %795 = vmatpush1.bf16.msra.mxu0 0
    %796 = vmatprep.mubr.bf16.mxu0 0
    %797 = vmatmul.mubr.bf16.gmra.mrb[0].mxu0 0
    %v798 = vpop.f32.mrb[0].mxu0
    %v799 = vadd.f32 0.0, %v798
    %v800 = vpop.f32.mrb[0].mxu0
    %v801 = vadd.f32 0.0, %v800
    %v802 = vpop.f32.mrb[0].mxu0
    %v803 = vpop.f32.mrb[0].mxu0
    %804 = vdwg.mxu0
    %805 = vmatprep.subr.bf16.mxu0 %v703
    %806 = vmatpush1.bf16.msra.mxu0 %v702
    %807 = vmatprep.subr.bf16.mxu0 %v707
    %808 = vmatpush1.bf16.msra.mxu0 %v706
    %809 = vmatprep.subr.bf16.mxu0 %v711
    %810 = vmatpush1.bf16.msra.mxu0 %v710
    %811 = vmatprep.subr.bf16.mxu0 %v715
    %812 = vmatpush1.bf16.msra.mxu0 %v714
    %813 = vmatprep.subr.bf16.mxu0 %v719
    %814 = vmatpush1.bf16.msra.mxu0 %v718
    %815 = vmatprep.subr.bf16.mxu0 %v723
    %816 = vmatpush1.bf16.msra.mxu0 %v722
    %817 = vmatprep.subr.bf16.mxu0 %v727
    %818 = vmatpush1.bf16.msra.mxu0 %v726
    %819 = vmatprep.subr.bf16.mxu0 %v731
    %820 = vmatpush1.bf16.msra.mxu0 %v730
    %821 = vmatprep.subr.bf16.mxu0 0
    %822 = vmatpush1.bf16.msra.mxu0 0
    %823 = vmatprep.subr.bf16.mxu0 0
    %824 = vmatpush1.bf16.msra.mxu0 0
    %825 = vmatprep.subr.bf16.mxu0 0
    %826 = vmatpush1.bf16.msra.mxu0 0
    %827 = vmatprep.subr.bf16.mxu0 0
    %828 = vmatpush1.bf16.msra.mxu0 0
    %829 = vmatprep.subr.bf16.mxu0 0
    %830 = vmatpush1.bf16.msra.mxu0 0
    %831 = vmatprep.subr.bf16.mxu0 0
    %832 = vmatpush1.bf16.msra.mxu0 0
    %833 = vmatprep.subr.bf16.mxu0 0
    %834 = vmatpush1.bf16.msra.mxu0 0
    %835 = vmatprep.subr.bf16.mxu0 0
    %836 = vmatpush1.bf16.msra.mxu0 0
    %837 = vmatprep.mubr.bf16.mxu0 0
    %838 = vmatmul.mubr.bf16.gmra.mrb[0].mxu0 0
    %v839 = vpop.f32.mrb[0].mxu0
    %v840 = vadd.f32 0.0, %v839
    %v841 = vpop.f32.mrb[0].mxu0
    %v842 = vadd.f32 0.0, %v841
    %v843 = vpop.f32.mrb[0].mxu0
    %v844 = vpop.f32.mrb[0].mxu0
    %845 = vdwg.mxu0
    %v846 = vadd.f32 %v600, %v799
    %v847 = vadd.f32 %v601, %v801
    %v848 = vadd.f32 %v602, %v840
    %v849 = vadd.f32 %v603, %v842
    %v850 = vxor.u32 %v846, 2147483648
    %v851 = vmul.f32 %v850, 1.442695
    %v852 = vpow.pop %v851
    %v853 = vadd.f32 %v852, 1.0
    %v854 = vrcp.pop %v853
    %v855 = vmul.f32 1.0, %v854
    %v856 = vxor.u32 %v847, 2147483648
    %v857 = vmul.f32 %v856, 1.442695
    %v858 = vpow.pop %v857
    %v859 = vadd.f32 %v858, 1.0
    %v860 = vrcp.pop %v859
    %v861 = vmul.f32 1.0, %v860
    %v862 = vtanh.pop %v848
    %v863 = vxor.u32 %v849, 2147483648
    %v864 = vmul.f32 %v863, 1.442695
    %v865 = vpow.pop %v864
    %v866 = vadd.f32 %v865, 1.0
    %v867 = vrcp.pop %v866
    %v868 = vmul.f32 1.0, %v867
    %v869 = vmul.f32 %v861, 0.0
    %v870 = vmul.f32 %v855, %v862
    %v871 = vadd.f32 %v869, %v870
    %v872 = vtanh.pop %v871
    %v873 = vmul.f32 %v868, %v872
    %v874 = vcombine.high %v511, %v511
    %v876 = vunpack.c.l.s4 1983009808
    %v877 = vunpack.c.0.s8 %v876
    %v878 = vlaneseq
    %v879 = vshrl.u32 %v878, 7
    %v880 = vsub.s32 %v877, %v879
    %v881 = vrot.slane %v511, %v880
    %v883 = vunpack.c.l.s4 1983009808
    %v884 = vunpack.c.0.s8 %v883
    %v885 = vlaneseq
    %v886 = vshrl.u32 %v885, 7
    %v887 = vsub.s32 %v884, %v886
    %v888 = vrot.slane %v874, %v887
    %v889 = vcombine.high %v881, %v881
    %v890 = vcombine.high %v888, %v888
    %v895 = vcombine.high %v548, %v548
    %v897 = vunpack.c.l.s4 1983009808
    %v898 = vunpack.c.0.s8 %v897
    %v899 = vlaneseq
    %v900 = vshrl.u32 %v899, 7
    %v901 = vsub.s32 %v898, %v900
    %v902 = vrot.slane %v548, %v901
    %v904 = vunpack.c.l.s4 1983009808
    %v905 = vunpack.c.0.s8 %v904
    %v906 = vlaneseq
    %v907 = vshrl.u32 %v906, 7
    %v908 = vsub.s32 %v905, %v907
    %v909 = vrot.slane %v895, %v908
    %v910 = vcombine.high %v902, %v902
    %v911 = vcombine.high %v909, %v909
    %v916 = vsel %vm554, %v881, %v902
    %v917 = vsel %vm555, %v889, %v910
    %v918 = vsel %vm556, %v888, %v909
    %v919 = vsel %vm557, %v890, %v911
    %v920 = vpack.c.bf16 %v873, %v873
    %921 = vmatprep.subr.bf16.mxu0 %v701
    %922 = vmatpush1.bf16.msra.mxu0 %v700
    %923 = vmatprep.subr.bf16.mxu0 %v705
    %924 = vmatpush1.bf16.msra.mxu0 %v704
    %925 = vmatprep.subr.bf16.mxu0 %v709
    %926 = vmatpush1.bf16.msra.mxu0 %v708
    %927 = vmatprep.subr.bf16.mxu0 %v713
    %928 = vmatpush1.bf16.msra.mxu0 %v712
    %929 = vmatprep.subr.bf16.mxu0 %v717
    %930 = vmatpush1.bf16.msra.mxu0 %v716
    %931 = vmatprep.subr.bf16.mxu0 %v721
    %932 = vmatpush1.bf16.msra.mxu0 %v720
    %933 = vmatprep.subr.bf16.mxu0 %v725
    %934 = vmatpush1.bf16.msra.mxu0 %v724
    %935 = vmatprep.subr.bf16.mxu0 %v729
    %936 = vmatpush1.bf16.msra.mxu0 %v728
    %937 = vmatprep.subr.bf16.mxu0 0
    %938 = vmatpush1.bf16.msra.mxu0 0
    %939 = vmatprep.subr.bf16.mxu0 0
    %940 = vmatpush1.bf16.msra.mxu0 0
    %941 = vmatprep.subr.bf16.mxu0 0
    %942 = vmatpush1.bf16.msra.mxu0 0
    %943 = vmatprep.subr.bf16.mxu0 0
    %944 = vmatpush1.bf16.msra.mxu0 0
    %945 = vmatprep.subr.bf16.mxu0 0
    %946 = vmatpush1.bf16.msra.mxu0 0
    %947 = vmatprep.subr.bf16.mxu0 0
    %948 = vmatpush1.bf16.msra.mxu0 0
    %949 = vmatprep.subr.bf16.mxu0 0
    %950 = vmatpush1.bf16.msra.mxu0 0
    %951 = vmatprep.subr.bf16.mxu0 0
    %952 = vmatpush1.bf16.msra.mxu0 0
    %953 = vmatprep.mubr.bf16.mxu0 0
    %954 = vmatmul.mubr.bf16.gmra.mrb[0].mxu0 %v920
    %v955 = vpop.f32.mrb[0].mxu0
    %v956 = vadd.f32 0.0, %v955
    %v957 = vpop.f32.mrb[0].mxu0
    %v958 = vadd.f32 0.0, %v957
    %v959 = vpop.f32.mrb[0].mxu0
    %v960 = vpop.f32.mrb[0].mxu0
    %961 = vdwg.mxu0
    %962 = vmatprep.subr.bf16.mxu0 %v703
    %963 = vmatpush1.bf16.msra.mxu0 %v702
    %964 = vmatprep.subr.bf16.mxu0 %v707
    %965 = vmatpush1.bf16.msra.mxu0 %v706
    %966 = vmatprep.subr.bf16.mxu0 %v711
    %967 = vmatpush1.bf16.msra.mxu0 %v710
    %968 = vmatprep.subr.bf16.mxu0 %v715
    %969 = vmatpush1.bf16.msra.mxu0 %v714
    %970 = vmatprep.subr.bf16.mxu0 %v719
    %971 = vmatpush1.bf16.msra.mxu0 %v718
    %972 = vmatprep.subr.bf16.mxu0 %v723
    %973 = vmatpush1.bf16.msra.mxu0 %v722
    %974 = vmatprep.subr.bf16.mxu0 %v727
    %975 = vmatpush1.bf16.msra.mxu0 %v726
    %976 = vmatprep.subr.bf16.mxu0 %v731
    %977 = vmatpush1.bf16.msra.mxu0 %v730
    %978 = vmatprep.subr.bf16.mxu0 0
    %979 = vmatpush1.bf16.msra.mxu0 0
    %980 = vmatprep.subr.bf16.mxu0 0
    %981 = vmatpush1.bf16.msra.mxu0 0
    %982 = vmatprep.subr.bf16.mxu0 0
    %983 = vmatpush1.bf16.msra.mxu0 0
    %984 = vmatprep.subr.bf16.mxu0 0
    %985 = vmatpush1.bf16.msra.mxu0 0
    %986 = vmatprep.subr.bf16.mxu0 0
    %987 = vmatpush1.bf16.msra.mxu0 0
    %988 = vmatprep.subr.bf16.mxu0 0
    %989 = vmatpush1.bf16.msra.mxu0 0
    %990 = vmatprep.subr.bf16.mxu0 0
    %991 = vmatpush1.bf16.msra.mxu0 0
    %992 = vmatprep.subr.bf16.mxu0 0
    %993 = vmatpush1.bf16.msra.mxu0 0
    %994 = vmatprep.mubr.bf16.mxu0 0
    %995 = vmatmul.mubr.bf16.gmra.mrb[0].mxu0 %v920
    %v996 = vpop.f32.mrb[0].mxu0
    %v997 = vadd.f32 0.0, %v996
    %v998 = vpop.f32.mrb[0].mxu0
    %v999 = vadd.f32 0.0, %v998
    %v1000 = vpop.f32.mrb[0].mxu0
    %v1001 = vpop.f32.mrb[0].mxu0
    %1002 = vdwg.mxu0
    %v1003 = vadd.f32 %v916, %v956
    %v1004 = vadd.f32 %v917, %v958
    %v1005 = vadd.f32 %v918, %v997
    %v1006 = vadd.f32 %v919, %v999
    %v1007 = vxor.u32 %v1003, 2147483648
    %v1008 = vmul.f32 %v1007, 1.442695
    %v1009 = vpow.pop %v1008
    %v1010 = vadd.f32 %v1009, 1.0
    %v1011 = vrcp.pop %v1010
    %v1012 = vmul.f32 1.0, %v1011
    %v1013 = vxor.u32 %v1004, 2147483648
    %v1014 = vmul.f32 %v1013, 1.442695
    %v1015 = vpow.pop %v1014
    %v1016 = vadd.f32 %v1015, 1.0
    %v1017 = vrcp.pop %v1016
    %v1018 = vmul.f32 1.0, %v1017
    %v1019 = vtanh.pop %v1005
    %v1020 = vxor.u32 %v1006, 2147483648
    %v1021 = vmul.f32 %v1020, 1.442695
    %v1022 = vpow.pop %v1021
    %v1023 = vadd.f32 %v1022, 1.0
    %v1024 = vrcp.pop %v1023
    %v1025 = vmul.f32 1.0, %v1024
    %v1026 = vmul.f32 %v1018, %v871
    %v1027 = vmul.f32 %v1012, %v1019
    %v1028 = vadd.f32 %v1026, %v1027
    %v1029 = vtanh.pop %v1028
    %v1030 = vmul.f32 %v1025, %v1029
    %v1031 = vcombine.high %v512, %v512
    %v1033 = vunpack.c.l.s4 1983009808
    %v1034 = vunpack.c.0.s8 %v1033
    %v1035 = vlaneseq
    %v1036 = vshrl.u32 %v1035, 7
    %v1037 = vsub.s32 %v1034, %v1036
    %v1038 = vrot.slane %v512, %v1037
    %v1040 = vunpack.c.l.s4 1983009808
    %v1041 = vunpack.c.0.s8 %v1040
    %v1042 = vlaneseq
    %v1043 = vshrl.u32 %v1042, 7
    %v1044 = vsub.s32 %v1041, %v1043
    %v1045 = vrot.slane %v1031, %v1044
    %v1046 = vcombine.high %v1038, %v1038
    %v1047 = vcombine.high %v1045, %v1045
    %v1052 = vcombine.high %v547, %v547
    %v1054 = vunpack.c.l.s4 1983009808
    %v1055 = vunpack.c.0.s8 %v1054
    %v1056 = vlaneseq
    %v1057 = vshrl.u32 %v1056, 7
    %v1058 = vsub.s32 %v1055, %v1057
    %v1059 = vrot.slane %v547, %v1058
    %v1061 = vunpack.c.l.s4 1983009808
    %v1062 = vunpack.c.0.s8 %v1061
    %v1063 = vlaneseq
    %v1064 = vshrl.u32 %v1063, 7
    %v1065 = vsub.s32 %v1062, %v1064
    %v1066 = vrot.slane %v1052, %v1065
    %v1067 = vcombine.high %v1059, %v1059
    %v1068 = vcombine.high %v1066, %v1066
    %v1073 = vsel %vm554, %v1038, %v1059
    %v1074 = vsel %vm555, %v1046, %v1067
    %v1075 = vsel %vm556, %v1045, %v1066
    %v1076 = vsel %vm557, %v1047, %v1068
    %v1077 = vpack.c.bf16 %v1030, %v1030
    %1078 = vmatprep.subr.bf16.mxu0 %v701
    %1079 = vmatpush1.bf16.msra.mxu0 %v700
    %1080 = vmatprep.subr.bf16.mxu0 %v705
    %1081 = vmatpush1.bf16.msra.mxu0 %v704
    %1082 = vmatprep.subr.bf16.mxu0 %v709
    %1083 = vmatpush1.bf16.msra.mxu0 %v708
    %1084 = vmatprep.subr.bf16.mxu0 %v713
    %1085 = vmatpush1.bf16.msra.mxu0 %v712
    %1086 = vmatprep.subr.bf16.mxu0 %v717
    %1087 = vmatpush1.bf16.msra.mxu0 %v716
    %1088 = vmatprep.subr.bf16.mxu0 %v721
    %1089 = vmatpush1.bf16.msra.mxu0 %v720
    %1090 = vmatprep.subr.bf16.mxu0 %v725
    %1091 = vmatpush1.bf16.msra.mxu0 %v724
    %1092 = vmatprep.subr.bf16.mxu0 %v729
    %1093 = vmatpush1.bf16.msra.mxu0 %v728
    %1094 = vmatprep.subr.bf16.mxu0 0
    %1095 = vmatpush1.bf16.msra.mxu0 0
    %1096 = vmatprep.subr.bf16.mxu0 0
    %1097 = vmatpush1.bf16.msra.mxu0 0
    %1098 = vmatprep.subr.bf16.mxu0 0
    %1099 = vmatpush1.bf16.msra.mxu0 0
    %1100 = vmatprep.subr.bf16.mxu0 0
    %1101 = vmatpush1.bf16.msra.mxu0 0
    %1102 = vmatprep.subr.bf16.mxu0 0
    %1103 = vmatpush1.bf16.msra.mxu0 0
    %1104 = vmatprep.subr.bf16.mxu0 0
    %1105 = vmatpush1.bf16.msra.mxu0 0
    %1106 = vmatprep.subr.bf16.mxu0 0
    %1107 = vmatpush1.bf16.msra.mxu0 0
    %1108 = vmatprep.subr.bf16.mxu0 0
    %1109 = vmatpush1.bf16.msra.mxu0 0
    %1110 = vmatprep.mubr.bf16.mxu0 0
    %1111 = vmatmul.mubr.bf16.gmra.mrb[0].mxu0 %v1077
    %v1112 = vpop.f32.mrb[0].mxu0
    %v1113 = vadd.f32 0.0, %v1112
    %v1114 = vpop.f32.mrb[0].mxu0
    %v1115 = vadd.f32 0.0, %v1114
    %v1116 = vpop.f32.mrb[0].mxu0
    %v1117 = vpop.f32.mrb[0].mxu0
    %1118 = vdwg.mxu0
    %1119 = vmatprep.subr.bf16.mxu0 %v703
    %1120 = vmatpush1.bf16.msra.mxu0 %v702
    %1121 = vmatprep.subr.bf16.mxu0 %v707
    %1122 = vmatpush1.bf16.msra.mxu0 %v706
    %1123 = vmatprep.subr.bf16.mxu0 %v711
    %1124 = vmatpush1.bf16.msra.mxu0 %v710
    %1125 = vmatprep.subr.bf16.mxu0 %v715
    %1126 = vmatpush1.bf16.msra.mxu0 %v714
    %1127 = vmatprep.subr.bf16.mxu0 %v719
    %1128 = vmatpush1.bf16.msra.mxu0 %v718
    %1129 = vmatprep.subr.bf16.mxu0 %v723
    %1130 = vmatpush1.bf16.msra.mxu0 %v722
    %1131 = vmatprep.subr.bf16.mxu0 %v727
    %1132 = vmatpush1.bf16.msra.mxu0 %v726
    %1133 = vmatprep.subr.bf16.mxu0 %v731
    %1134 = vmatpush1.bf16.msra.mxu0 %v730
    %1135 = vmatprep.subr.bf16.mxu0 0
    %1136 = vmatpush1.bf16.msra.mxu0 0
    %1137 = vmatprep.subr.bf16.mxu0 0
    %1138 = vmatpush1.bf16.msra.mxu0 0
    %1139 = vmatprep.subr.bf16.mxu0 0
    %1140 = vmatpush1.bf16.msra.mxu0 0
    %1141 = vmatprep.subr.bf16.mxu0 0
    %1142 = vmatpush1.bf16.msra.mxu0 0
    %1143 = vmatprep.subr.bf16.mxu0 0
    %1144 = vmatpush1.bf16.msra.mxu0 0
    %1145 = vmatprep.subr.bf16.mxu0 0
    %1146 = vmatpush1.bf16.msra.mxu0 0
    %1147 = vmatprep.subr.bf16.mxu0 0
    %1148 = vmatpush1.bf16.msra.mxu0 0
    %1149 = vmatprep.subr.bf16.mxu0 0
    %1150 = vmatpush1.bf16.msra.mxu0 0
    %1151 = vmatprep.mubr.bf16.mxu0 0
    %1152 = vmatmul.mubr.bf16.gmra.mrb[0].mxu0 %v1077
    %v1153 = vpop.f32.mrb[0].mxu0
    %v1154 = vadd.f32 0.0, %v1153
    %v1155 = vpop.f32.mrb[0].mxu0
    %v1156 = vadd.f32 0.0, %v1155
    %v1157 = vpop.f32.mrb[0].mxu0
    %v1158 = vpop.f32.mrb[0].mxu0
    %1159 = vdwg.mxu0
    %v1160 = vadd.f32 %v1073, %v1113
    %v1161 = vadd.f32 %v1074, %v1115
    %v1162 = vadd.f32 %v1075, %v1154
    %v1163 = vadd.f32 %v1076, %v1156
    %v1164 = vxor.u32 %v1160, 2147483648
    %v1165 = vmul.f32 %v1164, 1.442695
    %v1166 = vpow.pop %v1165
    %v1167 = vadd.f32 %v1166, 1.0
    %v1168 = vrcp.pop %v1167
    %v1169 = vmul.f32 1.0, %v1168
    %v1170 = vxor.u32 %v1161, 2147483648
    %v1171 = vmul.f32 %v1170, 1.442695
    %v1172 = vpow.pop %v1171
    %v1173 = vadd.f32 %v1172, 1.0
    %v1174 = vrcp.pop %v1173
    %v1175 = vmul.f32 1.0, %v1174
    %v1176 = vtanh.pop %v1162
    %v1177 = vxor.u32 %v1163, 2147483648
    %v1178 = vmul.f32 %v1177, 1.442695
    %v1179 = vpow.pop %v1178
    %v1180 = vadd.f32 %v1179, 1.0
    %v1181 = vrcp.pop %v1180
    %v1182 = vmul.f32 1.0, %v1181
    %v1183 = vmul.f32 %v1175, %v1028
    %v1184 = vmul.f32 %v1169, %v1176
    %v1185 = vadd.f32 %v1183, %v1184
    %v1186 = vtanh.pop %v1185
    %v1187 = vmul.f32 %v1182, %v1186
    %v1188 = vcombine.high %v513, %v513
    %v1190 = vunpack.c.l.s4 1983009808
    %v1191 = vunpack.c.0.s8 %v1190
    %v1192 = vlaneseq
    %v1193 = vshrl.u32 %v1192, 7
    %v1194 = vsub.s32 %v1191, %v1193
    %v1195 = vrot.slane %v513, %v1194
    %v1197 = vunpack.c.l.s4 1983009808
    %v1198 = vunpack.c.0.s8 %v1197
    %v1199 = vlaneseq
    %v1200 = vshrl.u32 %v1199, 7
    %v1201 = vsub.s32 %v1198, %v1200
    %v1202 = vrot.slane %v1188, %v1201
    %v1203 = vcombine.high %v1195, %v1195
    %v1204 = vcombine.high %v1202, %v1202
    %v1209 = vcombine.high %v546, %v546
    %v1211 = vunpack.c.l.s4 1983009808
    %v1212 = vunpack.c.0.s8 %v1211
    %v1213 = vlaneseq
    %v1214 = vshrl.u32 %v1213, 7
    %v1215 = vsub.s32 %v1212, %v1214
    %v1216 = vrot.slane %v546, %v1215
    %v1218 = vunpack.c.l.s4 1983009808
    %v1219 = vunpack.c.0.s8 %v1218
    %v1220 = vlaneseq
    %v1221 = vshrl.u32 %v1220, 7
    %v1222 = vsub.s32 %v1219, %v1221
    %v1223 = vrot.slane %v1209, %v1222
    %v1224 = vcombine.high %v1216, %v1216
    %v1225 = vcombine.high %v1223, %v1223
    %v1230 = vsel %vm554, %v1195, %v1216
    %v1231 = vsel %vm555, %v1203, %v1224
    %v1232 = vsel %vm556, %v1202, %v1223
    %v1233 = vsel %vm557, %v1204, %v1225
    %v1234 = vpack.c.bf16 %v1187, %v1187
    %1235 = vmatprep.subr.bf16.mxu0 %v701
    %1236 = vmatpush1.bf16.msra.mxu0 %v700
    %1237 = vmatprep.subr.bf16.mxu0 %v705
    %1238 = vmatpush1.bf16.msra.mxu0 %v704
    %1239 = vmatprep.subr.bf16.mxu0 %v709
    %1240 = vmatpush1.bf16.msra.mxu0 %v708
    %1241 = vmatprep.subr.bf16.mxu0 %v713
    %1242 = vmatpush1.bf16.msra.mxu0 %v712
    %1243 = vmatprep.subr.bf16.mxu0 %v717
    %1244 = vmatpush1.bf16.msra.mxu0 %v716
    %1245 = vmatprep.subr.bf16.mxu0 %v721
    %1246 = vmatpush1.bf16.msra.mxu0 %v720
    %1247 = vmatprep.subr.bf16.mxu0 %v725
    %1248 = vmatpush1.bf16.msra.mxu0 %v724
    %1249 = vmatprep.subr.bf16.mxu0 %v729
    %1250 = vmatpush1.bf16.msra.mxu0 %v728
    %1251 = vmatprep.subr.bf16.mxu0 0
    %1252 = vmatpush1.bf16.msra.mxu0 0
    %1253 = vmatprep.subr.bf16.mxu0 0
    %1254 = vmatpush1.bf16.msra.mxu0 0
    %1255 = vmatprep.subr.bf16.mxu0 0
    %1256 = vmatpush1.bf16.msra.mxu0 0
    %1257 = vmatprep.subr.bf16.mxu0 0
    %1258 = vmatpush1.bf16.msra.mxu0 0
    %1259 = vmatprep.subr.bf16.mxu0 0
    %1260 = vmatpush1.bf16.msra.mxu0 0
    %1261 = vmatprep.subr.bf16.mxu0 0
    %1262 = vmatpush1.bf16.msra.mxu0 0
    %1263 = vmatprep.subr.bf16.mxu0 0
    %1264 = vmatpush1.bf16.msra.mxu0 0
    %1265 = vmatprep.subr.bf16.mxu0 0
    %1266 = vmatpush1.bf16.msra.mxu0 0
    %1267 = vmatprep.mubr.bf16.mxu0 0
    %1268 = vmatmul.mubr.bf16.gmra.mrb[0].mxu0 %v1234
    %v1269 = vpop.f32.mrb[0].mxu0
    %v1270 = vadd.f32 0.0, %v1269
    %v1271 = vpop.f32.mrb[0].mxu0
    %v1272 = vadd.f32 0.0, %v1271
    %v1273 = vpop.f32.mrb[0].mxu0
    %v1274 = vpop.f32.mrb[0].mxu0
    %1275 = vdwg.mxu0
    %1276 = vmatprep.subr.bf16.mxu0 %v703
    %1277 = vmatpush1.bf16.msra.mxu0 %v702
    %1278 = vmatprep.subr.bf16.mxu0 %v707
    %1279 = vmatpush1.bf16.msra.mxu0 %v706
    %1280 = vmatprep.subr.bf16.mxu0 %v711
    %1281 = vmatpush1.bf16.msra.mxu0 %v710
    %1282 = vmatprep.subr.bf16.mxu0 %v715
    %1283 = vmatpush1.bf16.msra.mxu0 %v714
    %1284 = vmatprep.subr.bf16.mxu0 %v719
    %1285 = vmatpush1.bf16.msra.mxu0 %v718
    %1286 = vmatprep.subr.bf16.mxu0 %v723
    %1287 = vmatpush1.bf16.msra.mxu0 %v722
    %1288 = vmatprep.subr.bf16.mxu0 %v727
    %1289 = vmatpush1.bf16.msra.mxu0 %v726
    %1290 = vmatprep.subr.bf16.mxu0 %v731
    %1291 = vmatpush1.bf16.msra.mxu0 %v730
    %1292 = vmatprep.subr.bf16.mxu0 0
    %1293 = vmatpush1.bf16.msra.mxu0 0
    %1294 = vmatprep.subr.bf16.mxu0 0
    %1295 = vmatpush1.bf16.msra.mxu0 0
    %1296 = vmatprep.subr.bf16.mxu0 0
    %1297 = vmatpush1.bf16.msra.mxu0 0
    %1298 = vmatprep.subr.bf16.mxu0 0
    %1299 = vmatpush1.bf16.msra.mxu0 0
    %1300 = vmatprep.subr.bf16.mxu0 0
    %1301 = vmatpush1.bf16.msra.mxu0 0
    %1302 = vmatprep.subr.bf16.mxu0 0
    %1303 = vmatpush1.bf16.msra.mxu0 0
    %1304 = vmatprep.subr.bf16.mxu0 0
    %1305 = vmatpush1.bf16.msra.mxu0 0
    %1306 = vmatprep.subr.bf16.mxu0 0
    %1307 = vmatpush1.bf16.msra.mxu0 0
    %1308 = vmatprep.mubr.bf16.mxu0 0
    %1309 = vmatmul.mubr.bf16.gmra.mrb[0].mxu0 %v1234
    %v1310 = vpop.f32.mrb[0].mxu0
    %v1311 = vadd.f32 0.0, %v1310
    %v1312 = vpop.f32.mrb[0].mxu0
    %v1313 = vadd.f32 0.0, %v1312
    %v1314 = vpop.f32.mrb[0].mxu0
    %v1315 = vpop.f32.mrb[0].mxu0
    %1316 = vdwg.mxu0
    %v1317 = vadd.f32 %v1230, %v1270
    %v1318 = vadd.f32 %v1231, %v1272
    %v1319 = vadd.f32 %v1232, %v1311
    %v1320 = vadd.f32 %v1233, %v1313
    %v1321 = vxor.u32 %v1317, 2147483648
    %v1322 = vmul.f32 %v1321, 1.442695
    %v1323 = vpow.pop %v1322
    %v1324 = vadd.f32 %v1323, 1.0
    %v1325 = vrcp.pop %v1324
    %v1326 = vmul.f32 1.0, %v1325
    %v1327 = vxor.u32 %v1318, 2147483648
    %v1328 = vmul.f32 %v1327, 1.442695
    %v1329 = vpow.pop %v1328
    %v1330 = vadd.f32 %v1329, 1.0
    %v1331 = vrcp.pop %v1330
    %v1332 = vmul.f32 1.0, %v1331
    %v1333 = vtanh.pop %v1319
    %v1334 = vxor.u32 %v1320, 2147483648
    %v1335 = vmul.f32 %v1334, 1.442695
    %v1336 = vpow.pop %v1335
    %v1337 = vadd.f32 %v1336, 1.0
    %v1338 = vrcp.pop %v1337
    %v1339 = vmul.f32 1.0, %v1338
    %v1340 = vmul.f32 %v1332, %v1185
    %v1341 = vmul.f32 %v1326, %v1333
    %v1342 = vadd.f32 %v1340, %v1341
    %v1343 = vtanh.pop %v1342
    %v1344 = vmul.f32 %v1339, %v1343
    %v1345 = vsel %vm554, %v1216, %v1195
    %v1346 = vsel %vm555, %v1224, %v1203
    %v1347 = vsel %vm556, %v1223, %v1202
    %v1348 = vsel %vm557, %v1225, %v1204
    %v1349 = vpack.c.bf16 %v1344, %v1344
    %1350 = vmatprep.subr.bf16.mxu0 %v701
    %1351 = vmatpush1.bf16.msra.mxu0 %v700
    %1352 = vmatprep.subr.bf16.mxu0 %v705
    %1353 = vmatpush1.bf16.msra.mxu0 %v704
    %1354 = vmatprep.subr.bf16.mxu0 %v709
    %1355 = vmatpush1.bf16.msra.mxu0 %v708
    %1356 = vmatprep.subr.bf16.mxu0 %v713
    %1357 = vmatpush1.bf16.msra.mxu0 %v712
    %1358 = vmatprep.subr.bf16.mxu0 %v717
    %1359 = vmatpush1.bf16.msra.mxu0 %v716
    %1360 = vmatprep.subr.bf16.mxu0 %v721
    %1361 = vmatpush1.bf16.msra.mxu0 %v720
    %1362 = vmatprep.subr.bf16.mxu0 %v725
    %1363 = vmatpush1.bf16.msra.mxu0 %v724
    %1364 = vmatprep.subr.bf16.mxu0 %v729
    %1365 = vmatpush1.bf16.msra.mxu0 %v728
    %1366 = vmatprep.subr.bf16.mxu0 0
    %1367 = vmatpush1.bf16.msra.mxu0 0
    %1368 = vmatprep.subr.bf16.mxu0 0
    %1369 = vmatpush1.bf16.msra.mxu0 0
    %1370 = vmatprep.subr.bf16.mxu0 0
    %1371 = vmatpush1.bf16.msra.mxu0 0
    %1372 = vmatprep.subr.bf16.mxu0 0
    %1373 = vmatpush1.bf16.msra.mxu0 0
    %1374 = vmatprep.subr.bf16.mxu0 0
    %1375 = vmatpush1.bf16.msra.mxu0 0
    %1376 = vmatprep.subr.bf16.mxu0 0
    %1377 = vmatpush1.bf16.msra.mxu0 0
    %1378 = vmatprep.subr.bf16.mxu0 0
    %1379 = vmatpush1.bf16.msra.mxu0 0
    %1380 = vmatprep.subr.bf16.mxu0 0
    %1381 = vmatpush1.bf16.msra.mxu0 0
    %1382 = vmatprep.mubr.bf16.mxu0 0
    %1383 = vmatmul.mubr.bf16.gmra.mrb[0].mxu0 %v1349
    %v1384 = vpop.f32.mrb[0].mxu0
    %v1385 = vadd.f32 0.0, %v1384
    %v1386 = vpop.f32.mrb[0].mxu0
    %v1387 = vadd.f32 0.0, %v1386
    %v1388 = vpop.f32.mrb[0].mxu0
    %v1389 = vpop.f32.mrb[0].mxu0
    %1390 = vdwg.mxu0
    %1391 = vmatprep.subr.bf16.mxu0 %v703
    %1392 = vmatpush1.bf16.msra.mxu0 %v702
    %1393 = vmatprep.subr.bf16.mxu0 %v707
    %1394 = vmatpush1.bf16.msra.mxu0 %v706
    %1395 = vmatprep.subr.bf16.mxu0 %v711
    %1396 = vmatpush1.bf16.msra.mxu0 %v710
    %1397 = vmatprep.subr.bf16.mxu0 %v715
    %1398 = vmatpush1.bf16.msra.mxu0 %v714
    %1399 = vmatprep.subr.bf16.mxu0 %v719
    %1400 = vmatpush1.bf16.msra.mxu0 %v718
    %1401 = vmatprep.subr.bf16.mxu0 %v723
    %1402 = vmatpush1.bf16.msra.mxu0 %v722
    %1403 = vmatprep.subr.bf16.mxu0 %v727
    %1404 = vmatpush1.bf16.msra.mxu0 %v726
    %1405 = vmatprep.subr.bf16.mxu0 %v731
    %1406 = vmatpush1.bf16.msra.mxu0 %v730
    %1407 = vmatprep.subr.bf16.mxu0 0
    %1408 = vmatpush1.bf16.msra.mxu0 0
    %1409 = vmatprep.subr.bf16.mxu0 0
    %1410 = vmatpush1.bf16.msra.mxu0 0
    %1411 = vmatprep.subr.bf16.mxu0 0
    %1412 = vmatpush1.bf16.msra.mxu0 0
    %1413 = vmatprep.subr.bf16.mxu0 0
    %1414 = vmatpush1.bf16.msra.mxu0 0
    %1415 = vmatprep.subr.bf16.mxu0 0
    %1416 = vmatpush1.bf16.msra.mxu0 0
    %1417 = vmatprep.subr.bf16.mxu0 0
    %1418 = vmatpush1.bf16.msra.mxu0 0
    %1419 = vmatprep.subr.bf16.mxu0 0
    %1420 = vmatpush1.bf16.msra.mxu0 0
    %1421 = vmatprep.subr.bf16.mxu0 0
    %1422 = vmatpush1.bf16.msra.mxu0 0
    %1423 = vmatprep.mubr.bf16.mxu0 0
    %1424 = vmatmul.mubr.bf16.gmra.mrb[0].mxu0 %v1349
    %v1425 = vpop.f32.mrb[0].mxu0
    %v1426 = vadd.f32 0.0, %v1425
    %v1427 = vpop.f32.mrb[0].mxu0
    %v1428 = vadd.f32 0.0, %v1427
    %v1429 = vpop.f32.mrb[0].mxu0
    %v1430 = vpop.f32.mrb[0].mxu0
    %1431 = vdwg.mxu0
    %v1432 = vadd.f32 %v1345, %v1385
    %v1433 = vadd.f32 %v1346, %v1387
    %v1434 = vadd.f32 %v1347, %v1426
    %v1435 = vadd.f32 %v1348, %v1428
    %v1436 = vxor.u32 %v1432, 2147483648
    %v1437 = vmul.f32 %v1436, 1.442695
    %v1438 = vpow.pop %v1437
    %v1439 = vadd.f32 %v1438, 1.0
    %v1440 = vrcp.pop %v1439
    %v1441 = vmul.f32 1.0, %v1440
    %v1442 = vxor.u32 %v1433, 2147483648
    %v1443 = vmul.f32 %v1442, 1.442695
    %v1444 = vpow.pop %v1443
    %v1445 = vadd.f32 %v1444, 1.0
    %v1446 = vrcp.pop %v1445
    %v1447 = vmul.f32 1.0, %v1446
    %v1448 = vtanh.pop %v1434
    %v1449 = vxor.u32 %v1435, 2147483648
    %v1450 = vmul.f32 %v1449, 1.442695
    %v1451 = vpow.pop %v1450
    %v1452 = vadd.f32 %v1451, 1.0
    %v1453 = vrcp.pop %v1452
    %v1454 = vmul.f32 1.0, %v1453
    %v1455 = vmul.f32 %v1447, %v1342
    %v1456 = vmul.f32 %v1441, %v1448
    %v1457 = vadd.f32 %v1455, %v1456
    %v1458 = vtanh.pop %v1457
    %v1459 = vmul.f32 %v1454, %v1458
    %v1460 = vsel %vm554, %v1059, %v1038
    %v1461 = vsel %vm555, %v1067, %v1046
    %v1462 = vsel %vm556, %v1066, %v1045
    %v1463 = vsel %vm557, %v1068, %v1047
    %v1464 = vpack.c.bf16 %v1459, %v1459
    %1465 = vmatprep.subr.bf16.mxu0 %v701
    %1466 = vmatpush1.bf16.msra.mxu0 %v700
    %1467 = vmatprep.subr.bf16.mxu0 %v705
    %1468 = vmatpush1.bf16.msra.mxu0 %v704
    %1469 = vmatprep.subr.bf16.mxu0 %v709
    %1470 = vmatpush1.bf16.msra.mxu0 %v708
    %1471 = vmatprep.subr.bf16.mxu0 %v713
    %1472 = vmatpush1.bf16.msra.mxu0 %v712
    %1473 = vmatprep.subr.bf16.mxu0 %v717
    %1474 = vmatpush1.bf16.msra.mxu0 %v716
    %1475 = vmatprep.subr.bf16.mxu0 %v721
    %1476 = vmatpush1.bf16.msra.mxu0 %v720
    %1477 = vmatprep.subr.bf16.mxu0 %v725
    %1478 = vmatpush1.bf16.msra.mxu0 %v724
    %1479 = vmatprep.subr.bf16.mxu0 %v729
    %1480 = vmatpush1.bf16.msra.mxu0 %v728
    %1481 = vmatprep.subr.bf16.mxu0 0
    %1482 = vmatpush1.bf16.msra.mxu0 0
    %1483 = vmatprep.subr.bf16.mxu0 0
    %1484 = vmatpush1.bf16.msra.mxu0 0
    %1485 = vmatprep.subr.bf16.mxu0 0
    %1486 = vmatpush1.bf16.msra.mxu0 0
    %1487 = vmatprep.subr.bf16.mxu0 0
    %1488 = vmatpush1.bf16.msra.mxu0 0
    %1489 = vmatprep.subr.bf16.mxu0 0
    %1490 = vmatpush1.bf16.msra.mxu0 0
    %1491 = vmatprep.subr.bf16.mxu0 0
    %1492 = vmatpush1.bf16.msra.mxu0 0
    %1493 = vmatprep.subr.bf16.mxu0 0
    %1494 = vmatpush1.bf16.msra.mxu0 0
    %1495 = vmatprep.subr.bf16.mxu0 0
    %1496 = vmatpush1.bf16.msra.mxu0 0
    %1497 = vmatprep.mubr.bf16.mxu0 0
    %1498 = vmatmul.mubr.bf16.gmra.mrb[0].mxu0 %v1464
    %v1499 = vpop.f32.mrb[0].mxu0
    %v1500 = vadd.f32 0.0, %v1499
    %v1501 = vpop.f32.mrb[0].mxu0
    %v1502 = vadd.f32 0.0, %v1501
    %v1503 = vpop.f32.mrb[0].mxu0
    %v1504 = vpop.f32.mrb[0].mxu0
    %1505 = vdwg.mxu0
    %1506 = vmatprep.subr.bf16.mxu0 %v703
    %1507 = vmatpush1.bf16.msra.mxu0 %v702
    %1508 = vmatprep.subr.bf16.mxu0 %v707
    %1509 = vmatpush1.bf16.msra.mxu0 %v706
    %1510 = vmatprep.subr.bf16.mxu0 %v711
    %1511 = vmatpush1.bf16.msra.mxu0 %v710
    %1512 = vmatprep.subr.bf16.mxu0 %v715
    %1513 = vmatpush1.bf16.msra.mxu0 %v714
    %1514 = vmatprep.subr.bf16.mxu0 %v719
    %1515 = vmatpush1.bf16.msra.mxu0 %v718
    %1516 = vmatprep.subr.bf16.mxu0 %v723
    %1517 = vmatpush1.bf16.msra.mxu0 %v722
    %1518 = vmatprep.subr.bf16.mxu0 %v727
    %1519 = vmatpush1.bf16.msra.mxu0 %v726
    %1520 = vmatprep.subr.bf16.mxu0 %v731
    %1521 = vmatpush1.bf16.msra.mxu0 %v730
    %1522 = vmatprep.subr.bf16.mxu0 0
    %1523 = vmatpush1.bf16.msra.mxu0 0
    %1524 = vmatprep.subr.bf16.mxu0 0
    %1525 = vmatpush1.bf16.msra.mxu0 0
    %1526 = vmatprep.subr.bf16.mxu0 0
    %1527 = vmatpush1.bf16.msra.mxu0 0
    %1528 = vmatprep.subr.bf16.mxu0 0
    %1529 = vmatpush1.bf16.msra.mxu0 0
    %1530 = vmatprep.subr.bf16.mxu0 0
    %1531 = vmatpush1.bf16.msra.mxu0 0
    %1532 = vmatprep.subr.bf16.mxu0 0
    %1533 = vmatpush1.bf16.msra.mxu0 0
    %1534 = vmatprep.subr.bf16.mxu0 0
    %1535 = vmatpush1.bf16.msra.mxu0 0
    %1536 = vmatprep.subr.bf16.mxu0 0
    %1537 = vmatpush1.bf16.msra.mxu0 0
    %1538 = vmatprep.mubr.bf16.mxu0 0
    %1539 = vmatmul.mubr.bf16.gmra.mrb[0].mxu0 %v1464
    %v1540 = vpop.f32.mrb[0].mxu0
    %v1541 = vadd.f32 0.0, %v1540
    %v1542 = vpop.f32.mrb[0].mxu0
    %v1543 = vadd.f32 0.0, %v1542
    %v1544 = vpop.f32.mrb[0].mxu0
    %v1545 = vpop.f32.mrb[0].mxu0
    %1546 = vdwg.mxu0
    %v1547 = vadd.f32 %v1460, %v1500
    %v1548 = vadd.f32 %v1461, %v1502
    %v1549 = vadd.f32 %v1462, %v1541
    %v1550 = vadd.f32 %v1463, %v1543
    %v1551 = vxor.u32 %v1547, 2147483648
    %v1552 = vmul.f32 %v1551, 1.442695
    %v1553 = vpow.pop %v1552
    %v1554 = vadd.f32 %v1553, 1.0
    %v1555 = vrcp.pop %v1554
    %v1556 = vmul.f32 1.0, %v1555
    %v1557 = vxor.u32 %v1548, 2147483648
    %v1558 = vmul.f32 %v1557, 1.442695
    %v1559 = vpow.pop %v1558
    %v1560 = vadd.f32 %v1559, 1.0
    %v1561 = vrcp.pop %v1560
    %v1562 = vmul.f32 1.0, %v1561
    %v1563 = vtanh.pop %v1549
    %v1564 = vxor.u32 %v1550, 2147483648
    %v1565 = vmul.f32 %v1564, 1.442695
    %v1566 = vpow.pop %v1565
    %v1567 = vadd.f32 %v1566, 1.0
    %v1568 = vrcp.pop %v1567
    %v1569 = vmul.f32 1.0, %v1568
    %v1570 = vmul.f32 %v1562, %v1457
    %v1571 = vmul.f32 %v1556, %v1563
    %v1572 = vadd.f32 %v1570, %v1571
    %v1573 = vtanh.pop %v1572
    %v1574 = vmul.f32 %v1569, %v1573
    %v1575 = vsel %vm554, %v902, %v881
    %v1576 = vsel %vm555, %v910, %v889
    %v1577 = vsel %vm556, %v909, %v888
    %v1578 = vsel %vm557, %v911, %v890
    %v1579 = vpack.c.bf16 %v1574, %v1574
    %1580 = vmatprep.subr.bf16.mxu0 %v701
    %1581 = vmatpush1.bf16.msra.mxu0 %v700
    %1582 = vmatprep.subr.bf16.mxu0 %v705
    %1583 = vmatpush1.bf16.msra.mxu0 %v704
    %1584 = vmatprep.subr.bf16.mxu0 %v709
    %1585 = vmatpush1.bf16.msra.mxu0 %v708
    %1586 = vmatprep.subr.bf16.mxu0 %v713
    %1587 = vmatpush1.bf16.msra.mxu0 %v712
    %1588 = vmatprep.subr.bf16.mxu0 %v717
    %1589 = vmatpush1.bf16.msra.mxu0 %v716
    %1590 = vmatprep.subr.bf16.mxu0 %v721
    %1591 = vmatpush1.bf16.msra.mxu0 %v720
    %1592 = vmatprep.subr.bf16.mxu0 %v725
    %1593 = vmatpush1.bf16.msra.mxu0 %v724
    %1594 = vmatprep.subr.bf16.mxu0 %v729
    %1595 = vmatpush1.bf16.msra.mxu0 %v728
    %1596 = vmatprep.subr.bf16.mxu0 0
    %1597 = vmatpush1.bf16.msra.mxu0 0
    %1598 = vmatprep.subr.bf16.mxu0 0
    %1599 = vmatpush1.bf16.msra.mxu0 0
    %1600 = vmatprep.subr.bf16.mxu0 0
    %1601 = vmatpush1.bf16.msra.mxu0 0
    %1602 = vmatprep.subr.bf16.mxu0 0
    %1603 = vmatpush1.bf16.msra.mxu0 0
    %1604 = vmatprep.subr.bf16.mxu0 0
    %1605 = vmatpush1.bf16.msra.mxu0 0
    %1606 = vmatprep.subr.bf16.mxu0 0
    %1607 = vmatpush1.bf16.msra.mxu0 0
    %1608 = vmatprep.subr.bf16.mxu0 0
    %1609 = vmatpush1.bf16.msra.mxu0 0
    %1610 = vmatprep.subr.bf16.mxu0 0
    %1611 = vmatpush1.bf16.msra.mxu0 0
    %1612 = vmatprep.mubr.bf16.mxu0 0
    %1613 = vmatmul.mubr.bf16.gmra.mrb[0].mxu0 %v1579
    %v1614 = vpop.f32.mrb[0].mxu0
    %v1615 = vadd.f32 0.0, %v1614
    %v1616 = vpop.f32.mrb[0].mxu0
    %v1617 = vadd.f32 0.0, %v1616
    %v1618 = vpop.f32.mrb[0].mxu0
    %v1619 = vpop.f32.mrb[0].mxu0
    %1620 = vdwg.mxu0
    %1621 = vmatprep.subr.bf16.mxu0 %v703
    %1622 = vmatpush1.bf16.msra.mxu0 %v702
    %1623 = vmatprep.subr.bf16.mxu0 %v707
    %1624 = vmatpush1.bf16.msra.mxu0 %v706
    %1625 = vmatprep.subr.bf16.mxu0 %v711
    %1626 = vmatpush1.bf16.msra.mxu0 %v710
    %1627 = vmatprep.subr.bf16.mxu0 %v715
    %1628 = vmatpush1.bf16.msra.mxu0 %v714
    %1629 = vmatprep.subr.bf16.mxu0 %v719
    %1630 = vmatpush1.bf16.msra.mxu0 %v718
    %1631 = vmatprep.subr.bf16.mxu0 %v723
    %1632 = vmatpush1.bf16.msra.mxu0 %v722
    %1633 = vmatprep.subr.bf16.mxu0 %v727
    %1634 = vmatpush1.bf16.msra.mxu0 %v726
    %1635 = vmatprep.subr.bf16.mxu0 %v731
    %1636 = vmatpush1.bf16.msra.mxu0 %v730
    %1637 = vmatprep.subr.bf16.mxu0 0
    %1638 = vmatpush1.bf16.msra.mxu0 0
    %1639 = vmatprep.subr.bf16.mxu0 0
    %1640 = vmatpush1.bf16.msra.mxu0 0
    %1641 = vmatprep.subr.bf16.mxu0 0
    %1642 = vmatpush1.bf16.msra.mxu0 0
    %1643 = vmatprep.subr.bf16.mxu0 0
    %1644 = vmatpush1.bf16.msra.mxu0 0
    %1645 = vmatprep.subr.bf16.mxu0 0
    %1646 = vmatpush1.bf16.msra.mxu0 0
    %1647 = vmatprep.subr.bf16.mxu0 0
    %1648 = vmatpush1.bf16.msra.mxu0 0
    %1649 = vmatprep.subr.bf16.mxu0 0
    %1650 = vmatpush1.bf16.msra.mxu0 0
    %1651 = vmatprep.subr.bf16.mxu0 0
    %1652 = vmatpush1.bf16.msra.mxu0 0
    %1653 = vmatprep.mubr.bf16.mxu0 0
    %1654 = vmatmul.mubr.bf16.gmra.mrb[0].mxu0 %v1579
    %v1655 = vpop.f32.mrb[0].mxu0
    %v1656 = vadd.f32 0.0, %v1655
    %v1657 = vpop.f32.mrb[0].mxu0
    %v1658 = vadd.f32 0.0, %v1657
    %v1659 = vpop.f32.mrb[0].mxu0
    %v1660 = vpop.f32.mrb[0].mxu0
    %1661 = vdwg.mxu0
    %v1662 = vadd.f32 %v1575, %v1615
    %v1663 = vadd.f32 %v1576, %v1617
    %v1664 = vadd.f32 %v1577, %v1656
    %v1665 = vadd.f32 %v1578, %v1658
    %v1666 = vxor.u32 %v1662, 2147483648
    %v1667 = vmul.f32 %v1666, 1.442695
    %v1668 = vpow.pop %v1667
    %v1669 = vadd.f32 %v1668, 1.0
    %v1670 = vrcp.pop %v1669
    %v1671 = vmul.f32 1.0, %v1670
    %v1672 = vxor.u32 %v1663, 2147483648
    %v1673 = vmul.f32 %v1672, 1.442695
    %v1674 = vpow.pop %v1673
    %v1675 = vadd.f32 %v1674, 1.0
    %v1676 = vrcp.pop %v1675
    %v1677 = vmul.f32 1.0, %v1676
    %v1678 = vtanh.pop %v1664
    %v1679 = vxor.u32 %v1665, 2147483648
    %v1680 = vmul.f32 %v1679, 1.442695
    %v1681 = vpow.pop %v1680
    %v1682 = vadd.f32 %v1681, 1.0
    %v1683 = vrcp.pop %v1682
    %v1684 = vmul.f32 1.0, %v1683
    %v1685 = vmul.f32 %v1677, %v1572
    %v1686 = vmul.f32 %v1671, %v1678
    %v1687 = vadd.f32 %v1685, %v1686
    %v1688 = vtanh.pop %v1687
    %v1689 = vmul.f32 %v1684, %v1688
    %v1690 = vsel %vm554, %v586, %v565
    %v1691 = vsel %vm555, %v594, %v573
    %v1692 = vsel %vm556, %v593, %v572
    %v1693 = vsel %vm557, %v595, %v574
    %v1694 = vpack.c.bf16 %v1689, %v1689
    %1695 = vmatprep.subr.bf16.mxu0 %v701
    %1696 = vmatpush1.bf16.msra.mxu0 %v700
    %1697 = vmatprep.subr.bf16.mxu0 %v705
    %1698 = vmatpush1.bf16.msra.mxu0 %v704
    %1699 = vmatprep.subr.bf16.mxu0 %v709
    %1700 = vmatpush1.bf16.msra.mxu0 %v708
    %1701 = vmatprep.subr.bf16.mxu0 %v713
    %1702 = vmatpush1.bf16.msra.mxu0 %v712
    %1703 = vmatprep.subr.bf16.mxu0 %v717
    %1704 = vmatpush1.bf16.msra.mxu0 %v716
    %1705 = vmatprep.subr.bf16.mxu0 %v721
    %1706 = vmatpush1.bf16.msra.mxu0 %v720
    %1707 = vmatprep.subr.bf16.mxu0 %v725
    %1708 = vmatpush1.bf16.msra.mxu0 %v724
    %1709 = vmatprep.subr.bf16.mxu0 %v729
    %1710 = vmatpush1.bf16.msra.mxu0 %v728
    %1711 = vmatprep.subr.bf16.mxu0 0
    %1712 = vmatpush1.bf16.msra.mxu0 0
    %1713 = vmatprep.subr.bf16.mxu0 0
    %1714 = vmatpush1.bf16.msra.mxu0 0
    %1715 = vmatprep.subr.bf16.mxu0 0
    %1716 = vmatpush1.bf16.msra.mxu0 0
    %1717 = vmatprep.subr.bf16.mxu0 0
    %1718 = vmatpush1.bf16.msra.mxu0 0
    %1719 = vmatprep.subr.bf16.mxu0 0
    %1720 = vmatpush1.bf16.msra.mxu0 0
    %1721 = vmatprep.subr.bf16.mxu0 0
    %1722 = vmatpush1.bf16.msra.mxu0 0
    %1723 = vmatprep.subr.bf16.mxu0 0
    %1724 = vmatpush1.bf16.msra.mxu0 0
    %1725 = vmatprep.subr.bf16.mxu0 0
    %1726 = vmatpush1.bf16.msra.mxu0 0
    %1727 = vmatprep.mubr.bf16.mxu0 0
    %1728 = vmatmul.mubr.bf16.gmra.mrb[0].mxu0 %v1694
    %v1729 = vpop.f32.mrb[0].mxu0
    %v1730 = vadd.f32 0.0, %v1729
    %v1731 = vpop.f32.mrb[0].mxu0
    %v1732 = vadd.f32 0.0, %v1731
    %v1733 = vpop.f32.mrb[0].mxu0
    %v1734 = vpop.f32.mrb[0].mxu0
    %1735 = vdwg.mxu0
    %1736 = vmatprep.subr.bf16.mxu0 %v703
    %1737 = vmatpush1.bf16.msra.mxu0 %v702
    %1738 = vmatprep.subr.bf16.mxu0 %v707
    %1739 = vmatpush1.bf16.msra.mxu0 %v706
    %1740 = vmatprep.subr.bf16.mxu0 %v711
    %1741 = vmatpush1.bf16.msra.mxu0 %v710
    %1742 = vmatprep.subr.bf16.mxu0 %v715
    %1743 = vmatpush1.bf16.msra.mxu0 %v714
    %1744 = vmatprep.subr.bf16.mxu0 %v719
    %1745 = vmatpush1.bf16.msra.mxu0 %v718
    %1746 = vmatprep.subr.bf16.mxu0 %v723
    %1747 = vmatpush1.bf16.msra.mxu0 %v722
    %1748 = vmatprep.subr.bf16.mxu0 %v727
    %1749 = vmatpush1.bf16.msra.mxu0 %v726
    %1750 = vmatprep.subr.bf16.mxu0 %v731
    %1751 = vmatpush1.bf16.msra.mxu0 %v730
    %1752 = vmatprep.subr.bf16.mxu0 0
    %1753 = vmatpush1.bf16.msra.mxu0 0
    %1754 = vmatprep.subr.bf16.mxu0 0
    %1755 = vmatpush1.bf16.msra.mxu0 0
    %1756 = vmatprep.subr.bf16.mxu0 0
    %1757 = vmatpush1.bf16.msra.mxu0 0
    %1758 = vmatprep.subr.bf16.mxu0 0
    %1759 = vmatpush1.bf16.msra.mxu0 0
    %1760 = vmatprep.subr.bf16.mxu0 0
    %1761 = vmatpush1.bf16.msra.mxu0 0
    %1762 = vmatprep.subr.bf16.mxu0 0
    %1763 = vmatpush1.bf16.msra.mxu0 0
    %1764 = vmatprep.subr.bf16.mxu0 0
    %1765 = vmatpush1.bf16.msra.mxu0 0
    %1766 = vmatprep.subr.bf16.mxu0 0
    %1767 = vmatpush1.bf16.msra.mxu0 0
    %1768 = vmatprep.mubr.bf16.mxu0 0
    %1769 = vmatmul.mubr.bf16.gmra.mrb[0].mxu0 %v1694
    %v1770 = vpop.f32.mrb[0].mxu0
    %v1771 = vadd.f32 0.0, %v1770
    %v1772 = vpop.f32.mrb[0].mxu0
    %v1773 = vadd.f32 0.0, %v1772
    %v1774 = vpop.f32.mrb[0].mxu0
    %v1775 = vpop.f32.mrb[0].mxu0
    %1776 = vdwg.mxu0
    %v1777 = vadd.f32 %v1690, %v1730
    %v1778 = vadd.f32 %v1691, %v1732
    %v1779 = vadd.f32 %v1692, %v1771
    %v1780 = vadd.f32 %v1693, %v1773
    %v1781 = vxor.u32 %v1777, 2147483648
    %v1782 = vmul.f32 %v1781, 1.442695
    %v1783 = vpow.pop %v1782
    %v1784 = vadd.f32 %v1783, 1.0
    %v1785 = vrcp.pop %v1784
    %v1786 = vmul.f32 1.0, %v1785
    %v1787 = vxor.u32 %v1778, 2147483648
    %v1788 = vmul.f32 %v1787, 1.442695
    %v1789 = vpow.pop %v1788
    %v1790 = vadd.f32 %v1789, 1.0
    %v1791 = vrcp.pop %v1790
    %v1792 = vmul.f32 1.0, %v1791
    %v1793 = vtanh.pop %v1779
    %v1794 = vxor.u32 %v1780, 2147483648
    %v1795 = vmul.f32 %v1794, 1.442695
    %v1796 = vpow.pop %v1795
    %v1797 = vadd.f32 %v1796, 1.0
    %v1798 = vrcp.pop %v1797
    %v1799 = vmul.f32 1.0, %v1798
    %v1800 = vmul.f32 %v1792, %v1687
    %v1801 = vmul.f32 %v1786, %v1793
    %v1802 = vadd.f32 %v1800, %v1801
    %v1803 = vtanh.pop %v1802
    %v1804 = vmul.f32 %v1799, %v1803
    %vm1805 = vcmask 523264
    %v1806 = vsel %vm1805, %v873, %v1804
    %v1807 = vsel %vm1805, %v1030, %v1689
    %v1808 = vsel %vm1805, %v1187, %v1574
    %v1809 = vsel %vm1805, %v1344, %v1459
    %v1810 = vsel %vm1805, %v1459, %v1344
    %v1811 = vsel %vm1805, %v1574, %v1187
    %v1812 = vsel %vm1805, %v1689, %v1030
    %v1813 = vsel %vm1805, %v1804, %v873
    %v1814 = vld [vmem:[#allocation4] sm:$0xff]
    %v1815 = vld [vmem:[#allocation4 + $0x8] sm:$0xff]
    %v1816 = vld [vmem:[#allocation4 + $0x10] sm:$0xff]
    %v1817 = vld [vmem:[#allocation4 + $0x18] sm:$0xff]
    %v1818 = vld [vmem:[#allocation4 + $0x20] sm:$0xff]
    %v1819 = vld [vmem:[#allocation4 + $0x28] sm:$0xff]
    %v1820 = vld [vmem:[#allocation4 + $0x30] sm:$0xff]
    %v1821 = vld [vmem:[#allocation4 + $0x38] sm:$0xff]
    %v1822 = vld [vmem:[#allocation4 + $0x40] sm:$0xff]
    %v1823 = vld [vmem:[#allocation4 + $0x48] sm:$0xff]
    %v1824 = vld [vmem:[#allocation4 + $0x50] sm:$0xff]
    %v1825 = vld [vmem:[#allocation4 + $0x58] sm:$0xff]
    %v1826 = vld [vmem:[#allocation4 + $0x60] sm:$0xff]
    %v1827 = vld [vmem:[#allocation4 + $0x68] sm:$0xff]
    %v1828 = vld [vmem:[#allocation4 + $0x70] sm:$0xff]
    %v1829 = vld [vmem:[#allocation4 + $0x78] sm:$0xff]
    %v1830 = vld [vmem:[#allocation4 + $0x80] sm:$0xff]
    %v1831 = vld [vmem:[#allocation4 + $0x88] sm:$0xff]
    %v1832 = vld [vmem:[#allocation4 + $0x90] sm:$0xff]
    %v1833 = vld [vmem:[#allocation4 + $0x98] sm:$0xff]
    %v1834 = vld [vmem:[#allocation4 + $0xa0] sm:$0xff]
    %v1835 = vld [vmem:[#allocation4 + $0xa8] sm:$0xff]
    %v1836 = vld [vmem:[#allocation4 + $0xb0] sm:$0xff]
    %v1837 = vld [vmem:[#allocation4 + $0xb8] sm:$0xff]
    %v1838 = vld [vmem:[#allocation4 + $0xc0] sm:$0xff]
    %v1839 = vld [vmem:[#allocation4 + $0xc8] sm:$0xff]
    %v1840 = vld [vmem:[#allocation4 + $0xd0] sm:$0xff]
    %v1841 = vld [vmem:[#allocation4 + $0xd8] sm:$0xff]
    %v1842 = vld [vmem:[#allocation4 + $0xe0] sm:$0xff]
    %v1843 = vld [vmem:[#allocation4 + $0xe8] sm:$0xff]
    %v1844 = vld [vmem:[#allocation4 + $0xf0] sm:$0xff]
    %v1845 = vld [vmem:[#allocation4 + $0xf8] sm:$0xff]
    %v1846 = vld [vmem:[#allocation6] sm:$0xff]
    %v1847 = vld [vmem:[#allocation6 + $0x8] sm:$0xff]
    %v1848 = vld [vmem:[#allocation6 + $0x10] sm:$0xff]
    %v1849 = vld [vmem:[#allocation6 + $0x18] sm:$0xff]
    %v1850 = vld [vmem:[#allocation6 + $0x20] sm:$0xff]
    %v1851 = vld [vmem:[#allocation6 + $0x28] sm:$0xff]
    %v1852 = vld [vmem:[#allocation6 + $0x30] sm:$0xff]
    %v1853 = vld [vmem:[#allocation6 + $0x38] sm:$0xff]
    %v1854 = vld [vmem:[#allocation6 + $0x40] sm:$0xff]
    %v1855 = vld [vmem:[#allocation6 + $0x48] sm:$0xff]
    %v1856 = vld [vmem:[#allocation6 + $0x50] sm:$0xff]
    %v1857 = vld [vmem:[#allocation6 + $0x58] sm:$0xff]
    %v1858 = vld [vmem:[#allocation6 + $0x60] sm:$0xff]
    %v1859 = vld [vmem:[#allocation6 + $0x68] sm:$0xff]
    %v1860 = vld [vmem:[#allocation6 + $0x70] sm:$0xff]
    %v1861 = vld [vmem:[#allocation6 + $0x78] sm:$0xff]
    %v1862 = vld [vmem:[#allocation6 + $0x80] sm:$0xff]
    %v1863 = vld [vmem:[#allocation6 + $0x88] sm:$0xff]
    %v1864 = vld [vmem:[#allocation6 + $0x90] sm:$0xff]
    %v1865 = vld [vmem:[#allocation6 + $0x98] sm:$0xff]
    %v1866 = vld [vmem:[#allocation6 + $0xa0] sm:$0xff]
    %v1867 = vld [vmem:[#allocation6 + $0xa8] sm:$0xff]
    %v1868 = vld [vmem:[#allocation6 + $0xb0] sm:$0xff]
    %v1869 = vld [vmem:[#allocation6 + $0xb8] sm:$0xff]
    %v1870 = vld [vmem:[#allocation6 + $0xc0] sm:$0xff]
    %v1871 = vld [vmem:[#allocation6 + $0xc8] sm:$0xff]
    %v1872 = vld [vmem:[#allocation6 + $0xd0] sm:$0xff]
    %v1873 = vld [vmem:[#allocation6 + $0xd8] sm:$0xff]
    %v1874 = vld [vmem:[#allocation6 + $0xe0] sm:$0xff]
    %v1875 = vld [vmem:[#allocation6 + $0xe8] sm:$0xff]
    %v1876 = vld [vmem:[#allocation6 + $0xf0] sm:$0xff]
    %v1877 = vld [vmem:[#allocation6 + $0xf8] sm:$0xff]
    %v1878 = vld [vmem:[%s7] sm:$0xf]
    %v1887 = vcombine.low %v1806, %v1807
    %v1888 = vcombine.low %v1808, %v1809
    %v1890 = vunpack.c.l.s4 1983009808
    %v1891 = vunpack.c.0.s8 %v1890
    %v1892 = vlaneseq
    %v1893 = vshrl.u32 %v1892, 7
    %v1894 = vsub.s32 %v1891, %v1893
    %v1895 = vrot.slane %v1887, %v1894
    %v1897 = vunpack.c.l.s4 1983009808
    %v1898 = vunpack.c.0.s8 %v1897
    %v1899 = vlaneseq
    %v1900 = vshrl.u32 %v1899, 7
    %v1901 = vsub.s32 %v1898, %v1900
    %v1902 = vrot.slane %v1888, %v1901
    %v1903 = vcombine.low %v1895, %v1902
    %v1904 = vcombine.low %v1810, %v1811
    %v1905 = vcombine.low %v1812, %v1813
    %v1907 = vunpack.c.l.s4 1983009808
    %v1908 = vunpack.c.0.s8 %v1907
    %v1909 = vlaneseq
    %v1910 = vshrl.u32 %v1909, 7
    %v1911 = vsub.s32 %v1908, %v1910
    %v1912 = vrot.slane %v1904, %v1911
    %v1914 = vunpack.c.l.s4 1983009808
    %v1915 = vunpack.c.0.s8 %v1914
    %v1916 = vlaneseq
    %v1917 = vshrl.u32 %v1916, 7
    %v1918 = vsub.s32 %v1915, %v1917
    %v1919 = vrot.slane %v1905, %v1918
    %v1920 = vcombine.low %v1912, %v1919
    %v1923 = vpack.c.bf16 %v1920, %v1903
    %v1925 = vlaneseq
    %v1926 = vshrl.u32 %v1925, 7
    %v1927 = vsub.s32 0, %v1926
    %v1928 = vrot.slane %v1878, %v1927
    %v1929 = vlaneseq
    %v1930 = vshrl.u32 %v1929, 7
    %v1931 = vsub.s32 1, %v1930
    %v1932 = vrot.slane %v1878, %v1931
    %v1933 = vlaneseq
    %v1934 = vshrl.u32 %v1933, 7
    %v1935 = vsub.s32 2, %v1934
    %v1936 = vrot.slane %v1878, %v1935
    %v1937 = vlaneseq
    %v1938 = vshrl.u32 %v1937, 7
    %v1939 = vsub.s32 3, %v1938
    %v1940 = vrot.slane %v1878, %v1939
    %v1977 = vunpack.c.l.b16 %v1814
    %v1978 = vunpack.c.h.b16 %v1814
    %v1979 = vunpack.c.l.b16 %v1815
    %v1980 = vunpack.c.h.b16 %v1815
    %v1981 = vunpack.c.l.b16 %v1816
    %v1982 = vunpack.c.h.b16 %v1816
    %v1983 = vunpack.c.l.b16 %v1817
    %v1984 = vunpack.c.h.b16 %v1817
    %v1985 = vunpack.c.l.b16 %v1818
    %v1986 = vunpack.c.h.b16 %v1818
    %v1987 = vunpack.c.l.b16 %v1819
    %v1988 = vunpack.c.h.b16 %v1819
    %v1989 = vunpack.c.l.b16 %v1820
    %v1990 = vunpack.c.h.b16 %v1820
    %v1991 = vunpack.c.l.b16 %v1821
    %v1992 = vunpack.c.h.b16 %v1821
    %v1993 = vunpack.c.l.b16 %v1822
    %v1994 = vunpack.c.h.b16 %v1822
    %v1995 = vunpack.c.l.b16 %v1823
    %v1996 = vunpack.c.h.b16 %v1823
    %v1997 = vunpack.c.l.b16 %v1824
    %v1998 = vunpack.c.h.b16 %v1824
    %v1999 = vunpack.c.l.b16 %v1825
    %v2000 = vunpack.c.h.b16 %v1825
    %v2001 = vunpack.c.l.b16 %v1826
    %v2002 = vunpack.c.h.b16 %v1826
    %v2003 = vunpack.c.l.b16 %v1827
    %v2004 = vunpack.c.h.b16 %v1827
    %v2005 = vunpack.c.l.b16 %v1828
    %v2006 = vunpack.c.h.b16 %v1828
    %v2007 = vunpack.c.l.b16 %v1829
    %v2008 = vunpack.c.h.b16 %v1829
    %v2009 = vunpack.c.l.b16 %v1830
    %v2010 = vunpack.c.h.b16 %v1830
    %v2011 = vunpack.c.l.b16 %v1831
    %v2012 = vunpack.c.h.b16 %v1831
    %v2013 = vunpack.c.l.b16 %v1832
    %v2014 = vunpack.c.h.b16 %v1832
    %v2015 = vunpack.c.l.b16 %v1833
    %v2016 = vunpack.c.h.b16 %v1833
    %v2017 = vunpack.c.l.b16 %v1834
    %v2018 = vunpack.c.h.b16 %v1834
    %v2019 = vunpack.c.l.b16 %v1835
    %v2020 = vunpack.c.h.b16 %v1835
    %v2021 = vunpack.c.l.b16 %v1836
    %v2022 = vunpack.c.h.b16 %v1836
    %v2023 = vunpack.c.l.b16 %v1837
    %v2024 = vunpack.c.h.b16 %v1837
    %v2025 = vunpack.c.l.b16 %v1838
    %v2026 = vunpack.c.h.b16 %v1838
    %v2027 = vunpack.c.l.b16 %v1839
    %v2028 = vunpack.c.h.b16 %v1839
    %v2029 = vunpack.c.l.b16 %v1840
    %v2030 = vunpack.c.h.b16 %v1840
    %v2031 = vunpack.c.l.b16 %v1841
    %v2032 = vunpack.c.h.b16 %v1841
    %v2033 = vunpack.c.l.b16 %v1842
    %v2034 = vunpack.c.h.b16 %v1842
    %v2035 = vunpack.c.l.b16 %v1843
    %v2036 = vunpack.c.h.b16 %v1843
    %v2037 = vunpack.c.l.b16 %v1844
    %v2038 = vunpack.c.h.b16 %v1844
    %v2039 = vunpack.c.l.b16 %v1845
    %v2040 = vunpack.c.h.b16 %v1845
    %v2041 = vpack.c.b16 %v1981, %v1977
    %v2042 = vpack.c.b16 %v1982, %v1978
    %v2043 = vpack.c.b16 %v1983, %v1979
    %v2044 = vpack.c.b16 %v1984, %v1980
    %v2045 = vpack.c.b16 %v1989, %v1985
    %v2046 = vpack.c.b16 %v1990, %v1986
    %v2047 = vpack.c.b16 %v1991, %v1987
    %v2048 = vpack.c.b16 %v1992, %v1988
    %v2049 = vpack.c.b16 %v1997, %v1993
    %v2050 = vpack.c.b16 %v1998, %v1994
    %v2051 = vpack.c.b16 %v1999, %v1995
    %v2052 = vpack.c.b16 %v2000, %v1996
    %v2053 = vpack.c.b16 %v2005, %v2001
    %v2054 = vpack.c.b16 %v2006, %v2002
    %v2055 = vpack.c.b16 %v2007, %v2003
    %v2056 = vpack.c.b16 %v2008, %v2004
    %v2057 = vpack.c.b16 %v2013, %v2009
    %v2058 = vpack.c.b16 %v2014, %v2010
    %v2059 = vpack.c.b16 %v2015, %v2011
    %v2060 = vpack.c.b16 %v2016, %v2012
    %v2061 = vpack.c.b16 %v2021, %v2017
    %v2062 = vpack.c.b16 %v2022, %v2018
    %v2063 = vpack.c.b16 %v2023, %v2019
    %v2064 = vpack.c.b16 %v2024, %v2020
    %v2065 = vpack.c.b16 %v2029, %v2025
    %v2066 = vpack.c.b16 %v2030, %v2026
    %v2067 = vpack.c.b16 %v2031, %v2027
    %v2068 = vpack.c.b16 %v2032, %v2028
    %v2069 = vpack.c.b16 %v2037, %v2033
    %v2070 = vpack.c.b16 %v2038, %v2034
    %v2071 = vpack.c.b16 %v2039, %v2035
    %v2072 = vpack.c.b16 %v2040, %v2036
    %2105 = vmatprep.subr.bf16.mxu0 %v2042
    %2106 = vmatpush1.bf16.msra.mxu0 %v2041
    %2107 = vmatprep.subr.bf16.mxu0 %v2046
    %2108 = vmatpush1.bf16.msra.mxu0 %v2045
    %2109 = vmatprep.subr.bf16.mxu0 %v2050
    %2110 = vmatpush1.bf16.msra.mxu0 %v2049
    %2111 = vmatprep.subr.bf16.mxu0 %v2054
    %2112 = vmatpush1.bf16.msra.mxu0 %v2053
    %2113 = vmatprep.subr.bf16.mxu0 %v2058
    %2114 = vmatpush1.bf16.msra.mxu0 %v2057
    %2115 = vmatprep.subr.bf16.mxu0 %v2062
    %2116 = vmatpush1.bf16.msra.mxu0 %v2061
    %2117 = vmatprep.subr.bf16.mxu0 %v2066
    %2118 = vmatpush1.bf16.msra.mxu0 %v2065
    %2119 = vmatprep.subr.bf16.mxu0 %v2070
    %2120 = vmatpush1.bf16.msra.mxu0 %v2069
    %2121 = vmatprep.subr.bf16.mxu0 0
    %2122 = vmatpush1.bf16.msra.mxu0 0
    %2123 = vmatprep.subr.bf16.mxu0 0
    %2124 = vmatpush1.bf16.msra.mxu0 0
    %2125 = vmatprep.subr.bf16.mxu0 0
    %2126 = vmatpush1.bf16.msra.mxu0 0
    %2127 = vmatprep.subr.bf16.mxu0 0
    %2128 = vmatpush1.bf16.msra.mxu0 0
    %2129 = vmatprep.subr.bf16.mxu0 0
    %2130 = vmatpush1.bf16.msra.mxu0 0
    %2131 = vmatprep.subr.bf16.mxu0 0
    %2132 = vmatpush1.bf16.msra.mxu0 0
    %2133 = vmatprep.subr.bf16.mxu0 0
    %2134 = vmatpush1.bf16.msra.mxu0 0
    %2135 = vmatprep.subr.bf16.mxu0 0
    %2136 = vmatpush1.bf16.msra.mxu0 0
    %2137 = vmatprep.mubr.bf16.mxu0 0
    %2138 = vmatmul.mubr.bf16.gmra.mrb[0].mxu0 %v1923
    %v2139 = vpop.f32.mrb[0].mxu0
    %v2140 = vadd.f32 %v1928, %v2139
    %v2141 = vpop.f32.mrb[0].mxu0
    %v2142 = vadd.f32 %v1932, %v2141
    %v2143 = vpop.f32.mrb[0].mxu0
    %v2144 = vadd.f32 %v1928, %v2143
    %v2145 = vpop.f32.mrb[0].mxu0
    %v2146 = vadd.f32 %v1932, %v2145
    %2147 = vdwg.mxu0
    %2148 = vmatprep.subr.bf16.mxu0 %v2044
    %2149 = vmatpush1.bf16.msra.mxu0 %v2043
    %2150 = vmatprep.subr.bf16.mxu0 %v2048
    %2151 = vmatpush1.bf16.msra.mxu0 %v2047
    %2152 = vmatprep.subr.bf16.mxu0 %v2052
    %2153 = vmatpush1.bf16.msra.mxu0 %v2051
    %2154 = vmatprep.subr.bf16.mxu0 %v2056
    %2155 = vmatpush1.bf16.msra.mxu0 %v2055
    %2156 = vmatprep.subr.bf16.mxu0 %v2060
    %2157 = vmatpush1.bf16.msra.mxu0 %v2059
    %2158 = vmatprep.subr.bf16.mxu0 %v2064
    %2159 = vmatpush1.bf16.msra.mxu0 %v2063
    %2160 = vmatprep.subr.bf16.mxu0 %v2068
    %2161 = vmatpush1.bf16.msra.mxu0 %v2067
    %2162 = vmatprep.subr.bf16.mxu0 %v2072
    %2163 = vmatpush1.bf16.msra.mxu0 %v2071
    %2164 = vmatprep.subr.bf16.mxu0 0
    %2165 = vmatpush1.bf16.msra.mxu0 0
    %2166 = vmatprep.subr.bf16.mxu0 0
    %2167 = vmatpush1.bf16.msra.mxu0 0
    %2168 = vmatprep.subr.bf16.mxu0 0
    %2169 = vmatpush1.bf16.msra.mxu0 0
    %2170 = vmatprep.subr.bf16.mxu0 0
    %2171 = vmatpush1.bf16.msra.mxu0 0
    %2172 = vmatprep.subr.bf16.mxu0 0
    %2173 = vmatpush1.bf16.msra.mxu0 0
    %2174 = vmatprep.subr.bf16.mxu0 0
    %2175 = vmatpush1.bf16.msra.mxu0 0
    %2176 = vmatprep.subr.bf16.mxu0 0
    %2177 = vmatpush1.bf16.msra.mxu0 0
    %2178 = vmatprep.subr.bf16.mxu0 0
    %2179 = vmatpush1.bf16.msra.mxu0 0
    %2180 = vmatprep.mubr.bf16.mxu0 0
    %2181 = vmatmul.mubr.bf16.gmra.mrb[0].mxu0 %v1923
    %v2182 = vpop.f32.mrb[0].mxu0
    %v2183 = vadd.f32 %v1936, %v2182
    %v2184 = vpop.f32.mrb[0].mxu0
    %v2185 = vadd.f32 %v1940, %v2184
    %v2186 = vpop.f32.mrb[0].mxu0
    %v2187 = vadd.f32 %v1936, %v2186
    %v2188 = vpop.f32.mrb[0].mxu0
    %v2189 = vadd.f32 %v1940, %v2188
    %2190 = vdwg.mxu0
    %v2199 = vcombine.low %v2140, %v2142
    %v2200 = vcombine.high %v2140, %v2142
    %v2201 = vcombine.low %v2183, %v2185
    %v2202 = vcombine.high %v2183, %v2185
    %v2204 = vunpack.c.l.s4 1983009808
    %v2205 = vunpack.c.0.s8 %v2204
    %v2206 = vlaneseq
    %v2207 = vshrl.u32 %v2206, 7
    %v2208 = vsub.s32 %v2205, %v2207
    %v2209 = vrot.slane %v2199, %v2208
    %v2211 = vunpack.c.l.s4 1983009808
    %v2212 = vunpack.c.0.s8 %v2211
    %v2213 = vlaneseq
    %v2214 = vshrl.u32 %v2213, 7
    %v2215 = vsub.s32 %v2212, %v2214
    %v2216 = vrot.slane %v2200, %v2215
    %v2218 = vunpack.c.l.s4 1983009808
    %v2219 = vunpack.c.0.s8 %v2218
    %v2220 = vlaneseq
    %v2221 = vshrl.u32 %v2220, 7
    %v2222 = vsub.s32 %v2219, %v2221
    %v2223 = vrot.slane %v2201, %v2222
    %v2225 = vunpack.c.l.s4 1983009808
    %v2226 = vunpack.c.0.s8 %v2225
    %v2227 = vlaneseq
    %v2228 = vshrl.u32 %v2227, 7
    %v2229 = vsub.s32 %v2226, %v2228
    %v2230 = vrot.slane %v2202, %v2229
    %v2231 = vcombine.low %v2209, %v2223
    %v2232 = vcombine.high %v2209, %v2223
    %v2233 = vcombine.low %v2216, %v2230
    %v2234 = vcombine.high %v2216, %v2230
    %v2235 = vcombine.low %v2144, %v2146
    %v2236 = vcombine.high %v2144, %v2146
    %v2237 = vcombine.low %v2187, %v2189
    %v2238 = vcombine.high %v2187, %v2189
    %v2240 = vunpack.c.l.s4 1983009808
    %v2241 = vunpack.c.0.s8 %v2240
    %v2242 = vlaneseq
    %v2243 = vshrl.u32 %v2242, 7
    %v2244 = vsub.s32 %v2241, %v2243
    %v2245 = vrot.slane %v2235, %v2244
    %v2247 = vunpack.c.l.s4 1983009808
    %v2248 = vunpack.c.0.s8 %v2247
    %v2249 = vlaneseq
    %v2250 = vshrl.u32 %v2249, 7
    %v2251 = vsub.s32 %v2248, %v2250
    %v2252 = vrot.slane %v2236, %v2251
    %v2254 = vunpack.c.l.s4 1983009808
    %v2255 = vunpack.c.0.s8 %v2254
    %v2256 = vlaneseq
    %v2257 = vshrl.u32 %v2256, 7
    %v2258 = vsub.s32 %v2255, %v2257
    %v2259 = vrot.slane %v2237, %v2258
    %v2261 = vunpack.c.l.s4 1983009808
    %v2262 = vunpack.c.0.s8 %v2261
    %v2263 = vlaneseq
    %v2264 = vshrl.u32 %v2263, 7
    %v2265 = vsub.s32 %v2262, %v2264
    %v2266 = vrot.slane %v2238, %v2265
    %v2267 = vcombine.low %v2245, %v2259
    %v2268 = vcombine.high %v2245, %v2259
    %v2269 = vcombine.low %v2252, %v2266
    %v2270 = vcombine.high %v2252, %v2266
    %v2271 = vcombine.high %v2231, %v2231
    %v2273 = vunpack.c.l.s4 1983009808
    %v2274 = vunpack.c.0.s8 %v2273
    %v2275 = vlaneseq
    %v2276 = vshrl.u32 %v2275, 7
    %v2277 = vsub.s32 %v2274, %v2276
    %v2278 = vrot.slane %v2231, %v2277
    %v2280 = vunpack.c.l.s4 1983009808
    %v2281 = vunpack.c.0.s8 %v2280
    %v2282 = vlaneseq
    %v2283 = vshrl.u32 %v2282, 7
    %v2284 = vsub.s32 %v2281, %v2283
    %v2285 = vrot.slane %v2271, %v2284
    %v2286 = vcombine.high %v2278, %v2278
    %v2287 = vcombine.high %v2285, %v2285
    %v2292 = vcombine.high %v2270, %v2270
    %v2294 = vunpack.c.l.s4 1983009808
    %v2295 = vunpack.c.0.s8 %v2294
    %v2296 = vlaneseq
    %v2297 = vshrl.u32 %v2296, 7
    %v2298 = vsub.s32 %v2295, %v2297
    %v2299 = vrot.slane %v2270, %v2298
    %v2301 = vunpack.c.l.s4 1983009808
    %v2302 = vunpack.c.0.s8 %v2301
    %v2303 = vlaneseq
    %v2304 = vshrl.u32 %v2303, 7
    %v2305 = vsub.s32 %v2302, %v2304
    %v2306 = vrot.slane %v2292, %v2305
    %v2307 = vcombine.high %v2299, %v2299
    %v2308 = vcombine.high %v2306, %v2306
    %v2313 = vsel %vm554, %v2278, %v2299
    %v2314 = vsel %vm555, %v2286, %v2307
    %v2315 = vsel %vm556, %v2285, %v2306
    %v2316 = vsel %vm557, %v2287, %v2308
    %v2349 = vunpack.c.l.b16 %v1846
    %v2350 = vunpack.c.h.b16 %v1846
    %v2351 = vunpack.c.l.b16 %v1847
    %v2352 = vunpack.c.h.b16 %v1847
    %v2353 = vunpack.c.l.b16 %v1848
    %v2354 = vunpack.c.h.b16 %v1848
    %v2355 = vunpack.c.l.b16 %v1849
    %v2356 = vunpack.c.h.b16 %v1849
    %v2357 = vunpack.c.l.b16 %v1850
    %v2358 = vunpack.c.h.b16 %v1850
    %v2359 = vunpack.c.l.b16 %v1851
    %v2360 = vunpack.c.h.b16 %v1851
    %v2361 = vunpack.c.l.b16 %v1852
    %v2362 = vunpack.c.h.b16 %v1852
    %v2363 = vunpack.c.l.b16 %v1853
    %v2364 = vunpack.c.h.b16 %v1853
    %v2365 = vunpack.c.l.b16 %v1854
    %v2366 = vunpack.c.h.b16 %v1854
    %v2367 = vunpack.c.l.b16 %v1855
    %v2368 = vunpack.c.h.b16 %v1855
    %v2369 = vunpack.c.l.b16 %v1856
    %v2370 = vunpack.c.h.b16 %v1856
    %v2371 = vunpack.c.l.b16 %v1857
    %v2372 = vunpack.c.h.b16 %v1857
    %v2373 = vunpack.c.l.b16 %v1858
    %v2374 = vunpack.c.h.b16 %v1858
    %v2375 = vunpack.c.l.b16 %v1859
    %v2376 = vunpack.c.h.b16 %v1859
    %v2377 = vunpack.c.l.b16 %v1860
    %v2378 = vunpack.c.h.b16 %v1860
    %v2379 = vunpack.c.l.b16 %v1861
    %v2380 = vunpack.c.h.b16 %v1861
    %v2381 = vunpack.c.l.b16 %v1862
    %v2382 = vunpack.c.h.b16 %v1862
    %v2383 = vunpack.c.l.b16 %v1863
    %v2384 = vunpack.c.h.b16 %v1863
    %v2385 = vunpack.c.l.b16 %v1864
    %v2386 = vunpack.c.h.b16 %v1864
    %v2387 = vunpack.c.l.b16 %v1865
    %v2388 = vunpack.c.h.b16 %v1865
    %v2389 = vunpack.c.l.b16 %v1866
    %v2390 = vunpack.c.h.b16 %v1866
    %v2391 = vunpack.c.l.b16 %v1867
    %v2392 = vunpack.c.h.b16 %v1867
    %v2393 = vunpack.c.l.b16 %v1868
    %v2394 = vunpack.c.h.b16 %v1868
    %v2395 = vunpack.c.l.b16 %v1869
    %v2396 = vunpack.c.h.b16 %v1869
    %v2397 = vunpack.c.l.b16 %v1870
    %v2398 = vunpack.c.h.b16 %v1870
    %v2399 = vunpack.c.l.b16 %v1871
    %v2400 = vunpack.c.h.b16 %v1871
    %v2401 = vunpack.c.l.b16 %v1872
    %v2402 = vunpack.c.h.b16 %v1872
    %v2403 = vunpack.c.l.b16 %v1873
    %v2404 = vunpack.c.h.b16 %v1873
    %v2405 = vunpack.c.l.b16 %v1874
    %v2406 = vunpack.c.h.b16 %v1874
    %v2407 = vunpack.c.l.b16 %v1875
    %v2408 = vunpack.c.h.b16 %v1875
    %v2409 = vunpack.c.l.b16 %v1876
    %v2410 = vunpack.c.h.b16 %v1876
    %v2411 = vunpack.c.l.b16 %v1877
    %v2412 = vunpack.c.h.b16 %v1877
    %v2413 = vpack.c.b16 %v2353, %v2349
    %v2414 = vpack.c.b16 %v2354, %v2350
    %v2415 = vpack.c.b16 %v2355, %v2351
    %v2416 = vpack.c.b16 %v2356, %v2352
    %v2417 = vpack.c.b16 %v2361, %v2357
    %v2418 = vpack.c.b16 %v2362, %v2358
    %v2419 = vpack.c.b16 %v2363, %v2359
    %v2420 = vpack.c.b16 %v2364, %v2360
    %v2421 = vpack.c.b16 %v2369, %v2365
    %v2422 = vpack.c.b16 %v2370, %v2366
    %v2423 = vpack.c.b16 %v2371, %v2367
    %v2424 = vpack.c.b16 %v2372, %v2368
    %v2425 = vpack.c.b16 %v2377, %v2373
    %v2426 = vpack.c.b16 %v2378, %v2374
    %v2427 = vpack.c.b16 %v2379, %v2375
    %v2428 = vpack.c.b16 %v2380, %v2376
    %v2429 = vpack.c.b16 %v2385, %v2381
    %v2430 = vpack.c.b16 %v2386, %v2382
    %v2431 = vpack.c.b16 %v2387, %v2383
    %v2432 = vpack.c.b16 %v2388, %v2384
    %v2433 = vpack.c.b16 %v2393, %v2389
    %v2434 = vpack.c.b16 %v2394, %v2390
    %v2435 = vpack.c.b16 %v2395, %v2391
    %v2436 = vpack.c.b16 %v2396, %v2392
    %v2437 = vpack.c.b16 %v2401, %v2397
    %v2438 = vpack.c.b16 %v2402, %v2398
    %v2439 = vpack.c.b16 %v2403, %v2399
    %v2440 = vpack.c.b16 %v2404, %v2400
    %v2441 = vpack.c.b16 %v2409, %v2405
    %v2442 = vpack.c.b16 %v2410, %v2406
    %v2443 = vpack.c.b16 %v2411, %v2407
    %v2444 = vpack.c.b16 %v2412, %v2408
    %2477 = vmatprep.subr.bf16.mxu0 %v2414
    %2478 = vmatpush1.bf16.msra.mxu0 %v2413
    %2479 = vmatprep.subr.bf16.mxu0 %v2418
    %2480 = vmatpush1.bf16.msra.mxu0 %v2417
    %2481 = vmatprep.subr.bf16.mxu0 %v2422
    %2482 = vmatpush1.bf16.msra.mxu0 %v2421
    %2483 = vmatprep.subr.bf16.mxu0 %v2426
    %2484 = vmatpush1.bf16.msra.mxu0 %v2425
    %2485 = vmatprep.subr.bf16.mxu0 %v2430
    %2486 = vmatpush1.bf16.msra.mxu0 %v2429
    %2487 = vmatprep.subr.bf16.mxu0 %v2434
    %2488 = vmatpush1.bf16.msra.mxu0 %v2433
    %2489 = vmatprep.subr.bf16.mxu0 %v2438
    %2490 = vmatpush1.bf16.msra.mxu0 %v2437
    %2491 = vmatprep.subr.bf16.mxu0 %v2442
    %2492 = vmatpush1.bf16.msra.mxu0 %v2441
    %2493 = vmatprep.subr.bf16.mxu0 0
    %2494 = vmatpush1.bf16.msra.mxu0 0
    %2495 = vmatprep.subr.bf16.mxu0 0
    %2496 = vmatpush1.bf16.msra.mxu0 0
    %2497 = vmatprep.subr.bf16.mxu0 0
    %2498 = vmatpush1.bf16.msra.mxu0 0
    %2499 = vmatprep.subr.bf16.mxu0 0
    %2500 = vmatpush1.bf16.msra.mxu0 0
    %2501 = vmatprep.subr.bf16.mxu0 0
    %2502 = vmatpush1.bf16.msra.mxu0 0
    %2503 = vmatprep.subr.bf16.mxu0 0
    %2504 = vmatpush1.bf16.msra.mxu0 0
    %2505 = vmatprep.subr.bf16.mxu0 0
    %2506 = vmatpush1.bf16.msra.mxu0 0
    %2507 = vmatprep.subr.bf16.mxu0 0
    %2508 = vmatpush1.bf16.msra.mxu0 0
    %2509 = vmatprep.mubr.bf16.mxu0 0
    %2510 = vmatmul.mubr.bf16.gmra.mrb[0].mxu0 0
    %v2511 = vpop.f32.mrb[0].mxu0
    %v2512 = vadd.f32 0.0, %v2511
    %v2513 = vpop.f32.mrb[0].mxu0
    %v2514 = vadd.f32 0.0, %v2513
    %v2515 = vpop.f32.mrb[0].mxu0
    %v2516 = vpop.f32.mrb[0].mxu0
    %2517 = vdwg.mxu0
    %2518 = vmatprep.subr.bf16.mxu0 %v2416
    %2519 = vmatpush1.bf16.msra.mxu0 %v2415
    %2520 = vmatprep.subr.bf16.mxu0 %v2420
    %2521 = vmatpush1.bf16.msra.mxu0 %v2419
    %2522 = vmatprep.subr.bf16.mxu0 %v2424
    %2523 = vmatpush1.bf16.msra.mxu0 %v2423
    %2524 = vmatprep.subr.bf16.mxu0 %v2428
    %2525 = vmatpush1.bf16.msra.mxu0 %v2427
    %2526 = vmatprep.subr.bf16.mxu0 %v2432
    %2527 = vmatpush1.bf16.msra.mxu0 %v2431
    %2528 = vmatprep.subr.bf16.mxu0 %v2436
    %2529 = vmatpush1.bf16.msra.mxu0 %v2435
    %2530 = vmatprep.subr.bf16.mxu0 %v2440
    %2531 = vmatpush1.bf16.msra.mxu0 %v2439
    %2532 = vmatprep.subr.bf16.mxu0 %v2444
    %2533 = vmatpush1.bf16.msra.mxu0 %v2443
    %2534 = vmatprep.subr.bf16.mxu0 0
    %2535 = vmatpush1.bf16.msra.mxu0 0
    %2536 = vmatprep.subr.bf16.mxu0 0
    %2537 = vmatpush1.bf16.msra.mxu0 0
    %2538 = vmatprep.subr.bf16.mxu0 0
    %2539 = vmatpush1.bf16.msra.mxu0 0
    %2540 = vmatprep.subr.bf16.mxu0 0
    %2541 = vmatpush1.bf16.msra.mxu0 0
    %2542 = vmatprep.subr.bf16.mxu0 0
    %2543 = vmatpush1.bf16.msra.mxu0 0
    %2544 = vmatprep.subr.bf16.mxu0 0
    %2545 = vmatpush1.bf16.msra.mxu0 0
    %2546 = vmatprep.subr.bf16.mxu0 0
    %2547 = vmatpush1.bf16.msra.mxu0 0
    %2548 = vmatprep.subr.bf16.mxu0 0
    %2549 = vmatpush1.bf16.msra.mxu0 0
    %2550 = vmatprep.mubr.bf16.mxu0 0
    %2551 = vmatmul.mubr.bf16.gmra.mrb[0].mxu0 0
    %v2552 = vpop.f32.mrb[0].mxu0
    %v2553 = vadd.f32 0.0, %v2552
    %v2554 = vpop.f32.mrb[0].mxu0
    %v2555 = vadd.f32 0.0, %v2554
    %v2556 = vpop.f32.mrb[0].mxu0
    %v2557 = vpop.f32.mrb[0].mxu0
    %2558 = vdwg.mxu0
    %v2559 = vadd.f32 %v2313, %v2512
    %v2560 = vadd.f32 %v2314, %v2514
    %v2561 = vadd.f32 %v2315, %v2553
    %v2562 = vadd.f32 %v2316, %v2555
    %v2563 = vxor.u32 %v2559, 2147483648
    %v2564 = vmul.f32 %v2563, 1.442695
    %v2565 = vpow.pop %v2564
    %v2566 = vadd.f32 %v2565, 1.0
    %v2567 = vrcp.pop %v2566
    %v2568 = vmul.f32 1.0, %v2567
    %v2569 = vxor.u32 %v2560, 2147483648
    %v2570 = vmul.f32 %v2569, 1.442695
    %v2571 = vpow.pop %v2570
    %v2572 = vadd.f32 %v2571, 1.0
    %v2573 = vrcp.pop %v2572
    %v2574 = vmul.f32 1.0, %v2573
    %v2575 = vtanh.pop %v2561
    %v2576 = vxor.u32 %v2562, 2147483648
    %v2577 = vmul.f32 %v2576, 1.442695
    %v2578 = vpow.pop %v2577
    %v2579 = vadd.f32 %v2578, 1.0
    %v2580 = vrcp.pop %v2579
    %v2581 = vmul.f32 1.0, %v2580
    %v2582 = vmul.f32 %v2574, 0.0
    %v2583 = vmul.f32 %v2568, %v2575
    %v2584 = vadd.f32 %v2582, %v2583
    %v2585 = vtanh.pop %v2584
    %v2586 = vmul.f32 %v2581, %v2585
    %v2587 = vcombine.high %v2232, %v2232
    %v2589 = vunpack.c.l.s4 1983009808
    %v2590 = vunpack.c.0.s8 %v2589
    %v2591 = vlaneseq
    %v2592 = vshrl.u32 %v2591, 7
    %v2593 = vsub.s32 %v2590, %v2592
    %v2594 = vrot.slane %v2232, %v2593
    %v2596 = vunpack.c.l.s4 1983009808
    %v2597 = vunpack.c.0.s8 %v2596
    %v2598 = vlaneseq
    %v2599 = vshrl.u32 %v2598, 7
    %v2600 = vsub.s32 %v2597, %v2599
    %v2601 = vrot.slane %v2587, %v2600
    %v2602 = vcombine.high %v2594, %v2594
    %v2603 = vcombine.high %v2601, %v2601
    %v2608 = vcombine.high %v2269, %v2269
    %v2610 = vunpack.c.l.s4 1983009808
    %v2611 = vunpack.c.0.s8 %v2610
    %v2612 = vlaneseq
    %v2613 = vshrl.u32 %v2612, 7
    %v2614 = vsub.s32 %v2611, %v2613
    %v2615 = vrot.slane %v2269, %v2614
    %v2617 = vunpack.c.l.s4 1983009808
    %v2618 = vunpack.c.0.s8 %v2617
    %v2619 = vlaneseq
    %v2620 = vshrl.u32 %v2619, 7
    %v2621 = vsub.s32 %v2618, %v2620
    %v2622 = vrot.slane %v2608, %v2621
    %v2623 = vcombine.high %v2615, %v2615
    %v2624 = vcombine.high %v2622, %v2622
    %v2629 = vsel %vm554, %v2594, %v2615
    %v2630 = vsel %vm555, %v2602, %v2623
    %v2631 = vsel %vm556, %v2601, %v2622
    %v2632 = vsel %vm557, %v2603, %v2624
    %v2633 = vpack.c.bf16 %v2586, %v2586
    %2634 = vmatprep.subr.bf16.mxu0 %v2414
    %2635 = vmatpush1.bf16.msra.mxu0 %v2413
    %2636 = vmatprep.subr.bf16.mxu0 %v2418
    %2637 = vmatpush1.bf16.msra.mxu0 %v2417
    %2638 = vmatprep.subr.bf16.mxu0 %v2422
    %2639 = vmatpush1.bf16.msra.mxu0 %v2421
    %2640 = vmatprep.subr.bf16.mxu0 %v2426
    %2641 = vmatpush1.bf16.msra.mxu0 %v2425
    %2642 = vmatprep.subr.bf16.mxu0 %v2430
    %2643 = vmatpush1.bf16.msra.mxu0 %v2429
    %2644 = vmatprep.subr.bf16.mxu0 %v2434
    %2645 = vmatpush1.bf16.msra.mxu0 %v2433
    %2646 = vmatprep.subr.bf16.mxu0 %v2438
    %2647 = vmatpush1.bf16.msra.mxu0 %v2437
    %2648 = vmatprep.subr.bf16.mxu0 %v2442
    %2649 = vmatpush1.bf16.msra.mxu0 %v2441
    %2650 = vmatprep.subr.bf16.mxu0 0
    %2651 = vmatpush1.bf16.msra.mxu0 0
    %2652 = vmatprep.subr.bf16.mxu0 0
    %2653 = vmatpush1.bf16.msra.mxu0 0
    %2654 = vmatprep.subr.bf16.mxu0 0
    %2655 = vmatpush1.bf16.msra.mxu0 0
    %2656 = vmatprep.subr.bf16.mxu0 0
    %2657 = vmatpush1.bf16.msra.mxu0 0
    %2658 = vmatprep.subr.bf16.mxu0 0
    %2659 = vmatpush1.bf16.msra.mxu0 0
    %2660 = vmatprep.subr.bf16.mxu0 0
    %2661 = vmatpush1.bf16.msra.mxu0 0
    %2662 = vmatprep.subr.bf16.mxu0 0
    %2663 = vmatpush1.bf16.msra.mxu0 0
    %2664 = vmatprep.subr.bf16.mxu0 0
    %2665 = vmatpush1.bf16.msra.mxu0 0
    %2666 = vmatprep.mubr.bf16.mxu0 0
    %2667 = vmatmul.mubr.bf16.gmra.mrb[0].mxu0 %v2633
    %v2668 = vpop.f32.mrb[0].mxu0
    %v2669 = vadd.f32 0.0, %v2668
    %v2670 = vpop.f32.mrb[0].mxu0
    %v2671 = vadd.f32 0.0, %v2670
    %v2672 = vpop.f32.mrb[0].mxu0
    %v2673 = vpop.f32.mrb[0].mxu0
    %2674 = vdwg.mxu0
    %2675 = vmatprep.subr.bf16.mxu0 %v2416
    %2676 = vmatpush1.bf16.msra.mxu0 %v2415
    %2677 = vmatprep.subr.bf16.mxu0 %v2420
    %2678 = vmatpush1.bf16.msra.mxu0 %v2419
    %2679 = vmatprep.subr.bf16.mxu0 %v2424
    %2680 = vmatpush1.bf16.msra.mxu0 %v2423
    %2681 = vmatprep.subr.bf16.mxu0 %v2428
    %2682 = vmatpush1.bf16.msra.mxu0 %v2427
    %2683 = vmatprep.subr.bf16.mxu0 %v2432
    %2684 = vmatpush1.bf16.msra.mxu0 %v2431
    %2685 = vmatprep.subr.bf16.mxu0 %v2436
    %2686 = vmatpush1.bf16.msra.mxu0 %v2435
    %2687 = vmatprep.subr.bf16.mxu0 %v2440
    %2688 = vmatpush1.bf16.msra.mxu0 %v2439
    %2689 = vmatprep.subr.bf16.mxu0 %v2444
    %2690 = vmatpush1.bf16.msra.mxu0 %v2443
    %2691 = vmatprep.subr.bf16.mxu0 0
    %2692 = vmatpush1.bf16.msra.mxu0 0
    %2693 = vmatprep.subr.bf16.mxu0 0
    %2694 = vmatpush1.bf16.msra.mxu0 0
    %2695 = vmatprep.subr.bf16.mxu0 0
    %2696 = vmatpush1.bf16.msra.mxu0 0
    %2697 = vmatprep.subr.bf16.mxu0 0
    %2698 = vmatpush1.bf16.msra.mxu0 0
    %2699 = vmatprep.subr.bf16.mxu0 0
    %2700 = vmatpush1.bf16.msra.mxu0 0
    %2701 = vmatprep.subr.bf16.mxu0 0
    %2702 = vmatpush1.bf16.msra.mxu0 0
    %2703 = vmatprep.subr.bf16.mxu0 0
    %2704 = vmatpush1.bf16.msra.mxu0 0
    %2705 = vmatprep.subr.bf16.mxu0 0
    %2706 = vmatpush1.bf16.msra.mxu0 0
    %2707 = vmatprep.mubr.bf16.mxu0 0
    %2708 = vmatmul.mubr.bf16.gmra.mrb[0].mxu0 %v2633
    %v2709 = vpop.f32.mrb[0].mxu0
    %v2710 = vadd.f32 0.0, %v2709
    %v2711 = vpop.f32.mrb[0].mxu0
    %v2712 = vadd.f32 0.0, %v2711
    %v2713 = vpop.f32.mrb[0].mxu0
    %v2714 = vpop.f32.mrb[0].mxu0
    %2715 = vdwg.mxu0
    %v2716 = vadd.f32 %v2629, %v2669
    %v2717 = vadd.f32 %v2630, %v2671
    %v2718 = vadd.f32 %v2631, %v2710
    %v2719 = vadd.f32 %v2632, %v2712
    %v2720 = vxor.u32 %v2716, 2147483648
    %v2721 = vmul.f32 %v2720, 1.442695
    %v2722 = vpow.pop %v2721
    %v2723 = vadd.f32 %v2722, 1.0
    %v2724 = vrcp.pop %v2723
    %v2725 = vmul.f32 1.0, %v2724
    %v2726 = vxor.u32 %v2717, 2147483648
    %v2727 = vmul.f32 %v2726, 1.442695
    %v2728 = vpow.pop %v2727
    %v2729 = vadd.f32 %v2728, 1.0
    %v2730 = vrcp.pop %v2729
    %v2731 = vmul.f32 1.0, %v2730
    %v2732 = vtanh.pop %v2718
    %v2733 = vxor.u32 %v2719, 2147483648
    %v2734 = vmul.f32 %v2733, 1.442695
    %v2735 = vpow.pop %v2734
    %v2736 = vadd.f32 %v2735, 1.0
    %v2737 = vrcp.pop %v2736
    %v2738 = vmul.f32 1.0, %v2737
    %v2739 = vmul.f32 %v2731, %v2584
    %v2740 = vmul.f32 %v2725, %v2732
    %v2741 = vadd.f32 %v2739, %v2740
    %v2742 = vtanh.pop %v2741
    %v2743 = vmul.f32 %v2738, %v2742
    %v2744 = vcombine.high %v2233, %v2233
    %v2746 = vunpack.c.l.s4 1983009808
    %v2747 = vunpack.c.0.s8 %v2746
    %v2748 = vlaneseq
    %v2749 = vshrl.u32 %v2748, 7
    %v2750 = vsub.s32 %v2747, %v2749
    %v2751 = vrot.slane %v2233, %v2750
    %v2753 = vunpack.c.l.s4 1983009808
    %v2754 = vunpack.c.0.s8 %v2753
    %v2755 = vlaneseq
    %v2756 = vshrl.u32 %v2755, 7
    %v2757 = vsub.s32 %v2754, %v2756
    %v2758 = vrot.slane %v2744, %v2757
    %v2759 = vcombine.high %v2751, %v2751
    %v2760 = vcombine.high %v2758, %v2758
    %v2765 = vcombine.high %v2268, %v2268
    %v2767 = vunpack.c.l.s4 1983009808
    %v2768 = vunpack.c.0.s8 %v2767
    %v2769 = vlaneseq
    %v2770 = vshrl.u32 %v2769, 7
    %v2771 = vsub.s32 %v2768, %v2770
    %v2772 = vrot.slane %v2268, %v2771
    %v2774 = vunpack.c.l.s4 1983009808
    %v2775 = vunpack.c.0.s8 %v2774
    %v2776 = vlaneseq
    %v2777 = vshrl.u32 %v2776, 7
    %v2778 = vsub.s32 %v2775, %v2777
    %v2779 = vrot.slane %v2765, %v2778
    %v2780 = vcombine.high %v2772, %v2772
    %v2781 = vcombine.high %v2779, %v2779
    %v2786 = vsel %vm554, %v2751, %v2772
    %v2787 = vsel %vm555, %v2759, %v2780
    %v2788 = vsel %vm556, %v2758, %v2779
    %v2789 = vsel %vm557, %v2760, %v2781
    %v2790 = vpack.c.bf16 %v2743, %v2743
    %2791 = vmatprep.subr.bf16.mxu0 %v2414
    %2792 = vmatpush1.bf16.msra.mxu0 %v2413
    %2793 = vmatprep.subr.bf16.mxu0 %v2418
    %2794 = vmatpush1.bf16.msra.mxu0 %v2417
    %2795 = vmatprep.subr.bf16.mxu0 %v2422
    %2796 = vmatpush1.bf16.msra.mxu0 %v2421
    %2797 = vmatprep.subr.bf16.mxu0 %v2426
    %2798 = vmatpush1.bf16.msra.mxu0 %v2425
    %2799 = vmatprep.subr.bf16.mxu0 %v2430
    %2800 = vmatpush1.bf16.msra.mxu0 %v2429
    %2801 = vmatprep.subr.bf16.mxu0 %v2434
    %2802 = vmatpush1.bf16.msra.mxu0 %v2433
    %2803 = vmatprep.subr.bf16.mxu0 %v2438
    %2804 = vmatpush1.bf16.msra.mxu0 %v2437
    %2805 = vmatprep.subr.bf16.mxu0 %v2442
    %2806 = vmatpush1.bf16.msra.mxu0 %v2441
    %2807 = vmatprep.subr.bf16.mxu0 0
    %2808 = vmatpush1.bf16.msra.mxu0 0
    %2809 = vmatprep.subr.bf16.mxu0 0
    %2810 = vmatpush1.bf16.msra.mxu0 0
    %2811 = vmatprep.subr.bf16.mxu0 0
    %2812 = vmatpush1.bf16.msra.mxu0 0
    %2813 = vmatprep.subr.bf16.mxu0 0
    %2814 = vmatpush1.bf16.msra.mxu0 0
    %2815 = vmatprep.subr.bf16.mxu0 0
    %2816 = vmatpush1.bf16.msra.mxu0 0
    %2817 = vmatprep.subr.bf16.mxu0 0
    %2818 = vmatpush1.bf16.msra.mxu0 0
    %2819 = vmatprep.subr.bf16.mxu0 0
    %2820 = vmatpush1.bf16.msra.mxu0 0
    %2821 = vmatprep.subr.bf16.mxu0 0
    %2822 = vmatpush1.bf16.msra.mxu0 0
    %2823 = vmatprep.mubr.bf16.mxu0 0
    %2824 = vmatmul.mubr.bf16.gmra.mrb[0].mxu0 %v2790
    %v2825 = vpop.f32.mrb[0].mxu0
    %v2826 = vadd.f32 0.0, %v2825
    %v2827 = vpop.f32.mrb[0].mxu0
    %v2828 = vadd.f32 0.0, %v2827
    %v2829 = vpop.f32.mrb[0].mxu0
    %v2830 = vpop.f32.mrb[0].mxu0
    %2831 = vdwg.mxu0
    %2832 = vmatprep.subr.bf16.mxu0 %v2416
    %2833 = vmatpush1.bf16.msra.mxu0 %v2415
    %2834 = vmatprep.subr.bf16.mxu0 %v2420
    %2835 = vmatpush1.bf16.msra.mxu0 %v2419
    %2836 = vmatprep.subr.bf16.mxu0 %v2424
    %2837 = vmatpush1.bf16.msra.mxu0 %v2423
    %2838 = vmatprep.subr.bf16.mxu0 %v2428
    %2839 = vmatpush1.bf16.msra.mxu0 %v2427
    %2840 = vmatprep.subr.bf16.mxu0 %v2432
    %2841 = vmatpush1.bf16.msra.mxu0 %v2431
    %2842 = vmatprep.subr.bf16.mxu0 %v2436
    %2843 = vmatpush1.bf16.msra.mxu0 %v2435
    %2844 = vmatprep.subr.bf16.mxu0 %v2440
    %2845 = vmatpush1.bf16.msra.mxu0 %v2439
    %2846 = vmatprep.subr.bf16.mxu0 %v2444
    %2847 = vmatpush1.bf16.msra.mxu0 %v2443
    %2848 = vmatprep.subr.bf16.mxu0 0
    %2849 = vmatpush1.bf16.msra.mxu0 0
    %2850 = vmatprep.subr.bf16.mxu0 0
    %2851 = vmatpush1.bf16.msra.mxu0 0
    %2852 = vmatprep.subr.bf16.mxu0 0
    %2853 = vmatpush1.bf16.msra.mxu0 0
    %2854 = vmatprep.subr.bf16.mxu0 0
    %2855 = vmatpush1.bf16.msra.mxu0 0
    %2856 = vmatprep.subr.bf16.mxu0 0
    %2857 = vmatpush1.bf16.msra.mxu0 0
    %2858 = vmatprep.subr.bf16.mxu0 0
    %2859 = vmatpush1.bf16.msra.mxu0 0
    %2860 = vmatprep.subr.bf16.mxu0 0
    %2861 = vmatpush1.bf16.msra.mxu0 0
    %2862 = vmatprep.subr.bf16.mxu0 0
    %2863 = vmatpush1.bf16.msra.mxu0 0
    %2864 = vmatprep.mubr.bf16.mxu0 0
    %2865 = vmatmul.mubr.bf16.gmra.mrb[0].mxu0 %v2790
    %v2866 = vpop.f32.mrb[0].mxu0
    %v2867 = vadd.f32 0.0, %v2866
    %v2868 = vpop.f32.mrb[0].mxu0
    %v2869 = vadd.f32 0.0, %v2868
    %v2870 = vpop.f32.mrb[0].mxu0
    %v2871 = vpop.f32.mrb[0].mxu0
    %2872 = vdwg.mxu0
    %v2873 = vadd.f32 %v2786, %v2826
    %v2874 = vadd.f32 %v2787, %v2828
    %v2875 = vadd.f32 %v2788, %v2867
    %v2876 = vadd.f32 %v2789, %v2869
    %v2877 = vxor.u32 %v2873, 2147483648
    %v2878 = vmul.f32 %v2877, 1.442695
    %v2879 = vpow.pop %v2878
    %v2880 = vadd.f32 %v2879, 1.0
    %v2881 = vrcp.pop %v2880
    %v2882 = vmul.f32 1.0, %v2881
    %v2883 = vxor.u32 %v2874, 2147483648
    %v2884 = vmul.f32 %v2883, 1.442695
    %v2885 = vpow.pop %v2884
    %v2886 = vadd.f32 %v2885, 1.0
    %v2887 = vrcp.pop %v2886
    %v2888 = vmul.f32 1.0, %v2887
    %v2889 = vtanh.pop %v2875
    %v2890 = vxor.u32 %v2876, 2147483648
    %v2891 = vmul.f32 %v2890, 1.442695
    %v2892 = vpow.pop %v2891
    %v2893 = vadd.f32 %v2892, 1.0
    %v2894 = vrcp.pop %v2893
    %v2895 = vmul.f32 1.0, %v2894
    %v2896 = vmul.f32 %v2888, %v2741
    %v2897 = vmul.f32 %v2882, %v2889
    %v2898 = vadd.f32 %v2896, %v2897
    %v2899 = vtanh.pop %v2898
    %v2900 = vmul.f32 %v2895, %v2899
    %v2901 = vcombine.high %v2234, %v2234
    %v2903 = vunpack.c.l.s4 1983009808
    %v2904 = vunpack.c.0.s8 %v2903
    %v2905 = vlaneseq
    %v2906 = vshrl.u32 %v2905, 7
    %v2907 = vsub.s32 %v2904, %v2906
    %v2908 = vrot.slane %v2234, %v2907
    %v2910 = vunpack.c.l.s4 1983009808
    %v2911 = vunpack.c.0.s8 %v2910
    %v2912 = vlaneseq
    %v2913 = vshrl.u32 %v2912, 7
    %v2914 = vsub.s32 %v2911, %v2913
    %v2915 = vrot.slane %v2901, %v2914
    %v2916 = vcombine.high %v2908, %v2908
    %v2917 = vcombine.high %v2915, %v2915
    %v2922 = vcombine.high %v2267, %v2267
    %v2924 = vunpack.c.l.s4 1983009808
    %v2925 = vunpack.c.0.s8 %v2924
    %v2926 = vlaneseq
    %v2927 = vshrl.u32 %v2926, 7
    %v2928 = vsub.s32 %v2925, %v2927
    %v2929 = vrot.slane %v2267, %v2928
    %v2931 = vunpack.c.l.s4 1983009808
    %v2932 = vunpack.c.0.s8 %v2931
    %v2933 = vlaneseq
    %v2934 = vshrl.u32 %v2933, 7
    %v2935 = vsub.s32 %v2932, %v2934
    %v2936 = vrot.slane %v2922, %v2935
    %v2937 = vcombine.high %v2929, %v2929
    %v2938 = vcombine.high %v2936, %v2936
    %v2943 = vsel %vm554, %v2908, %v2929
    %v2944 = vsel %vm555, %v2916, %v2937
    %v2945 = vsel %vm556, %v2915, %v2936
    %v2946 = vsel %vm557, %v2917, %v2938
    %v2947 = vpack.c.bf16 %v2900, %v2900
    %2948 = vmatprep.subr.bf16.mxu0 %v2414
    %2949 = vmatpush1.bf16.msra.mxu0 %v2413
    %2950 = vmatprep.subr.bf16.mxu0 %v2418
    %2951 = vmatpush1.bf16.msra.mxu0 %v2417
    %2952 = vmatprep.subr.bf16.mxu0 %v2422
    %2953 = vmatpush1.bf16.msra.mxu0 %v2421
    %2954 = vmatprep.subr.bf16.mxu0 %v2426
    %2955 = vmatpush1.bf16.msra.mxu0 %v2425
    %2956 = vmatprep.subr.bf16.mxu0 %v2430
    %2957 = vmatpush1.bf16.msra.mxu0 %v2429
    %2958 = vmatprep.subr.bf16.mxu0 %v2434
    %2959 = vmatpush1.bf16.msra.mxu0 %v2433
    %2960 = vmatprep.subr.bf16.mxu0 %v2438
    %2961 = vmatpush1.bf16.msra.mxu0 %v2437
    %2962 = vmatprep.subr.bf16.mxu0 %v2442
    %2963 = vmatpush1.bf16.msra.mxu0 %v2441
    %2964 = vmatprep.subr.bf16.mxu0 0
    %2965 = vmatpush1.bf16.msra.mxu0 0
    %2966 = vmatprep.subr.bf16.mxu0 0
    %2967 = vmatpush1.bf16.msra.mxu0 0
    %2968 = vmatprep.subr.bf16.mxu0 0
    %2969 = vmatpush1.bf16.msra.mxu0 0
    %2970 = vmatprep.subr.bf16.mxu0 0
    %2971 = vmatpush1.bf16.msra.mxu0 0
    %2972 = vmatprep.subr.bf16.mxu0 0
    %2973 = vmatpush1.bf16.msra.mxu0 0
    %2974 = vmatprep.subr.bf16.mxu0 0
    %2975 = vmatpush1.bf16.msra.mxu0 0
    %2976 = vmatprep.subr.bf16.mxu0 0
    %2977 = vmatpush1.bf16.msra.mxu0 0
    %2978 = vmatprep.subr.bf16.mxu0 0
    %2979 = vmatpush1.bf16.msra.mxu0 0
    %2980 = vmatprep.mubr.bf16.mxu0 0
    %2981 = vmatmul.mubr.bf16.gmra.mrb[0].mxu0 %v2947
    %v2982 = vpop.f32.mrb[0].mxu0
    %v2983 = vadd.f32 0.0, %v2982
    %v2984 = vpop.f32.mrb[0].mxu0
    %v2985 = vadd.f32 0.0, %v2984
    %v2986 = vpop.f32.mrb[0].mxu0
    %v2987 = vpop.f32.mrb[0].mxu0
    %2988 = vdwg.mxu0
    %2989 = vmatprep.subr.bf16.mxu0 %v2416
    %2990 = vmatpush1.bf16.msra.mxu0 %v2415
    %2991 = vmatprep.subr.bf16.mxu0 %v2420
    %2992 = vmatpush1.bf16.msra.mxu0 %v2419
    %2993 = vmatprep.subr.bf16.mxu0 %v2424
    %2994 = vmatpush1.bf16.msra.mxu0 %v2423
    %2995 = vmatprep.subr.bf16.mxu0 %v2428
    %2996 = vmatpush1.bf16.msra.mxu0 %v2427
    %2997 = vmatprep.subr.bf16.mxu0 %v2432
    %2998 = vmatpush1.bf16.msra.mxu0 %v2431
    %2999 = vmatprep.subr.bf16.mxu0 %v2436
    %3000 = vmatpush1.bf16.msra.mxu0 %v2435
    %3001 = vmatprep.subr.bf16.mxu0 %v2440
    %3002 = vmatpush1.bf16.msra.mxu0 %v2439
    %3003 = vmatprep.subr.bf16.mxu0 %v2444
    %3004 = vmatpush1.bf16.msra.mxu0 %v2443
    %3005 = vmatprep.subr.bf16.mxu0 0
    %3006 = vmatpush1.bf16.msra.mxu0 0
    %3007 = vmatprep.subr.bf16.mxu0 0
    %3008 = vmatpush1.bf16.msra.mxu0 0
    %3009 = vmatprep.subr.bf16.mxu0 0
    %3010 = vmatpush1.bf16.msra.mxu0 0
    %3011 = vmatprep.subr.bf16.mxu0 0
    %3012 = vmatpush1.bf16.msra.mxu0 0
    %3013 = vmatprep.subr.bf16.mxu0 0
    %3014 = vmatpush1.bf16.msra.mxu0 0
    %3015 = vmatprep.subr.bf16.mxu0 0
    %3016 = vmatpush1.bf16.msra.mxu0 0
    %3017 = vmatprep.subr.bf16.mxu0 0
    %3018 = vmatpush1.bf16.msra.mxu0 0
    %3019 = vmatprep.subr.bf16.mxu0 0
    %3020 = vmatpush1.bf16.msra.mxu0 0
    %3021 = vmatprep.mubr.bf16.mxu0 0
    %3022 = vmatmul.mubr.bf16.gmra.mrb[0].mxu0 %v2947
    %v3023 = vpop.f32.mrb[0].mxu0
    %v3024 = vadd.f32 0.0, %v3023
    %v3025 = vpop.f32.mrb[0].mxu0
    %v3026 = vadd.f32 0.0, %v3025
    %v3027 = vpop.f32.mrb[0].mxu0
    %v3028 = vpop.f32.mrb[0].mxu0
    %3029 = vdwg.mxu0
    %v3030 = vadd.f32 %v2943, %v2983
    %v3031 = vadd.f32 %v2944, %v2985
    %v3032 = vadd.f32 %v2945, %v3024
    %v3033 = vadd.f32 %v2946, %v3026
    %v3034 = vxor.u32 %v3030, 2147483648
    %v3035 = vmul.f32 %v3034, 1.442695
    %v3036 = vpow.pop %v3035
    %v3037 = vadd.f32 %v3036, 1.0
    %v3038 = vrcp.pop %v3037
    %v3039 = vmul.f32 1.0, %v3038
    %v3040 = vxor.u32 %v3031, 2147483648
    %v3041 = vmul.f32 %v3040, 1.442695
    %v3042 = vpow.pop %v3041
    %v3043 = vadd.f32 %v3042, 1.0
    %v3044 = vrcp.pop %v3043
    %v3045 = vmul.f32 1.0, %v3044
    %v3046 = vtanh.pop %v3032
    %v3047 = vxor.u32 %v3033, 2147483648
    %v3048 = vmul.f32 %v3047, 1.442695
    %v3049 = vpow.pop %v3048
    %v3050 = vadd.f32 %v3049, 1.0
    %v3051 = vrcp.pop %v3050
    %v3052 = vmul.f32 1.0, %v3051
    %v3053 = vmul.f32 %v3045, %v2898
    %v3054 = vmul.f32 %v3039, %v3046
    %v3055 = vadd.f32 %v3053, %v3054
    %v3056 = vtanh.pop %v3055
    %v3057 = vmul.f32 %v3052, %v3056
    %v3058 = vsel %vm554, %v2929, %v2908
    %v3059 = vsel %vm555, %v2937, %v2916
    %v3060 = vsel %vm556, %v2936, %v2915
    %v3061 = vsel %vm557, %v2938, %v2917
    %v3062 = vpack.c.bf16 %v3057, %v3057
    %3063 = vmatprep.subr.bf16.mxu0 %v2414
    %3064 = vmatpush1.bf16.msra.mxu0 %v2413
    %3065 = vmatprep.subr.bf16.mxu0 %v2418
    %3066 = vmatpush1.bf16.msra.mxu0 %v2417
    %3067 = vmatprep.subr.bf16.mxu0 %v2422
    %3068 = vmatpush1.bf16.msra.mxu0 %v2421
    %3069 = vmatprep.subr.bf16.mxu0 %v2426
    %3070 = vmatpush1.bf16.msra.mxu0 %v2425
    %3071 = vmatprep.subr.bf16.mxu0 %v2430
    %3072 = vmatpush1.bf16.msra.mxu0 %v2429
    %3073 = vmatprep.subr.bf16.mxu0 %v2434
    %3074 = vmatpush1.bf16.msra.mxu0 %v2433
    %3075 = vmatprep.subr.bf16.mxu0 %v2438
    %3076 = vmatpush1.bf16.msra.mxu0 %v2437
    %3077 = vmatprep.subr.bf16.mxu0 %v2442
    %3078 = vmatpush1.bf16.msra.mxu0 %v2441
    %3079 = vmatprep.subr.bf16.mxu0 0
    %3080 = vmatpush1.bf16.msra.mxu0 0
    %3081 = vmatprep.subr.bf16.mxu0 0
    %3082 = vmatpush1.bf16.msra.mxu0 0
    %3083 = vmatprep.subr.bf16.mxu0 0
    %3084 = vmatpush1.bf16.msra.mxu0 0
    %3085 = vmatprep.subr.bf16.mxu0 0
    %3086 = vmatpush1.bf16.msra.mxu0 0
    %3087 = vmatprep.subr.bf16.mxu0 0
    %3088 = vmatpush1.bf16.msra.mxu0 0
    %3089 = vmatprep.subr.bf16.mxu0 0
    %3090 = vmatpush1.bf16.msra.mxu0 0
    %3091 = vmatprep.subr.bf16.mxu0 0
    %3092 = vmatpush1.bf16.msra.mxu0 0
    %3093 = vmatprep.subr.bf16.mxu0 0
    %3094 = vmatpush1.bf16.msra.mxu0 0
    %3095 = vmatprep.mubr.bf16.mxu0 0
    %3096 = vmatmul.mubr.bf16.gmra.mrb[0].mxu0 %v3062
    %v3097 = vpop.f32.mrb[0].mxu0
    %v3098 = vadd.f32 0.0, %v3097
    %v3099 = vpop.f32.mrb[0].mxu0
    %v3100 = vadd.f32 0.0, %v3099
    %v3101 = vpop.f32.mrb[0].mxu0
    %v3102 = vpop.f32.mrb[0].mxu0
    %3103 = vdwg.mxu0
    %3104 = vmatprep.subr.bf16.mxu0 %v2416
    %3105 = vmatpush1.bf16.msra.mxu0 %v2415
    %3106 = vmatprep.subr.bf16.mxu0 %v2420
    %3107 = vmatpush1.bf16.msra.mxu0 %v2419
    %3108 = vmatprep.subr.bf16.mxu0 %v2424
    %3109 = vmatpush1.bf16.msra.mxu0 %v2423
    %3110 = vmatprep.subr.bf16.mxu0 %v2428
    %3111 = vmatpush1.bf16.msra.mxu0 %v2427
    %3112 = vmatprep.subr.bf16.mxu0 %v2432
    %3113 = vmatpush1.bf16.msra.mxu0 %v2431
    %3114 = vmatprep.subr.bf16.mxu0 %v2436
    %3115 = vmatpush1.bf16.msra.mxu0 %v2435
    %3116 = vmatprep.subr.bf16.mxu0 %v2440
    %3117 = vmatpush1.bf16.msra.mxu0 %v2439
    %3118 = vmatprep.subr.bf16.mxu0 %v2444
    %3119 = vmatpush1.bf16.msra.mxu0 %v2443
    %3120 = vmatprep.subr.bf16.mxu0 0
    %3121 = vmatpush1.bf16.msra.mxu0 0
    %3122 = vmatprep.subr.bf16.mxu0 0
    %3123 = vmatpush1.bf16.msra.mxu0 0
    %3124 = vmatprep.subr.bf16.mxu0 0
    %3125 = vmatpush1.bf16.msra.mxu0 0
    %3126 = vmatprep.subr.bf16.mxu0 0
    %3127 = vmatpush1.bf16.msra.mxu0 0
    %3128 = vmatprep.subr.bf16.mxu0 0
    %3129 = vmatpush1.bf16.msra.mxu0 0
    %3130 = vmatprep.subr.bf16.mxu0 0
    %3131 = vmatpush1.bf16.msra.mxu0 0
    %3132 = vmatprep.subr.bf16.mxu0 0
    %3133 = vmatpush1.bf16.msra.mxu0 0
    %3134 = vmatprep.subr.bf16.mxu0 0
    %3135 = vmatpush1.bf16.msra.mxu0 0
    %3136 = vmatprep.mubr.bf16.mxu0 0
    %3137 = vmatmul.mubr.bf16.gmra.mrb[0].mxu0 %v3062
    %v3138 = vpop.f32.mrb[0].mxu0
    %v3139 = vadd.f32 0.0, %v3138
    %v3140 = vpop.f32.mrb[0].mxu0
    %v3141 = vadd.f32 0.0, %v3140
    %v3142 = vpop.f32.mrb[0].mxu0
    %v3143 = vpop.f32.mrb[0].mxu0
    %3144 = vdwg.mxu0
    %v3145 = vadd.f32 %v3058, %v3098
    %v3146 = vadd.f32 %v3059, %v3100
    %v3147 = vadd.f32 %v3060, %v3139
    %v3148 = vadd.f32 %v3061, %v3141
    %v3149 = vxor.u32 %v3145, 2147483648
    %v3150 = vmul.f32 %v3149, 1.442695
    %v3151 = vpow.pop %v3150
    %v3152 = vadd.f32 %v3151, 1.0
    %v3153 = vrcp.pop %v3152
    %v3154 = vmul.f32 1.0, %v3153
    %v3155 = vxor.u32 %v3146, 2147483648
    %v3156 = vmul.f32 %v3155, 1.442695
    %v3157 = vpow.pop %v3156
    %v3158 = vadd.f32 %v3157, 1.0
    %v3159 = vrcp.pop %v3158
    %v3160 = vmul.f32 1.0, %v3159
    %v3161 = vtanh.pop %v3147
    %v3162 = vxor.u32 %v3148, 2147483648
    %v3163 = vmul.f32 %v3162, 1.442695
    %v3164 = vpow.pop %v3163
    %v3165 = vadd.f32 %v3164, 1.0
    %v3166 = vrcp.pop %v3165
    %v3167 = vmul.f32 1.0, %v3166
    %v3168 = vmul.f32 %v3160, %v3055
    %v3169 = vmul.f32 %v3154, %v3161
    %v3170 = vadd.f32 %v3168, %v3169
    %v3171 = vtanh.pop %v3170
    %v3172 = vmul.f32 %v3167, %v3171
    %v3173 = vsel %vm554, %v2772, %v2751
    %v3174 = vsel %vm555, %v2780, %v2759
    %v3175 = vsel %vm556, %v2779, %v2758
    %v3176 = vsel %vm557, %v2781, %v2760
    %v3177 = vpack.c.bf16 %v3172, %v3172
    %3178 = vmatprep.subr.bf16.mxu0 %v2414
    %3179 = vmatpush1.bf16.msra.mxu0 %v2413
    %3180 = vmatprep.subr.bf16.mxu0 %v2418
    %3181 = vmatpush1.bf16.msra.mxu0 %v2417
    %3182 = vmatprep.subr.bf16.mxu0 %v2422
    %3183 = vmatpush1.bf16.msra.mxu0 %v2421
    %3184 = vmatprep.subr.bf16.mxu0 %v2426
    %3185 = vmatpush1.bf16.msra.mxu0 %v2425
    %3186 = vmatprep.subr.bf16.mxu0 %v2430
    %3187 = vmatpush1.bf16.msra.mxu0 %v2429
    %3188 = vmatprep.subr.bf16.mxu0 %v2434
    %3189 = vmatpush1.bf16.msra.mxu0 %v2433
    %3190 = vmatprep.subr.bf16.mxu0 %v2438
    %3191 = vmatpush1.bf16.msra.mxu0 %v2437
    %3192 = vmatprep.subr.bf16.mxu0 %v2442
    %3193 = vmatpush1.bf16.msra.mxu0 %v2441
    %3194 = vmatprep.subr.bf16.mxu0 0
    %3195 = vmatpush1.bf16.msra.mxu0 0
    %3196 = vmatprep.subr.bf16.mxu0 0
    %3197 = vmatpush1.bf16.msra.mxu0 0
    %3198 = vmatprep.subr.bf16.mxu0 0
    %3199 = vmatpush1.bf16.msra.mxu0 0
    %3200 = vmatprep.subr.bf16.mxu0 0
    %3201 = vmatpush1.bf16.msra.mxu0 0
    %3202 = vmatprep.subr.bf16.mxu0 0
    %3203 = vmatpush1.bf16.msra.mxu0 0
    %3204 = vmatprep.subr.bf16.mxu0 0
    %3205 = vmatpush1.bf16.msra.mxu0 0
    %3206 = vmatprep.subr.bf16.mxu0 0
    %3207 = vmatpush1.bf16.msra.mxu0 0
    %3208 = vmatprep.subr.bf16.mxu0 0
    %3209 = vmatpush1.bf16.msra.mxu0 0
    %3210 = vmatprep.mubr.bf16.mxu0 0
    %3211 = vmatmul.mubr.bf16.gmra.mrb[0].mxu0 %v3177
    %v3212 = vpop.f32.mrb[0].mxu0
    %v3213 = vadd.f32 0.0, %v3212
    %v3214 = vpop.f32.mrb[0].mxu0
    %v3215 = vadd.f32 0.0, %v3214
    %v3216 = vpop.f32.mrb[0].mxu0
    %v3217 = vpop.f32.mrb[0].mxu0
    %3218 = vdwg.mxu0
    %3219 = vmatprep.subr.bf16.mxu0 %v2416
    %3220 = vmatpush1.bf16.msra.mxu0 %v2415
    %3221 = vmatprep.subr.bf16.mxu0 %v2420
    %3222 = vmatpush1.bf16.msra.mxu0 %v2419
    %3223 = vmatprep.subr.bf16.mxu0 %v2424
    %3224 = vmatpush1.bf16.msra.mxu0 %v2423
    %3225 = vmatprep.subr.bf16.mxu0 %v2428
    %3226 = vmatpush1.bf16.msra.mxu0 %v2427
    %3227 = vmatprep.subr.bf16.mxu0 %v2432
    %3228 = vmatpush1.bf16.msra.mxu0 %v2431
    %3229 = vmatprep.subr.bf16.mxu0 %v2436
    %3230 = vmatpush1.bf16.msra.mxu0 %v2435
    %3231 = vmatprep.subr.bf16.mxu0 %v2440
    %3232 = vmatpush1.bf16.msra.mxu0 %v2439
    %3233 = vmatprep.subr.bf16.mxu0 %v2444
    %3234 = vmatpush1.bf16.msra.mxu0 %v2443
    %3235 = vmatprep.subr.bf16.mxu0 0
    %3236 = vmatpush1.bf16.msra.mxu0 0
    %3237 = vmatprep.subr.bf16.mxu0 0
    %3238 = vmatpush1.bf16.msra.mxu0 0
    %3239 = vmatprep.subr.bf16.mxu0 0
    %3240 = vmatpush1.bf16.msra.mxu0 0
    %3241 = vmatprep.subr.bf16.mxu0 0
    %3242 = vmatpush1.bf16.msra.mxu0 0
    %3243 = vmatprep.subr.bf16.mxu0 0
    %3244 = vmatpush1.bf16.msra.mxu0 0
    %3245 = vmatprep.subr.bf16.mxu0 0
    %3246 = vmatpush1.bf16.msra.mxu0 0
    %3247 = vmatprep.subr.bf16.mxu0 0
    %3248 = vmatpush1.bf16.msra.mxu0 0
    %3249 = vmatprep.subr.bf16.mxu0 0
    %3250 = vmatpush1.bf16.msra.mxu0 0
    %3251 = vmatprep.mubr.bf16.mxu0 0
    %3252 = vmatmul.mubr.bf16.gmra.mrb[0].mxu0 %v3177
    %v3253 = vpop.f32.mrb[0].mxu0
    %v3254 = vadd.f32 0.0, %v3253
    %v3255 = vpop.f32.mrb[0].mxu0
    %v3256 = vadd.f32 0.0, %v3255
    %v3257 = vpop.f32.mrb[0].mxu0
    %v3258 = vpop.f32.mrb[0].mxu0
    %3259 = vdwg.mxu0
    %v3260 = vadd.f32 %v3173, %v3213
    %v3261 = vadd.f32 %v3174, %v3215
    %v3262 = vadd.f32 %v3175, %v3254
    %v3263 = vadd.f32 %v3176, %v3256
    %v3264 = vxor.u32 %v3260, 2147483648
    %v3265 = vmul.f32 %v3264, 1.442695
    %v3266 = vpow.pop %v3265
    %v3267 = vadd.f32 %v3266, 1.0
    %v3268 = vrcp.pop %v3267
    %v3269 = vmul.f32 1.0, %v3268
    %v3270 = vxor.u32 %v3261, 2147483648
    %v3271 = vmul.f32 %v3270, 1.442695
    %v3272 = vpow.pop %v3271
    %v3273 = vadd.f32 %v3272, 1.0
    %v3274 = vrcp.pop %v3273
    %v3275 = vmul.f32 1.0, %v3274
    %v3276 = vtanh.pop %v3262
    %v3277 = vxor.u32 %v3263, 2147483648
    %v3278 = vmul.f32 %v3277, 1.442695
    %v3279 = vpow.pop %v3278
    %v3280 = vadd.f32 %v3279, 1.0
    %v3281 = vrcp.pop %v3280
    %v3282 = vmul.f32 1.0, %v3281
    %v3283 = vmul.f32 %v3275, %v3170
    %v3284 = vmul.f32 %v3269, %v3276
    %v3285 = vadd.f32 %v3283, %v3284
    %v3286 = vtanh.pop %v3285
    %v3287 = vmul.f32 %v3282, %v3286
    %v3288 = vsel %vm554, %v2615, %v2594
    %v3289 = vsel %vm555, %v2623, %v2602
    %v3290 = vsel %vm556, %v2622, %v2601
    %v3291 = vsel %vm557, %v2624, %v2603
    %v3292 = vpack.c.bf16 %v3287, %v3287
    %3293 = vmatprep.subr.bf16.mxu0 %v2414
    %3294 = vmatpush1.bf16.msra.mxu0 %v2413
    %3295 = vmatprep.subr.bf16.mxu0 %v2418
    %3296 = vmatpush1.bf16.msra.mxu0 %v2417
    %3297 = vmatprep.subr.bf16.mxu0 %v2422
    %3298 = vmatpush1.bf16.msra.mxu0 %v2421
    %3299 = vmatprep.subr.bf16.mxu0 %v2426
    %3300 = vmatpush1.bf16.msra.mxu0 %v2425
    %3301 = vmatprep.subr.bf16.mxu0 %v2430
    %3302 = vmatpush1.bf16.msra.mxu0 %v2429
    %3303 = vmatprep.subr.bf16.mxu0 %v2434
    %3304 = vmatpush1.bf16.msra.mxu0 %v2433
    %3305 = vmatprep.subr.bf16.mxu0 %v2438
    %3306 = vmatpush1.bf16.msra.mxu0 %v2437
    %3307 = vmatprep.subr.bf16.mxu0 %v2442
    %3308 = vmatpush1.bf16.msra.mxu0 %v2441
    %3309 = vmatprep.subr.bf16.mxu0 0
    %3310 = vmatpush1.bf16.msra.mxu0 0
    %3311 = vmatprep.subr.bf16.mxu0 0
    %3312 = vmatpush1.bf16.msra.mxu0 0
    %3313 = vmatprep.subr.bf16.mxu0 0
    %3314 = vmatpush1.bf16.msra.mxu0 0
    %3315 = vmatprep.subr.bf16.mxu0 0
    %3316 = vmatpush1.bf16.msra.mxu0 0
    %3317 = vmatprep.subr.bf16.mxu0 0
    %3318 = vmatpush1.bf16.msra.mxu0 0
    %3319 = vmatprep.subr.bf16.mxu0 0
    %3320 = vmatpush1.bf16.msra.mxu0 0
    %3321 = vmatprep.subr.bf16.mxu0 0
    %3322 = vmatpush1.bf16.msra.mxu0 0
    %3323 = vmatprep.subr.bf16.mxu0 0
    %3324 = vmatpush1.bf16.msra.mxu0 0
    %3325 = vmatprep.mubr.bf16.mxu0 0
    %3326 = vmatmul.mubr.bf16.gmra.mrb[0].mxu0 %v3292
    %v3327 = vpop.f32.mrb[0].mxu0
    %v3328 = vadd.f32 0.0, %v3327
    %v3329 = vpop.f32.mrb[0].mxu0
    %v3330 = vadd.f32 0.0, %v3329
    %v3331 = vpop.f32.mrb[0].mxu0
    %v3332 = vpop.f32.mrb[0].mxu0
    %3333 = vdwg.mxu0
    %3334 = vmatprep.subr.bf16.mxu0 %v2416
    %3335 = vmatpush1.bf16.msra.mxu0 %v2415
    %3336 = vmatprep.subr.bf16.mxu0 %v2420
    %3337 = vmatpush1.bf16.msra.mxu0 %v2419
    %3338 = vmatprep.subr.bf16.mxu0 %v2424
    %3339 = vmatpush1.bf16.msra.mxu0 %v2423
    %3340 = vmatprep.subr.bf16.mxu0 %v2428
    %3341 = vmatpush1.bf16.msra.mxu0 %v2427
    %3342 = vmatprep.subr.bf16.mxu0 %v2432
    %3343 = vmatpush1.bf16.msra.mxu0 %v2431
    %3344 = vmatprep.subr.bf16.mxu0 %v2436
    %3345 = vmatpush1.bf16.msra.mxu0 %v2435
    %3346 = vmatprep.subr.bf16.mxu0 %v2440
    %3347 = vmatpush1.bf16.msra.mxu0 %v2439
    %3348 = vmatprep.subr.bf16.mxu0 %v2444
    %3349 = vmatpush1.bf16.msra.mxu0 %v2443
    %3350 = vmatprep.subr.bf16.mxu0 0
    %3351 = vmatpush1.bf16.msra.mxu0 0
    %3352 = vmatprep.subr.bf16.mxu0 0
    %3353 = vmatpush1.bf16.msra.mxu0 0
    %3354 = vmatprep.subr.bf16.mxu0 0
    %3355 = vmatpush1.bf16.msra.mxu0 0
    %3356 = vmatprep.subr.bf16.mxu0 0
    %3357 = vmatpush1.bf16.msra.mxu0 0
    %3358 = vmatprep.subr.bf16.mxu0 0
    %3359 = vmatpush1.bf16.msra.mxu0 0
    %3360 = vmatprep.subr.bf16.mxu0 0
    %3361 = vmatpush1.bf16.msra.mxu0 0
    %3362 = vmatprep.subr.bf16.mxu0 0
    %3363 = vmatpush1.bf16.msra.mxu0 0
    %3364 = vmatprep.subr.bf16.mxu0 0
    %3365 = vmatpush1.bf16.msra.mxu0 0
    %3366 = vmatprep.mubr.bf16.mxu0 0
    %3367 = vmatmul.mubr.bf16.gmra.mrb[0].mxu0 %v3292
    %v3368 = vpop.f32.mrb[0].mxu0
    %v3369 = vadd.f32 0.0, %v3368
    %v3370 = vpop.f32.mrb[0].mxu0
    %v3371 = vadd.f32 0.0, %v3370
    %v3372 = vpop.f32.mrb[0].mxu0
    %v3373 = vpop.f32.mrb[0].mxu0
    %3374 = vdwg.mxu0
    %v3375 = vadd.f32 %v3288, %v3328
    %v3376 = vadd.f32 %v3289, %v3330
    %v3377 = vadd.f32 %v3290, %v3369
    %v3378 = vadd.f32 %v3291, %v3371
    %v3379 = vxor.u32 %v3375, 2147483648
    %v3380 = vmul.f32 %v3379, 1.442695
    %v3381 = vpow.pop %v3380
    %v3382 = vadd.f32 %v3381, 1.0
    %v3383 = vrcp.pop %v3382
    %v3384 = vmul.f32 1.0, %v3383
    %v3385 = vxor.u32 %v3376, 2147483648
    %v3386 = vmul.f32 %v3385, 1.442695
    %v3387 = vpow.pop %v3386
    %v3388 = vadd.f32 %v3387, 1.0
    %v3389 = vrcp.pop %v3388
    %v3390 = vmul.f32 1.0, %v3389
    %v3391 = vtanh.pop %v3377
    %v3392 = vxor.u32 %v3378, 2147483648
    %v3393 = vmul.f32 %v3392, 1.442695
    %v3394 = vpow.pop %v3393
    %v3395 = vadd.f32 %v3394, 1.0
    %v3396 = vrcp.pop %v3395
    %v3397 = vmul.f32 1.0, %v3396
    %v3398 = vmul.f32 %v3390, %v3285
    %v3399 = vmul.f32 %v3384, %v3391
    %v3400 = vadd.f32 %v3398, %v3399
    %v3401 = vtanh.pop %v3400
    %v3402 = vmul.f32 %v3397, %v3401
    %v3403 = vsel %vm554, %v2299, %v2278
    %v3404 = vsel %vm555, %v2307, %v2286
    %v3405 = vsel %vm556, %v2306, %v2285
    %v3406 = vsel %vm557, %v2308, %v2287
    %v3407 = vpack.c.bf16 %v3402, %v3402
    %3408 = vmatprep.subr.bf16.mxu0 %v2414
    %3409 = vmatpush1.bf16.msra.mxu0 %v2413
    %3410 = vmatprep.subr.bf16.mxu0 %v2418
    %3411 = vmatpush1.bf16.msra.mxu0 %v2417
    %3412 = vmatprep.subr.bf16.mxu0 %v2422
    %3413 = vmatpush1.bf16.msra.mxu0 %v2421
    %3414 = vmatprep.subr.bf16.mxu0 %v2426
    %3415 = vmatpush1.bf16.msra.mxu0 %v2425
    %3416 = vmatprep.subr.bf16.mxu0 %v2430
    %3417 = vmatpush1.bf16.msra.mxu0 %v2429
    %3418 = vmatprep.subr.bf16.mxu0 %v2434
    %3419 = vmatpush1.bf16.msra.mxu0 %v2433
    %3420 = vmatprep.subr.bf16.mxu0 %v2438
    %3421 = vmatpush1.bf16.msra.mxu0 %v2437
    %3422 = vmatprep.subr.bf16.mxu0 %v2442
    %3423 = vmatpush1.bf16.msra.mxu0 %v2441
    %3424 = vmatprep.subr.bf16.mxu0 0
    %3425 = vmatpush1.bf16.msra.mxu0 0
    %3426 = vmatprep.subr.bf16.mxu0 0
    %3427 = vmatpush1.bf16.msra.mxu0 0
    %3428 = vmatprep.subr.bf16.mxu0 0
    %3429 = vmatpush1.bf16.msra.mxu0 0
    %3430 = vmatprep.subr.bf16.mxu0 0
    %3431 = vmatpush1.bf16.msra.mxu0 0
    %3432 = vmatprep.subr.bf16.mxu0 0
    %3433 = vmatpush1.bf16.msra.mxu0 0
    %3434 = vmatprep.subr.bf16.mxu0 0
    %3435 = vmatpush1.bf16.msra.mxu0 0
    %3436 = vmatprep.subr.bf16.mxu0 0
    %3437 = vmatpush1.bf16.msra.mxu0 0
    %3438 = vmatprep.subr.bf16.mxu0 0
    %3439 = vmatpush1.bf16.msra.mxu0 0
    %3440 = vmatprep.mubr.bf16.mxu0 0
    %3441 = vmatmul.mubr.bf16.gmra.mrb[0].mxu0 %v3407
    %v3442 = vpop.f32.mrb[0].mxu0
    %v3443 = vadd.f32 0.0, %v3442
    %v3444 = vpop.f32.mrb[0].mxu0
    %v3445 = vadd.f32 0.0, %v3444
    %v3446 = vpop.f32.mrb[0].mxu0
    %v3447 = vpop.f32.mrb[0].mxu0
    %3448 = vdwg.mxu0
    %3449 = vmatprep.subr.bf16.mxu0 %v2416
    %3450 = vmatpush1.bf16.msra.mxu0 %v2415
    %3451 = vmatprep.subr.bf16.mxu0 %v2420
    %3452 = vmatpush1.bf16.msra.mxu0 %v2419
    %3453 = vmatprep.subr.bf16.mxu0 %v2424
    %3454 = vmatpush1.bf16.msra.mxu0 %v2423
    %3455 = vmatprep.subr.bf16.mxu0 %v2428
    %3456 = vmatpush1.bf16.msra.mxu0 %v2427
    %3457 = vmatprep.subr.bf16.mxu0 %v2432
    %3458 = vmatpush1.bf16.msra.mxu0 %v2431
    %3459 = vmatprep.subr.bf16.mxu0 %v2436
    %3460 = vmatpush1.bf16.msra.mxu0 %v2435
    %3461 = vmatprep.subr.bf16.mxu0 %v2440
    %3462 = vmatpush1.bf16.msra.mxu0 %v2439
    %3463 = vmatprep.subr.bf16.mxu0 %v2444
    %3464 = vmatpush1.bf16.msra.mxu0 %v2443
    %3465 = vmatprep.subr.bf16.mxu0 0
    %3466 = vmatpush1.bf16.msra.mxu0 0
    %3467 = vmatprep.subr.bf16.mxu0 0
    %3468 = vmatpush1.bf16.msra.mxu0 0
    %3469 = vmatprep.subr.bf16.mxu0 0
    %3470 = vmatpush1.bf16.msra.mxu0 0
    %3471 = vmatprep.subr.bf16.mxu0 0
    %3472 = vmatpush1.bf16.msra.mxu0 0
    %3473 = vmatprep.subr.bf16.mxu0 0
    %3474 = vmatpush1.bf16.msra.mxu0 0
    %3475 = vmatprep.subr.bf16.mxu0 0
    %3476 = vmatpush1.bf16.msra.mxu0 0
    %3477 = vmatprep.subr.bf16.mxu0 0
    %3478 = vmatpush1.bf16.msra.mxu0 0
    %3479 = vmatprep.subr.bf16.mxu0 0
    %3480 = vmatpush1.bf16.msra.mxu0 0
    %3481 = vmatprep.mubr.bf16.mxu0 0
    %3482 = vmatmul.mubr.bf16.gmra.mrb[0].mxu0 %v3407
    %v3483 = vpop.f32.mrb[0].mxu0
    %v3484 = vadd.f32 0.0, %v3483
    %v3485 = vpop.f32.mrb[0].mxu0
    %v3486 = vadd.f32 0.0, %v3485
    %v3487 = vpop.f32.mrb[0].mxu0
    %v3488 = vpop.f32.mrb[0].mxu0
    %3489 = vdwg.mxu0
    %v3490 = vadd.f32 %v3403, %v3443
    %v3491 = vadd.f32 %v3404, %v3445
    %v3492 = vadd.f32 %v3405, %v3484
    %v3493 = vadd.f32 %v3406, %v3486
    %v3494 = vxor.u32 %v3490, 2147483648
    %v3495 = vmul.f32 %v3494, 1.442695
    %v3496 = vpow.pop %v3495
    %v3497 = vadd.f32 %v3496, 1.0
    %v3498 = vrcp.pop %v3497
    %v3499 = vmul.f32 1.0, %v3498
    %v3500 = vxor.u32 %v3491, 2147483648
    %v3501 = vmul.f32 %v3500, 1.442695
    %v3502 = vpow.pop %v3501
    %v3503 = vadd.f32 %v3502, 1.0
    %v3504 = vrcp.pop %v3503
    %v3505 = vmul.f32 1.0, %v3504
    %v3506 = vtanh.pop %v3492
    %v3507 = vxor.u32 %v3493, 2147483648
    %v3508 = vmul.f32 %v3507, 1.442695
    %v3509 = vpow.pop %v3508
    %v3510 = vadd.f32 %v3509, 1.0
    %v3511 = vrcp.pop %v3510
    %v3512 = vmul.f32 1.0, %v3511
    %v3513 = vmul.f32 %v3505, %v3400
    %v3514 = vmul.f32 %v3499, %v3506
    %v3515 = vadd.f32 %v3513, %v3514
    %v3516 = vtanh.pop %v3515
    %v3517 = vmul.f32 %v3512, %v3516
    %v3518 = vsel %vm1805, %v2586, %v3517
    %v3519 = vsel %vm1805, %v2743, %v3402
    %v3520 = vsel %vm1805, %v2900, %v3287
    %v3521 = vsel %vm1805, %v3057, %v3172
    %v3522 = vsel %vm1805, %v3172, %v3057
    %v3523 = vsel %vm1805, %v3287, %v2900
    %v3524 = vsel %vm1805, %v3402, %v2743
    %v3525 = vsel %vm1805, %v3517, %v2586
    %v3526 = vcombine.low %v3518, %v3520
    %v3528 = vunpack.c.l.s4 1983009808
    %v3529 = vunpack.c.0.s8 %v3528
    %v3530 = vlaneseq
    %v3531 = vshrl.u32 %v3530, 7
    %v3532 = vsub.s32 %v3529, %v3531
    %v3533 = vrot.slane %v3526, %v3532
    %v3534 = vcombine.low %v3519, %v3521
    %v3536 = vunpack.c.l.s4 1983009808
    %v3537 = vunpack.c.0.s8 %v3536
    %v3538 = vlaneseq
    %v3539 = vshrl.u32 %v3538, 7
    %v3540 = vsub.s32 %v3537, %v3539
    %v3541 = vrot.slane %v3534, %v3540
    %v3542 = vcombine.low %v3522, %v3524
    %v3544 = vunpack.c.l.s4 1983009808
    %v3545 = vunpack.c.0.s8 %v3544
    %v3546 = vlaneseq
    %v3547 = vshrl.u32 %v3546, 7
    %v3548 = vsub.s32 %v3545, %v3547
    %v3549 = vrot.slane %v3542, %v3548
    %v3550 = vcombine.low %v3523, %v3525
    %v3552 = vunpack.c.l.s4 1983009808
    %v3553 = vunpack.c.0.s8 %v3552
    %v3554 = vlaneseq
    %v3555 = vshrl.u32 %v3554, 7
    %v3556 = vsub.s32 %v3553, %v3555
    %v3557 = vrot.slane %v3550, %v3556
    %v3558 = vcombine.low %v3533, %v3541
    %v3560 = vunpack.c.l.s4 1934713408
    %v3561 = vunpack.c.0.s8 %v3560
    %v3562 = vlaneseq
    %v3563 = vshrl.u32 %v3562, 7
    %v3564 = vsub.s32 %v3561, %v3563
    %v3565 = vrot.slane %v3558, %v3564
    %v3566 = vcombine.low %v3549, %v3557
    %v3568 = vunpack.c.l.s4 1934713408
    %v3569 = vunpack.c.0.s8 %v3568
    %v3570 = vlaneseq
    %v3571 = vshrl.u32 %v3570, 7
    %v3572 = vsub.s32 %v3569, %v3571
    %v3573 = vrot.slane %v3566, %v3572
    %v3574 = vcombine.low %v3565, %v3573
    %v3575 = vcombine.high %v3565, %v3573
    %v3576 = vpack.c.bf16 %v3575, %v3574
    %v3577 = vld [vmem:[#allocation7] sm:$0xff]
    %v3578 = vld [vmem:[#allocation7 + $0x8] sm:$0xf]
    %v3579 = vld [vmem:[#allocation7 + $0xc] sm:$0xff]
    %v3580 = vld [vmem:[#allocation7 + $0x14] sm:$0xf]
    %v3581 = vld [vmem:[#allocation7 + $0x18] sm:$0xff]
    %v3582 = vld [vmem:[#allocation7 + $0x20] sm:$0xf]
    %v3583 = vld [vmem:[#allocation7 + $0x24] sm:$0xff]
    %v3584 = vld [vmem:[#allocation7 + $0x2c] sm:$0xf]
    %v3585 = vld [vmem:[#allocation7 + $0x30] sm:$0xff]
    %v3586 = vld [vmem:[#allocation7 + $0x38] sm:$0xf]
    %v3587 = vld [vmem:[#allocation7 + $0x3c] sm:$0xff]
    %v3588 = vld [vmem:[#allocation7 + $0x44] sm:$0xf]
    %v3589 = vld [vmem:[#allocation7 + $0x48] sm:$0xff]
    %v3590 = vld [vmem:[#allocation7 + $0x50] sm:$0xf]
    %v3591 = vld [vmem:[#allocation7 + $0x54] sm:$0xff]
    %v3592 = vld [vmem:[#allocation7 + $0x5c] sm:$0xf]
    %v3593 = vld [vmem:[#allocation7 + $0x60] sm:$0xff]
    %v3594 = vld [vmem:[#allocation7 + $0x68] sm:$0xf]
    %v3595 = vld [vmem:[#allocation7 + $0x6c] sm:$0xff]
    %v3596 = vld [vmem:[#allocation7 + $0x74] sm:$0xf]
    %v3597 = vld [vmem:[#allocation7 + $0x78] sm:$0xff]
    %v3598 = vld [vmem:[#allocation7 + $0x80] sm:$0xf]
    %v3599 = vld [vmem:[#allocation7 + $0x84] sm:$0xff]
    %v3600 = vld [vmem:[#allocation7 + $0x8c] sm:$0xf]
    %v3601 = vld [vmem:[#allocation7 + $0x90] sm:$0xff]
    %v3602 = vld [vmem:[#allocation7 + $0x98] sm:$0xf]
    %v3603 = vld [vmem:[#allocation7 + $0x9c] sm:$0xff]
    %v3604 = vld [vmem:[#allocation7 + $0xa4] sm:$0xf]
    %v3605 = vld [vmem:[#allocation7 + $0xa8] sm:$0xff]
    %v3606 = vld [vmem:[#allocation7 + $0xb0] sm:$0xf]
    %v3607 = vld [vmem:[#allocation7 + $0xb4] sm:$0xff]
    %v3608 = vld [vmem:[#allocation7 + $0xbc] sm:$0xf]
    %v3609 = vld [vmem:[%s9] sm:$0x7]
    %v3611 = vlaneseq
    %v3612 = vshrl.u32 %v3611, 7
    %v3613 = vsub.s32 0, %v3612
    %v3614 = vrot.slane %v3609, %v3613
    %v3615 = vlaneseq
    %v3616 = vshrl.u32 %v3615, 7
    %v3617 = vsub.s32 1, %v3616
    %v3618 = vrot.slane %v3609, %v3617
    %v3619 = vlaneseq
    %v3620 = vshrl.u32 %v3619, 7
    %v3621 = vsub.s32 2, %v3620
    %v3622 = vrot.slane %v3609, %v3621
    %v3658 = vunpack.c.l.b16 %v3577
    %v3659 = vunpack.c.h.b16 %v3577
    %v3660 = vunpack.c.l.b16 %v3578
    %v3661 = vunpack.c.l.b16 %v3579
    %v3662 = vunpack.c.h.b16 %v3579
    %v3663 = vunpack.c.l.b16 %v3580
    %v3664 = vunpack.c.l.b16 %v3581
    %v3665 = vunpack.c.h.b16 %v3581
    %v3666 = vunpack.c.l.b16 %v3582
    %v3667 = vunpack.c.l.b16 %v3583
    %v3668 = vunpack.c.h.b16 %v3583
    %v3669 = vunpack.c.l.b16 %v3584
    %v3670 = vunpack.c.l.b16 %v3585
    %v3671 = vunpack.c.h.b16 %v3585
    %v3672 = vunpack.c.l.b16 %v3586
    %v3673 = vunpack.c.l.b16 %v3587
    %v3674 = vunpack.c.h.b16 %v3587
    %v3675 = vunpack.c.l.b16 %v3588
    %v3676 = vunpack.c.l.b16 %v3589
    %v3677 = vunpack.c.h.b16 %v3589
    %v3678 = vunpack.c.l.b16 %v3590
    %v3679 = vunpack.c.l.b16 %v3591
    %v3680 = vunpack.c.h.b16 %v3591
    %v3681 = vunpack.c.l.b16 %v3592
    %v3682 = vunpack.c.l.b16 %v3593
    %v3683 = vunpack.c.h.b16 %v3593
    %v3684 = vunpack.c.l.b16 %v3594
    %v3685 = vunpack.c.l.b16 %v3595
    %v3686 = vunpack.c.h.b16 %v3595
    %v3687 = vunpack.c.l.b16 %v3596
    %v3688 = vunpack.c.l.b16 %v3597
    %v3689 = vunpack.c.h.b16 %v3597
    %v3690 = vunpack.c.l.b16 %v3598
    %v3691 = vunpack.c.l.b16 %v3599
    %v3692 = vunpack.c.h.b16 %v3599
    %v3693 = vunpack.c.l.b16 %v3600
    %v3694 = vunpack.c.l.b16 %v3601
    %v3695 = vunpack.c.h.b16 %v3601
    %v3696 = vunpack.c.l.b16 %v3602
    %v3697 = vunpack.c.l.b16 %v3603
    %v3698 = vunpack.c.h.b16 %v3603
    %v3699 = vunpack.c.l.b16 %v3604
    %v3700 = vunpack.c.l.b16 %v3605
    %v3701 = vunpack.c.h.b16 %v3605
    %v3702 = vunpack.c.l.b16 %v3606
    %v3703 = vunpack.c.l.b16 %v3607
    %v3704 = vunpack.c.h.b16 %v3607
    %v3705 = vunpack.c.l.b16 %v3608
    %v3706 = vpack.c.b16 %v3661, %v3658
    %v3707 = vpack.c.b16 %v3662, %v3659
    %v3708 = vpack.c.b16 %v3663, %v3660
    %v3709 = vpack.c.b16 %v3667, %v3664
    %v3710 = vpack.c.b16 %v3668, %v3665
    %v3711 = vpack.c.b16 %v3669, %v3666
    %v3712 = vpack.c.b16 %v3673, %v3670
    %v3713 = vpack.c.b16 %v3674, %v3671
    %v3714 = vpack.c.b16 %v3675, %v3672
    %v3715 = vpack.c.b16 %v3679, %v3676
    %v3716 = vpack.c.b16 %v3680, %v3677
    %v3717 = vpack.c.b16 %v3681, %v3678
    %v3718 = vpack.c.b16 %v3685, %v3682
    %v3719 = vpack.c.b16 %v3686, %v3683
    %v3720 = vpack.c.b16 %v3687, %v3684
    %v3721 = vpack.c.b16 %v3691, %v3688
    %v3722 = vpack.c.b16 %v3692, %v3689
    %v3723 = vpack.c.b16 %v3693, %v3690
    %v3724 = vpack.c.b16 %v3697, %v3694
    %v3725 = vpack.c.b16 %v3698, %v3695
    %v3726 = vpack.c.b16 %v3699, %v3696
    %v3727 = vpack.c.b16 %v3703, %v3700
    %v3728 = vpack.c.b16 %v3704, %v3701
    %v3729 = vpack.c.b16 %v3705, %v3702
    %3754 = vmatprep.subr.bf16.mxu0 %v3707
    %3755 = vmatpush1.bf16.msra.mxu0 %v3706
    %3756 = vmatprep.subr.bf16.mxu0 %v3710
    %3757 = vmatpush1.bf16.msra.mxu0 %v3709
    %3758 = vmatprep.subr.bf16.mxu0 %v3713
    %3759 = vmatpush1.bf16.msra.mxu0 %v3712
    %3760 = vmatprep.subr.bf16.mxu0 %v3716
    %3761 = vmatpush1.bf16.msra.mxu0 %v3715
    %3762 = vmatprep.subr.bf16.mxu0 %v3719
    %3763 = vmatpush1.bf16.msra.mxu0 %v3718
    %3764 = vmatprep.subr.bf16.mxu0 %v3722
    %3765 = vmatpush1.bf16.msra.mxu0 %v3721
    %3766 = vmatprep.subr.bf16.mxu0 %v3725
    %3767 = vmatpush1.bf16.msra.mxu0 %v3724
    %3768 = vmatprep.subr.bf16.mxu0 %v3728
    %3769 = vmatpush1.bf16.msra.mxu0 %v3727
    %3770 = vmatprep.subr.bf16.mxu0 0
    %3771 = vmatpush1.bf16.msra.mxu0 0
    %3772 = vmatprep.subr.bf16.mxu0 0
    %3773 = vmatpush1.bf16.msra.mxu0 0
    %3774 = vmatprep.subr.bf16.mxu0 0
    %3775 = vmatpush1.bf16.msra.mxu0 0
    %3776 = vmatprep.subr.bf16.mxu0 0
    %3777 = vmatpush1.bf16.msra.mxu0 0
    %3778 = vmatprep.subr.bf16.mxu0 0
    %3779 = vmatpush1.bf16.msra.mxu0 0
    %3780 = vmatprep.subr.bf16.mxu0 0
    %3781 = vmatpush1.bf16.msra.mxu0 0
    %3782 = vmatprep.subr.bf16.mxu0 0
    %3783 = vmatpush1.bf16.msra.mxu0 0
    %3784 = vmatprep.subr.bf16.mxu0 0
    %3785 = vmatpush1.bf16.msra.mxu0 0
    %3786 = vmatprep.mubr.bf16.mxu0 0
    %3787 = vmatmul.mubr.bf16.gmra.mrb[0].mxu0 %v3576
    %v3788 = vpop.f32.mrb[0].mxu0
    %v3789 = vadd.f32 %v3614, %v3788
    %v3790 = vpop.f32.mrb[0].mxu0
    %v3791 = vadd.f32 %v3618, %v3790
    %v3792 = vpop.f32.mrb[0].mxu0
    %v3793 = vadd.f32 %v3614, %v3792
    %v3794 = vpop.f32.mrb[0].mxu0
    %v3795 = vadd.f32 %v3618, %v3794
    %3796 = vdwg.mxu0
    %3797 = vmatprep.subr.bf16.mxu0 0
    %3798 = vmatpush1.bf16.msra.mxu0 %v3708
    %3799 = vmatprep.subr.bf16.mxu0 0
    %3800 = vmatpush1.bf16.msra.mxu0 %v3711
    %3801 = vmatprep.subr.bf16.mxu0 0
    %3802 = vmatpush1.bf16.msra.mxu0 %v3714
    %3803 = vmatprep.subr.bf16.mxu0 0
    %3804 = vmatpush1.bf16.msra.mxu0 %v3717
    %3805 = vmatprep.subr.bf16.mxu0 0
    %3806 = vmatpush1.bf16.msra.mxu0 %v3720
    %3807 = vmatprep.subr.bf16.mxu0 0
    %3808 = vmatpush1.bf16.msra.mxu0 %v3723
    %3809 = vmatprep.subr.bf16.mxu0 0
    %3810 = vmatpush1.bf16.msra.mxu0 %v3726
    %3811 = vmatprep.subr.bf16.mxu0 0
    %3812 = vmatpush1.bf16.msra.mxu0 %v3729
    %3813 = vmatprep.subr.bf16.mxu0 0
    %3814 = vmatpush1.bf16.msra.mxu0 0
    %3815 = vmatprep.subr.bf16.mxu0 0
    %3816 = vmatpush1.bf16.msra.mxu0 0
    %3817 = vmatprep.subr.bf16.mxu0 0
    %3818 = vmatpush1.bf16.msra.mxu0 0
    %3819 = vmatprep.subr.bf16.mxu0 0
    %3820 = vmatpush1.bf16.msra.mxu0 0
    %3821 = vmatprep.subr.bf16.mxu0 0
    %3822 = vmatpush1.bf16.msra.mxu0 0
    %3823 = vmatprep.subr.bf16.mxu0 0
    %3824 = vmatpush1.bf16.msra.mxu0 0
    %3825 = vmatprep.subr.bf16.mxu0 0
    %3826 = vmatpush1.bf16.msra.mxu0 0
    %3827 = vmatprep.subr.bf16.mxu0 0
    %3828 = vmatpush1.bf16.msra.mxu0 0
    %3829 = vmatprep.mubr.bf16.mxu0 0
    %3830 = vmatmul.mubr.bf16.gmra.mrb[0].mxu0 %v3576
    %v3831 = vpop.f32.mrb[0].mxu0
    %v3832 = vadd.f32 %v3622, %v3831
    %v3833 = vpop.f32.mrb[0].mxu0
    %v3834 = vpop.f32.mrb[0].mxu0
    %v3835 = vadd.f32 %v3622, %v3834
    %v3836 = vpop.f32.mrb[0].mxu0
    %3837 = vdwg.mxu0
    %v3838 = vpack.c.bf16 %v3789, %v3789
    %v3839 = vpack.c.bf16 %v3793, %v3793
    %v3840 = vpack.c.bf16 %v3791, %v3791
    %v3841 = vpack.c.bf16 %v3795, %v3795
    %v3843 = vsel %vm1805, %v3838, 0
    %v3846 = vsel %vm1805, %v3840, 0
    %3848 = vmatprep.subr.bf16.mxu0 0
    %3849 = vmatpush1.bf16.xpose.msra.mxu0 %v3846
    %3850 = vmatprep.subr.bf16.mxu0 0
    %3851 = vmatpush1.bf16.xpose.msra.mxu0 0
    %3852 = vmatprep.subr.bf16.mxu0 0
    %3853 = vmatpush1.bf16.xpose.msra.mxu0 0
    %3854 = vmatprep.subr.bf16.mxu0 0
    %3855 = vmatpush1.bf16.xpose.msra.mxu0 0
    %3856 = vmatprep.subr.bf16.mxu0 0
    %3857 = vmatpush1.bf16.xpose.msra.mxu0 0
    %3858 = vmatprep.subr.bf16.mxu0 0
    %3859 = vmatpush1.bf16.xpose.msra.mxu0 0
    %3860 = vmatprep.subr.bf16.mxu0 0
    %3861 = vmatpush1.bf16.xpose.msra.mxu0 0
    %3862 = vmatprep.subr.bf16.mxu0 0
    %3863 = vmatpush1.bf16.xpose.msra.mxu0 0
    %3864 = vmatprep.subr.bf16.mxu0 0
    %3865 = vmatpush1.bf16.xpose.msra.mxu0 0
    %3866 = vmatprep.subr.bf16.mxu0 0
    %3867 = vmatpush1.bf16.xpose.msra.mxu0 0
    %3868 = vmatprep.subr.bf16.mxu0 0
    %3869 = vmatpush1.bf16.xpose.msra.mxu0 0
    %3870 = vmatprep.subr.bf16.mxu0 0
    %3871 = vmatpush1.bf16.xpose.msra.mxu0 0
    %3872 = vmatprep.subr.bf16.mxu0 0
    %3873 = vmatpush1.bf16.xpose.msra.mxu0 0
    %3874 = vmatprep.subr.bf16.mxu0 0
    %3875 = vmatpush1.bf16.xpose.msra.mxu0 0
    %3876 = vmatprep.subr.bf16.mxu0 0
    %3877 = vmatpush1.bf16.xpose.msra.mxu0 0
    %3878 = vmatprep.subr.bf16.mxu0 0
    %3879 = vmatpush1.bf16.xpose.msra.mxu0 0
    %3880 = vmatprep.mubr.bf16.mxu0 0
    %3881 = vmatmul.mubr.bf16.gmra.mrb[0].mxu0 %v3843
    %v3882 = vpop.f32.mrb[0].mxu0
    %v3883 = vadd.f32 0.0, %v3882
    %v3884 = vpop.f32.mrb[0].mxu0
    %v3885 = vpop.f32.mrb[0].mxu0
    %v3886 = vpop.f32.mrb[0].mxu0
    %3887 = vdwg.mxu0
    %v3889 = vsel %vm1805, %v3839, 0
    %v3892 = vsel %vm1805, %v3841, 0
    %3894 = vmatprep.subr.bf16.mxu0 0
    %3895 = vmatpush1.bf16.xpose.msra.mxu0 %v3892
    %3896 = vmatprep.subr.bf16.mxu0 0
    %3897 = vmatpush1.bf16.xpose.msra.mxu0 0
    %3898 = vmatprep.subr.bf16.mxu0 0
    %3899 = vmatpush1.bf16.xpose.msra.mxu0 0
    %3900 = vmatprep.subr.bf16.mxu0 0
    %3901 = vmatpush1.bf16.xpose.msra.mxu0 0
    %3902 = vmatprep.subr.bf16.mxu0 0
    %3903 = vmatpush1.bf16.xpose.msra.mxu0 0
    %3904 = vmatprep.subr.bf16.mxu0 0
    %3905 = vmatpush1.bf16.xpose.msra.mxu0 0
    %3906 = vmatprep.subr.bf16.mxu0 0
    %3907 = vmatpush1.bf16.xpose.msra.mxu0 0
    %3908 = vmatprep.subr.bf16.mxu0 0
    %3909 = vmatpush1.bf16.xpose.msra.mxu0 0
    %3910 = vmatprep.subr.bf16.mxu0 0
    %3911 = vmatpush1.bf16.xpose.msra.mxu0 0
    %3912 = vmatprep.subr.bf16.mxu0 0
    %3913 = vmatpush1.bf16.xpose.msra.mxu0 0
    %3914 = vmatprep.subr.bf16.mxu0 0
    %3915 = vmatpush1.bf16.xpose.msra.mxu0 0
    %3916 = vmatprep.subr.bf16.mxu0 0
    %3917 = vmatpush1.bf16.xpose.msra.mxu0 0
    %3918 = vmatprep.subr.bf16.mxu0 0
    %3919 = vmatpush1.bf16.xpose.msra.mxu0 0
    %3920 = vmatprep.subr.bf16.mxu0 0
    %3921 = vmatpush1.bf16.xpose.msra.mxu0 0
    %3922 = vmatprep.subr.bf16.mxu0 0
    %3923 = vmatpush1.bf16.xpose.msra.mxu0 0
    %3924 = vmatprep.subr.bf16.mxu0 0
    %3925 = vmatpush1.bf16.xpose.msra.mxu0 0
    %3926 = vmatprep.mubr.bf16.mxu0 0
    %3927 = vmatmul.mubr.bf16.gmra.mrb[0].mxu0 %v3889
    %v3928 = vpop.f32.mrb[0].mxu0
    %v3929 = vadd.f32 0.0, %v3928
    %v3930 = vpop.f32.mrb[0].mxu0
    %v3931 = vpop.f32.mrb[0].mxu0
    %v3932 = vpop.f32.mrb[0].mxu0
    %3933 = vdwg.mxu0
    %vm3934 = vcmask 64512
    %v3935 = vsel %vm3934, %v3883, -inf
    %3936 = vmax.xlane.f32.xlu0 %v3935
    %v3937 = vpop.xlane.xlu0 %3936
    %v3938 = vsel %vm3934, %v3929, -inf
    %3939 = vmax.xlane.f32.xlu0 %v3938
    %v3940 = vpop.xlane.xlu0 %3939
    %v3941 = vsub.f32 %v3883, %v3937
    %v3942 = vsub.f32 %v3929, %v3940
    %v3943 = vmul.f32 %v3941, 1.442695
    %v3944 = vpow.pop %v3943
    %v3945 = vmul.f32 %v3942, 1.442695
    %v3946 = vpow.pop %v3945
    %v3947 = vsel %vm3934, %v3944, 0.0
    %3948 = vadd.xlane.f32.xlu0 %v3947
    %v3949 = vpop.xlane.xlu0 %3948
    %v3950 = vsel %vm3934, %v3946, 0.0
    %3951 = vadd.xlane.f32.xlu0 %v3950
    %v3952 = vpop.xlane.xlu0 %3951
    %v3953 = vrcp.pop %v3949
    %v3954 = vrcp.pop %v3952
    %v3955 = vmul.f32 %v3944, %v3953
    %v3956 = vmul.f32 %v3946, %v3954
    %v3957 = vpack.c.bf16 %v3955, %v3955
    %v3958 = vpack.c.bf16 %v3956, %v3956
    %v3959 = vpack.c.bf16 %v3832, %v3832
    %v3960 = vpack.c.bf16 %v3835, %v3835
    %v3962 = vsel %vm3934, %v3957, 0
    %vm3964 = vcmask 1043456
    %v3966 = vsel %vm3964, %v3959, 0
    %3968 = vmatprep.subr.bf16.mxu0 0
    %3969 = vmatpush1.bf16.msra.mxu0 %v3966
    %3970 = vmatprep.subr.bf16.mxu0 0
    %3971 = vmatpush1.bf16.msra.mxu0 0
    %3972 = vmatprep.subr.bf16.mxu0 0
    %3973 = vmatpush1.bf16.msra.mxu0 0
    %3974 = vmatprep.subr.bf16.mxu0 0
    %3975 = vmatpush1.bf16.msra.mxu0 0
    %3976 = vmatprep.subr.bf16.mxu0 0
    %3977 = vmatpush1.bf16.msra.mxu0 0
    %3978 = vmatprep.subr.bf16.mxu0 0
    %3979 = vmatpush1.bf16.msra.mxu0 0
    %3980 = vmatprep.subr.bf16.mxu0 0
    %3981 = vmatpush1.bf16.msra.mxu0 0
    %3982 = vmatprep.subr.bf16.mxu0 0
    %3983 = vmatpush1.bf16.msra.mxu0 0
    %3984 = vmatprep.subr.bf16.mxu0 0
    %3985 = vmatpush1.bf16.msra.mxu0 0
    %3986 = vmatprep.subr.bf16.mxu0 0
    %3987 = vmatpush1.bf16.msra.mxu0 0
    %3988 = vmatprep.subr.bf16.mxu0 0
    %3989 = vmatpush1.bf16.msra.mxu0 0
    %3990 = vmatprep.subr.bf16.mxu0 0
    %3991 = vmatpush1.bf16.msra.mxu0 0
    %3992 = vmatprep.subr.bf16.mxu0 0
    %3993 = vmatpush1.bf16.msra.mxu0 0
    %3994 = vmatprep.subr.bf16.mxu0 0
    %3995 = vmatpush1.bf16.msra.mxu0 0
    %3996 = vmatprep.subr.bf16.mxu0 0
    %3997 = vmatpush1.bf16.msra.mxu0 0
    %3998 = vmatprep.subr.bf16.mxu0 0
    %3999 = vmatpush1.bf16.msra.mxu0 0
    %4000 = vmatprep.mubr.bf16.mxu0 0
    %4001 = vmatmul.mubr.bf16.gmra.mrb[0].mxu0 %v3962
    %v4002 = vpop.f32.mrb[0].mxu0
    %v4003 = vadd.f32 0.0, %v4002
    %v4004 = vpop.f32.mrb[0].mxu0
    %v4005 = vpop.f32.mrb[0].mxu0
    %v4006 = vpop.f32.mrb[0].mxu0
    %4007 = vdwg.mxu0
    %v4009 = vsel %vm3934, %v3958, 0
    %v4012 = vsel %vm3964, %v3960, 0
    %4014 = vmatprep.subr.bf16.mxu0 0
    %4015 = vmatpush1.bf16.msra.mxu0 %v4012
    %4016 = vmatprep.subr.bf16.mxu0 0
    %4017 = vmatpush1.bf16.msra.mxu0 0
    %4018 = vmatprep.subr.bf16.mxu0 0
    %4019 = vmatpush1.bf16.msra.mxu0 0
    %4020 = vmatprep.subr.bf16.mxu0 0
    %4021 = vmatpush1.bf16.msra.mxu0 0
    %4022 = vmatprep.subr.bf16.mxu0 0
    %4023 = vmatpush1.bf16.msra.mxu0 0
    %4024 = vmatprep.subr.bf16.mxu0 0
    %4025 = vmatpush1.bf16.msra.mxu0 0
    %4026 = vmatprep.subr.bf16.mxu0 0
    %4027 = vmatpush1.bf16.msra.mxu0 0
    %4028 = vmatprep.subr.bf16.mxu0 0
    %4029 = vmatpush1.bf16.msra.mxu0 0
    %4030 = vmatprep.subr.bf16.mxu0 0
    %4031 = vmatpush1.bf16.msra.mxu0 0
    %4032 = vmatprep.subr.bf16.mxu0 0
    %4033 = vmatpush1.bf16.msra.mxu0 0
    %4034 = vmatprep.subr.bf16.mxu0 0
    %4035 = vmatpush1.bf16.msra.mxu0 0
    %4036 = vmatprep.subr.bf16.mxu0 0
    %4037 = vmatpush1.bf16.msra.mxu0 0
    %4038 = vmatprep.subr.bf16.mxu0 0
    %4039 = vmatpush1.bf16.msra.mxu0 0
    %4040 = vmatprep.subr.bf16.mxu0 0
    %4041 = vmatpush1.bf16.msra.mxu0 0
    %4042 = vmatprep.subr.bf16.mxu0 0
    %4043 = vmatpush1.bf16.msra.mxu0 0
    %4044 = vmatprep.subr.bf16.mxu0 0
    %4045 = vmatpush1.bf16.msra.mxu0 0
    %4046 = vmatprep.mubr.bf16.mxu0 0
    %4047 = vmatmul.mubr.bf16.gmra.mrb[0].mxu0 %v4009
    %v4048 = vpop.f32.mrb[0].mxu0
    %v4049 = vadd.f32 0.0, %v4048
    %v4050 = vpop.f32.mrb[0].mxu0
    %v4051 = vpop.f32.mrb[0].mxu0
    %v4052 = vpop.f32.mrb[0].mxu0
    %4053 = vdwg.mxu0
    %4055 = vrot.lane.b32.xlu0 %v3838, 64
    %v4056 = vpop.permute.xlu0 %4055
    %4058 = vrot.lane.b32.xlu0 %v3840, 64
    %v4059 = vpop.permute.xlu0 %4058
    %v4061 = vsel %vm1805, %v4056, 0
    %v4064 = vsel %vm1805, %v4059, 0
    %4066 = vmatprep.subr.bf16.mxu0 0
    %4067 = vmatpush1.bf16.xpose.msra.mxu0 %v4064
    %4068 = vmatprep.subr.bf16.mxu0 0
    %4069 = vmatpush1.bf16.xpose.msra.mxu0 0
    %4070 = vmatprep.subr.bf16.mxu0 0
    %4071 = vmatpush1.bf16.xpose.msra.mxu0 0
    %4072 = vmatprep.subr.bf16.mxu0 0
    %4073 = vmatpush1.bf16.xpose.msra.mxu0 0
    %4074 = vmatprep.subr.bf16.mxu0 0
    %4075 = vmatpush1.bf16.xpose.msra.mxu0 0
    %4076 = vmatprep.subr.bf16.mxu0 0
    %4077 = vmatpush1.bf16.xpose.msra.mxu0 0
    %4078 = vmatprep.subr.bf16.mxu0 0
    %4079 = vmatpush1.bf16.xpose.msra.mxu0 0
    %4080 = vmatprep.subr.bf16.mxu0 0
    %4081 = vmatpush1.bf16.xpose.msra.mxu0 0
    %4082 = vmatprep.subr.bf16.mxu0 0
    %4083 = vmatpush1.bf16.xpose.msra.mxu0 0
    %4084 = vmatprep.subr.bf16.mxu0 0
    %4085 = vmatpush1.bf16.xpose.msra.mxu0 0
    %4086 = vmatprep.subr.bf16.mxu0 0
    %4087 = vmatpush1.bf16.xpose.msra.mxu0 0
    %4088 = vmatprep.subr.bf16.mxu0 0
    %4089 = vmatpush1.bf16.xpose.msra.mxu0 0
    %4090 = vmatprep.subr.bf16.mxu0 0
    %4091 = vmatpush1.bf16.xpose.msra.mxu0 0
    %4092 = vmatprep.subr.bf16.mxu0 0
    %4093 = vmatpush1.bf16.xpose.msra.mxu0 0
    %4094 = vmatprep.subr.bf16.mxu0 0
    %4095 = vmatpush1.bf16.xpose.msra.mxu0 0
    %4096 = vmatprep.subr.bf16.mxu0 0
    %4097 = vmatpush1.bf16.xpose.msra.mxu0 0
    %4098 = vmatprep.mubr.bf16.mxu0 0
    %4099 = vmatmul.mubr.bf16.gmra.mrb[0].mxu0 %v4061
    %v4100 = vpop.f32.mrb[0].mxu0
    %v4101 = vadd.f32 0.0, %v4100
    %v4102 = vpop.f32.mrb[0].mxu0
    %v4103 = vpop.f32.mrb[0].mxu0
    %v4104 = vpop.f32.mrb[0].mxu0
    %4105 = vdwg.mxu0
    %4107 = vrot.lane.b32.xlu0 %v3839, 64
    %v4108 = vpop.permute.xlu0 %4107
    %4110 = vrot.lane.b32.xlu0 %v3841, 64
    %v4111 = vpop.permute.xlu0 %4110
    %v4113 = vsel %vm1805, %v4108, 0
    %v4116 = vsel %vm1805, %v4111, 0
    %4118 = vmatprep.subr.bf16.mxu0 0
    %4119 = vmatpush1.bf16.xpose.msra.mxu0 %v4116
    %4120 = vmatprep.subr.bf16.mxu0 0
    %4121 = vmatpush1.bf16.xpose.msra.mxu0 0
    %4122 = vmatprep.subr.bf16.mxu0 0
    %4123 = vmatpush1.bf16.xpose.msra.mxu0 0
    %4124 = vmatprep.subr.bf16.mxu0 0
    %4125 = vmatpush1.bf16.xpose.msra.mxu0 0
    %4126 = vmatprep.subr.bf16.mxu0 0
    %4127 = vmatpush1.bf16.xpose.msra.mxu0 0
    %4128 = vmatprep.subr.bf16.mxu0 0
    %4129 = vmatpush1.bf16.xpose.msra.mxu0 0
    %4130 = vmatprep.subr.bf16.mxu0 0
    %4131 = vmatpush1.bf16.xpose.msra.mxu0 0
    %4132 = vmatprep.subr.bf16.mxu0 0
    %4133 = vmatpush1.bf16.xpose.msra.mxu0 0
    %4134 = vmatprep.subr.bf16.mxu0 0
    %4135 = vmatpush1.bf16.xpose.msra.mxu0 0
    %4136 = vmatprep.subr.bf16.mxu0 0
    %4137 = vmatpush1.bf16.xpose.msra.mxu0 0
    %4138 = vmatprep.subr.bf16.mxu0 0
    %4139 = vmatpush1.bf16.xpose.msra.mxu0 0
    %4140 = vmatprep.subr.bf16.mxu0 0
    %4141 = vmatpush1.bf16.xpose.msra.mxu0 0
    %4142 = vmatprep.subr.bf16.mxu0 0
    %4143 = vmatpush1.bf16.xpose.msra.mxu0 0
    %4144 = vmatprep.subr.bf16.mxu0 0
    %4145 = vmatpush1.bf16.xpose.msra.mxu0 0
    %4146 = vmatprep.subr.bf16.mxu0 0
    %4147 = vmatpush1.bf16.xpose.msra.mxu0 0
    %4148 = vmatprep.subr.bf16.mxu0 0
    %4149 = vmatpush1.bf16.xpose.msra.mxu0 0
    %4150 = vmatprep.mubr.bf16.mxu0 0
    %4151 = vmatmul.mubr.bf16.gmra.mrb[0].mxu0 %v4113
    %v4152 = vpop.f32.mrb[0].mxu0
    %v4153 = vadd.f32 0.0, %v4152
    %v4154 = vpop.f32.mrb[0].mxu0
    %v4155 = vpop.f32.mrb[0].mxu0
    %v4156 = vpop.f32.mrb[0].mxu0
    %4157 = vdwg.mxu0
    %v4158 = vsel %vm3934, %v4101, -inf
    %4159 = vmax.xlane.f32.xlu0 %v4158
    %v4160 = vpop.xlane.xlu0 %4159
    %v4161 = vsel %vm3934, %v4153, -inf
    %4162 = vmax.xlane.f32.xlu0 %v4161
    %v4163 = vpop.xlane.xlu0 %4162
    %v4164 = vsub.f32 %v4101, %v4160
    %v4165 = vsub.f32 %v4153, %v4163
    %v4166 = vmul.f32 %v4164, 1.442695
    %v4167 = vpow.pop %v4166
    %v4168 = vmul.f32 %v4165, 1.442695
    %v4169 = vpow.pop %v4168
    %v4170 = vsel %vm3934, %v4167, 0.0
    %4171 = vadd.xlane.f32.xlu0 %v4170
    %v4172 = vpop.xlane.xlu0 %4171
    %v4173 = vsel %vm3934, %v4169, 0.0
    %4174 = vadd.xlane.f32.xlu0 %v4173
    %v4175 = vpop.xlane.xlu0 %4174
    %v4176 = vrcp.pop %v4172
    %v4177 = vrcp.pop %v4175
    %v4178 = vmul.f32 %v4167, %v4176
    %v4179 = vmul.f32 %v4169, %v4177
    %v4180 = vpack.c.bf16 %v4178, %v4178
    %v4181 = vpack.c.bf16 %v4179, %v4179
    %4183 = vrot.lane.b32.xlu0 %v3959, 64
    %v4184 = vpop.permute.xlu0 %4183
    %v4186 = vsel %vm3934, %v4180, 0
    %v4189 = vsel %vm3964, %v4184, 0
    %4191 = vmatprep.subr.bf16.mxu0 0
    %4192 = vmatpush1.bf16.msra.mxu0 %v4189
    %4193 = vmatprep.subr.bf16.mxu0 0
    %4194 = vmatpush1.bf16.msra.mxu0 0
    %4195 = vmatprep.subr.bf16.mxu0 0
    %4196 = vmatpush1.bf16.msra.mxu0 0
    %4197 = vmatprep.subr.bf16.mxu0 0
    %4198 = vmatpush1.bf16.msra.mxu0 0
    %4199 = vmatprep.subr.bf16.mxu0 0
    %4200 = vmatpush1.bf16.msra.mxu0 0
    %4201 = vmatprep.subr.bf16.mxu0 0
    %4202 = vmatpush1.bf16.msra.mxu0 0
    %4203 = vmatprep.subr.bf16.mxu0 0
    %4204 = vmatpush1.bf16.msra.mxu0 0
    %4205 = vmatprep.subr.bf16.mxu0 0
    %4206 = vmatpush1.bf16.msra.mxu0 0
    %4207 = vmatprep.subr.bf16.mxu0 0
    %4208 = vmatpush1.bf16.msra.mxu0 0
    %4209 = vmatprep.subr.bf16.mxu0 0
    %4210 = vmatpush1.bf16.msra.mxu0 0
    %4211 = vmatprep.subr.bf16.mxu0 0
    %4212 = vmatpush1.bf16.msra.mxu0 0
    %4213 = vmatprep.subr.bf16.mxu0 0
    %4214 = vmatpush1.bf16.msra.mxu0 0
    %4215 = vmatprep.subr.bf16.mxu0 0
    %4216 = vmatpush1.bf16.msra.mxu0 0
    %4217 = vmatprep.subr.bf16.mxu0 0
    %4218 = vmatpush1.bf16.msra.mxu0 0
    %4219 = vmatprep.subr.bf16.mxu0 0
    %4220 = vmatpush1.bf16.msra.mxu0 0
    %4221 = vmatprep.subr.bf16.mxu0 0
    %4222 = vmatpush1.bf16.msra.mxu0 0
    %4223 = vmatprep.mubr.bf16.mxu0 0
    %4224 = vmatmul.mubr.bf16.gmra.mrb[0].mxu0 %v4186
    %v4225 = vpop.f32.mrb[0].mxu0
    %v4226 = vadd.f32 0.0, %v4225
    %v4227 = vpop.f32.mrb[0].mxu0
    %v4228 = vpop.f32.mrb[0].mxu0
    %v4229 = vpop.f32.mrb[0].mxu0
    %4230 = vdwg.mxu0
    %4232 = vrot.lane.b32.xlu0 %v3960, 64
    %v4233 = vpop.permute.xlu0 %4232
    %v4235 = vsel %vm3934, %v4181, 0
    %v4238 = vsel %vm3964, %v4233, 0
    %4240 = vmatprep.subr.bf16.mxu0 0
    %4241 = vmatpush1.bf16.msra.mxu0 %v4238
    %4242 = vmatprep.subr.bf16.mxu0 0
    %4243 = vmatpush1.bf16.msra.mxu0 0
    %4244 = vmatprep.subr.bf16.mxu0 0
    %4245 = vmatpush1.bf16.msra.mxu0 0
    %4246 = vmatprep.subr.bf16.mxu0 0
    %4247 = vmatpush1.bf16.msra.mxu0 0
    %4248 = vmatprep.subr.bf16.mxu0 0
    %4249 = vmatpush1.bf16.msra.mxu0 0
    %4250 = vmatprep.subr.bf16.mxu0 0
    %4251 = vmatpush1.bf16.msra.mxu0 0
    %4252 = vmatprep.subr.bf16.mxu0 0
    %4253 = vmatpush1.bf16.msra.mxu0 0
    %4254 = vmatprep.subr.bf16.mxu0 0
    %4255 = vmatpush1.bf16.msra.mxu0 0
    %4256 = vmatprep.subr.bf16.mxu0 0
    %4257 = vmatpush1.bf16.msra.mxu0 0
    %4258 = vmatprep.subr.bf16.mxu0 0
    %4259 = vmatpush1.bf16.msra.mxu0 0
    %4260 = vmatprep.subr.bf16.mxu0 0
    %4261 = vmatpush1.bf16.msra.mxu0 0
    %4262 = vmatprep.subr.bf16.mxu0 0
    %4263 = vmatpush1.bf16.msra.mxu0 0
    %4264 = vmatprep.subr.bf16.mxu0 0
    %4265 = vmatpush1.bf16.msra.mxu0 0
    %4266 = vmatprep.subr.bf16.mxu0 0
    %4267 = vmatpush1.bf16.msra.mxu0 0
    %4268 = vmatprep.subr.bf16.mxu0 0
    %4269 = vmatpush1.bf16.msra.mxu0 0
    %4270 = vmatprep.subr.bf16.mxu0 0
    %4271 = vmatpush1.bf16.msra.mxu0 0
    %4272 = vmatprep.mubr.bf16.mxu0 0
    %4273 = vmatmul.mubr.bf16.gmra.mrb[0].mxu0 %v4235
    %v4274 = vpop.f32.mrb[0].mxu0
    %v4275 = vadd.f32 0.0, %v4274
    %v4276 = vpop.f32.mrb[0].mxu0
    %v4277 = vpop.f32.mrb[0].mxu0
    %v4278 = vpop.f32.mrb[0].mxu0
    %4279 = vdwg.mxu0
    %4282 = vrot.lane.b32.xlu0 %v4226, 64
    %v4283 = vpop.permute.xlu0 %4282
    %4284 = vrot.lane.b32.xlu0 %v4275, 64
    %v4285 = vpop.permute.xlu0 %4284
    %v4288 = vsel %vm1805, %v4003, %v4283
    %v4289 = vsel %vm1805, %v4049, %v4285
    %v4290 = vpack.c.bf16 %v4289, %v4288
    %v4291 = vld [vmem:[#allocation9] sm:$0xf]
    %v4292 = vld [vmem:[#allocation9 + $0x4] sm:$0xf]
    %v4293 = vld [vmem:[#allocation9 + $0x8] sm:$0xf]
    %v4294 = vld [vmem:[#allocation9 + $0xc] sm:$0xf]
    %v4295 = vld [vmem:[#allocation9 + $0x10] sm:$0xf]
    %v4296 = vld [vmem:[#allocation9 + $0x14] sm:$0xf]
    %v4297 = vld [vmem:[#allocation9 + $0x18] sm:$0xf]
    %v4298 = vld [vmem:[#allocation9 + $0x1c] sm:$0xf]
    %v4299 = vld [vmem:[#allocation9 + $0x20] sm:$0xf]
    %v4300 = vld [vmem:[#allocation9 + $0x24] sm:$0xf]
    %v4301 = vld [vmem:[#allocation9 + $0x28] sm:$0xf]
    %v4302 = vld [vmem:[#allocation9 + $0x2c] sm:$0xf]
    %v4303 = vld [vmem:[#allocation9 + $0x30] sm:$0xf]
    %v4304 = vld [vmem:[#allocation9 + $0x34] sm:$0xf]
    %v4305 = vld [vmem:[#allocation9 + $0x38] sm:$0xf]
    %v4306 = vld [vmem:[#allocation9 + $0x3c] sm:$0xf]
    %v4307 = vld [vmem:[%s11] sm:$0x1]
    %v4309 = vlaneseq
    %v4310 = vshrl.u32 %v4309, 7
    %v4311 = vsub.s32 0, %v4310
    %v4312 = vrot.slane %v4307, %v4311
    %v4330 = vunpack.c.l.b16 %v4291
    %v4331 = vunpack.c.l.b16 %v4292
    %v4332 = vunpack.c.l.b16 %v4293
    %v4333 = vunpack.c.l.b16 %v4294
    %v4334 = vunpack.c.l.b16 %v4295
    %v4335 = vunpack.c.l.b16 %v4296
    %v4336 = vunpack.c.l.b16 %v4297
    %v4337 = vunpack.c.l.b16 %v4298
    %v4338 = vunpack.c.l.b16 %v4299
    %v4339 = vunpack.c.l.b16 %v4300
    %v4340 = vunpack.c.l.b16 %v4301
    %v4341 = vunpack.c.l.b16 %v4302
    %v4342 = vunpack.c.l.b16 %v4303
    %v4343 = vunpack.c.l.b16 %v4304
    %v4344 = vunpack.c.l.b16 %v4305
    %v4345 = vunpack.c.l.b16 %v4306
    %v4346 = vpack.c.b16 %v4331, %v4330
    %v4347 = vpack.c.b16 %v4333, %v4332
    %v4348 = vpack.c.b16 %v4335, %v4334
    %v4349 = vpack.c.b16 %v4337, %v4336
    %v4350 = vpack.c.b16 %v4339, %v4338
    %v4351 = vpack.c.b16 %v4341, %v4340
    %v4352 = vpack.c.b16 %v4343, %v4342
    %v4353 = vpack.c.b16 %v4345, %v4344
    %4362 = vmatprep.subr.bf16.mxu0 0
    %4363 = vmatpush1.bf16.msra.mxu0 %v4346
    %4364 = vmatprep.subr.bf16.mxu0 0
    %4365 = vmatpush1.bf16.msra.mxu0 %v4347
    %4366 = vmatprep.subr.bf16.mxu0 0
    %4367 = vmatpush1.bf16.msra.mxu0 %v4348
    %4368 = vmatprep.subr.bf16.mxu0 0
    %4369 = vmatpush1.bf16.msra.mxu0 %v4349
    %4370 = vmatprep.subr.bf16.mxu0 0
    %4371 = vmatpush1.bf16.msra.mxu0 %v4350
    %4372 = vmatprep.subr.bf16.mxu0 0
    %4373 = vmatpush1.bf16.msra.mxu0 %v4351
    %4374 = vmatprep.subr.bf16.mxu0 0
    %4375 = vmatpush1.bf16.msra.mxu0 %v4352
    %4376 = vmatprep.subr.bf16.mxu0 0
    %4377 = vmatpush1.bf16.msra.mxu0 %v4353
    %4378 = vmatprep.subr.bf16.mxu0 0
    %4379 = vmatpush1.bf16.msra.mxu0 0
    %4380 = vmatprep.subr.bf16.mxu0 0
    %4381 = vmatpush1.bf16.msra.mxu0 0
    %4382 = vmatprep.subr.bf16.mxu0 0
    %4383 = vmatpush1.bf16.msra.mxu0 0
    %4384 = vmatprep.subr.bf16.mxu0 0
    %4385 = vmatpush1.bf16.msra.mxu0 0
    %4386 = vmatprep.subr.bf16.mxu0 0
    %4387 = vmatpush1.bf16.msra.mxu0 0
    %4388 = vmatprep.subr.bf16.mxu0 0
    %4389 = vmatpush1.bf16.msra.mxu0 0
    %4390 = vmatprep.subr.bf16.mxu0 0
    %4391 = vmatpush1.bf16.msra.mxu0 0
    %4392 = vmatprep.subr.bf16.mxu0 0
    %4393 = vmatpush1.bf16.msra.mxu0 0
    %4394 = vmatprep.mubr.bf16.mxu0 0
    %4395 = vmatmul.mubr.bf16.gmra.mrb[0].mxu0 %v4290
    %v4396 = vpop.f32.mrb[0].mxu0
    %v4397 = vadd.f32 %v4312, %v4396
    %v4398 = vpop.f32.mrb[0].mxu0
    %v4399 = vpop.f32.mrb[0].mxu0
    %v4400 = vadd.f32 %v4312, %v4399
    %v4401 = vpop.f32.mrb[0].mxu0
    %4402 = vdwg.mxu0
    %v4403 = vpack.c.bf16 %v4400, %v4397
    %v4404 = vld [vmem:[#allocation10] sm:$0xf]
    %v4405 = vld [vmem:[#allocation10 + $0x4] sm:$0xf]
    %v4406 = vld [vmem:[#allocation10 + $0x8] sm:$0xf]
    %v4407 = vld [vmem:[#allocation10 + $0xc] sm:$0xf]
    %v4408 = vld [vmem:[#allocation10 + $0x10] sm:$0xf]
    %v4409 = vld [vmem:[#allocation10 + $0x14] sm:$0xf]
    %v4410 = vld [vmem:[#allocation10 + $0x18] sm:$0xf]
    %v4411 = vld [vmem:[#allocation10 + $0x1c] sm:$0xf]
    %v4412 = vld [vmem:[#allocation10 + $0x20] sm:$0xf]
    %v4413 = vld [vmem:[#allocation10 + $0x24] sm:$0xf]
    %v4414 = vld [vmem:[#allocation10 + $0x28] sm:$0xf]
    %v4415 = vld [vmem:[#allocation10 + $0x2c] sm:$0xf]
    %v4416 = vld [vmem:[#allocation10 + $0x30] sm:$0xf]
    %v4417 = vld [vmem:[#allocation10 + $0x34] sm:$0xf]
    %v4418 = vld [vmem:[#allocation10 + $0x38] sm:$0xf]
    %v4419 = vld [vmem:[#allocation10 + $0x3c] sm:$0xf]
    %v4420 = vld [vmem:[%s13] sm:$0x1]
    %v4422 = vlaneseq
    %v4423 = vshrl.u32 %v4422, 7
    %v4424 = vsub.s32 0, %v4423
    %v4425 = vrot.slane %v4420, %v4424
    %v4443 = vunpack.c.l.b16 %v4404
    %v4444 = vunpack.c.l.b16 %v4405
    %v4445 = vunpack.c.l.b16 %v4406
    %v4446 = vunpack.c.l.b16 %v4407
    %v4447 = vunpack.c.l.b16 %v4408
    %v4448 = vunpack.c.l.b16 %v4409
    %v4449 = vunpack.c.l.b16 %v4410
    %v4450 = vunpack.c.l.b16 %v4411
    %v4451 = vunpack.c.l.b16 %v4412
    %v4452 = vunpack.c.l.b16 %v4413
    %v4453 = vunpack.c.l.b16 %v4414
    %v4454 = vunpack.c.l.b16 %v4415
    %v4455 = vunpack.c.l.b16 %v4416
    %v4456 = vunpack.c.l.b16 %v4417
    %v4457 = vunpack.c.l.b16 %v4418
    %v4458 = vunpack.c.l.b16 %v4419
    %v4459 = vpack.c.b16 %v4444, %v4443
    %v4460 = vpack.c.b16 %v4446, %v4445
    %v4461 = vpack.c.b16 %v4448, %v4447
    %v4462 = vpack.c.b16 %v4450, %v4449
    %v4463 = vpack.c.b16 %v4452, %v4451
    %v4464 = vpack.c.b16 %v4454, %v4453
    %v4465 = vpack.c.b16 %v4456, %v4455
    %v4466 = vpack.c.b16 %v4458, %v4457
    %4475 = vmatprep.subr.bf16.mxu0 0
    %4476 = vmatpush1.bf16.msra.mxu0 %v4459
    %4477 = vmatprep.subr.bf16.mxu0 0
    %4478 = vmatpush1.bf16.msra.mxu0 %v4460
    %4479 = vmatprep.subr.bf16.mxu0 0
    %4480 = vmatpush1.bf16.msra.mxu0 %v4461
    %4481 = vmatprep.subr.bf16.mxu0 0
    %4482 = vmatpush1.bf16.msra.mxu0 %v4462
    %4483 = vmatprep.subr.bf16.mxu0 0
    %4484 = vmatpush1.bf16.msra.mxu0 %v4463
    %4485 = vmatprep.subr.bf16.mxu0 0
    %4486 = vmatpush1.bf16.msra.mxu0 %v4464
    %4487 = vmatprep.subr.bf16.mxu0 0
    %4488 = vmatpush1.bf16.msra.mxu0 %v4465
    %4489 = vmatprep.subr.bf16.mxu0 0
    %4490 = vmatpush1.bf16.msra.mxu0 %v4466
    %4491 = vmatprep.subr.bf16.mxu0 0
    %4492 = vmatpush1.bf16.msra.mxu0 0
    %4493 = vmatprep.subr.bf16.mxu0 0
    %4494 = vmatpush1.bf16.msra.mxu0 0
    %4495 = vmatprep.subr.bf16.mxu0 0
    %4496 = vmatpush1.bf16.msra.mxu0 0
    %4497 = vmatprep.subr.bf16.mxu0 0
    %4498 = vmatpush1.bf16.msra.mxu0 0
    %4499 = vmatprep.subr.bf16.mxu0 0
    %4500 = vmatpush1.bf16.msra.mxu0 0
    %4501 = vmatprep.subr.bf16.mxu0 0
    %4502 = vmatpush1.bf16.msra.mxu0 0
    %4503 = vmatprep.subr.bf16.mxu0 0
    %4504 = vmatpush1.bf16.msra.mxu0 0
    %4505 = vmatprep.subr.bf16.mxu0 0
    %4506 = vmatpush1.bf16.msra.mxu0 0
    %4507 = vmatprep.mubr.bf16.mxu0 0
    %4508 = vmatmul.mubr.bf16.gmra.mrb[0].mxu0 %v4403
    %v4509 = vpop.f32.mrb[0].mxu0
    %v4510 = vadd.f32 %v4425, %v4509
    %v4511 = vpop.f32.mrb[0].mxu0
    %v4512 = vpop.f32.mrb[0].mxu0
    %v4513 = vadd.f32 %v4425, %v4512
    %v4514 = vpop.f32.mrb[0].mxu0
    %4515 = vdwg.mxu0
    %4516 = vst [vmem:[%s14] sm:$0xff] %v4510
    %4517 = vst [vmem:[%s14 + $0x8] sm:$0xff] %v4513
    // Predicated region
    $region82: #{model_ee_forward.1} parent=1 // pred_check
      _
    $region83: #{model_ee_forward.1} parent=1 // pred_check_branch
      %4519 = sbr.rel (0) target = $region85
    $region84: #{model_ee_forward.1} parent=1 // pred_region
      _
    $region85: #{model_ee_forward.1} parent=1 // pred_fallthru
      _
    // Predicated region
    $region86: #{model_ee_forward.1} parent=1 // pred_check
      _
    $region87: #{model_ee_forward.1} parent=1 // pred_check_branch
      %4521 = sbr.rel (0) target = $region89
    $region88: #{model_ee_forward.1} parent=1 // pred_region
      _
    $region89: #{model_ee_forward.1} parent=1 // pred_fallthru
      _
    %4522 = vsyncpa [#allocation3], 1
    %4523 = vsyncpa [#allocation5], 1
    %4524 = vsyncpa [#allocation8], 1
    %4525 = vsyncpa [#allocation11], 1

</llo_original>
